<compile_context>
chip_gen: v7x
topology: tpu7x:2x2x1
jax: 0.10.0
libtpu: 0.0.40
codegen_flags: <defaults>
</compile_context>

<pallas_src>
import jax
import jax.numpy as jnp
import numpy as np
from jax import lax
from jax.experimental import pallas as pl
from jax.experimental.pallas import tpu as pltpu  # noqa: F401  (for TODO'd scaling work)

MIN_STD_DEV = 0.1
HIGHEST = lax.Precision.HIGHEST


def _softplus(x):
  # numerically stable softplus, identical formula used in kernel & reference
  return jnp.maximum(x, 0.0) + jnp.log1p(jnp.exp(-jnp.abs(x)))


# ----------------------------------------------------------------------------
# Pallas kernel: single invocation, in-kernel recurrence over the time axis
# ----------------------------------------------------------------------------
def transition_kernel(
    prev_state_ref, prev_belief_ref,   # (B,S), (B,H)
    nt_ref,                            # (T,B,S)   shifted nonterminals (ones at t=0)
    act_proj_ref,                      # (T,B,H)   actions @ w_sa_a + b_sa
    pq_bias_ref,                       # (T,B,2Hd) [b_bp | obs @ w_bq_o + b_bq]
    noise_ref,                         # (T,B,2S)  [nz_q | nz_p]
    w_sa_s_ref,                        # (S,H)
    w_gru_ref, b_gru_ref,              # (2H,4H), (1,4H)  cols [r | z | gx_n | gh_n]
    w_bel_ref,                         # (H,2Hd)  [w_bp | w_bq_b]
    w_head_ref, b_head_ref,            # (2Hd,4S), (1,4S) cols [q_mean|p_mean|q_raw|p_raw]
    out_ref,                           # (T,B,H+6S) [belief|q_mean|p_mean|q_std|p_std|q_state|p_state]
):
  T = nt_ref.shape[0]
  B, S = prev_state_ref.shape
  H = prev_belief_ref.shape[1]

  # Loop-invariant hoists: weight slabs, broadcast biases, std lane mask.
  w_sa_s = w_sa_s_ref[...]
  w_gru = w_gru_ref[...]
  w_bel = w_bel_ref[...]
  w_head = w_head_ref[...]
  b_gru = jnp.broadcast_to(b_gru_ref[...], (B, 4 * H))
  b_head = jnp.broadcast_to(b_head_ref[...], (B, 4 * S))
  std_mask = lax.broadcasted_iota(jnp.int32, (B, 4 * S), 1) >= 2 * S

  def step(t, carry):
    belief, state = carry              # recurrent carries stay in vregs

    # hidden = relu(fc_embed_state_action([state*nt, action])); action part precomputed.
    hidden = jnp.maximum(
        jnp.dot(state * nt_ref[t], w_sa_s, preferred_element_type=jnp.float32)
        + act_proj_ref[t], 0.0)

    # GRUCell as ONE matmul: [hidden|belief] @ [[Wir Wiz Win 0],[Whr Whz 0 Whn]] + b
    g = jnp.dot(jnp.concatenate([hidden, belief], axis=1), w_gru,
                preferred_element_type=jnp.float32) + b_gru
    r = jax.nn.sigmoid(g[:, 0:H])
    z = jax.nn.sigmoid(g[:, H:2 * H])
    n = jnp.tanh(g[:, 2 * H:3 * H] + r * g[:, 3 * H:4 * H])
    new_belief = (1.0 - z) * n + z * belief

    # prior/posterior hidden in one matmul; obs-dependent part is a precomputed bias.
    hpq = jnp.maximum(
        jnp.dot(new_belief, w_bel, preferred_element_type=jnp.float32)
        + pq_bias_ref[t], 0.0)

    # fused heads -> [q_mean | p_mean | q_raw | p_raw]; softplus only on std lanes.
    heads = jnp.dot(hpq, w_head, preferred_element_type=jnp.float32) + b_head
    heads = jnp.where(std_mask, _softplus(heads) + MIN_STD_DEV, heads)
    # states = means + stds * noise  -> [q_state | p_state]
    states = heads[:, 0:2 * S] + heads[:, 2 * S:4 * S] * noise_ref[t]

    # 3 contiguous stores per step (was 7 narrow masked ones).
    out_ref[t, :, 0:H] = new_belief
    out_ref[t, :, H:H + 4 * S] = heads
    out_ref[t, :, H + 4 * S:H + 6 * S] = states

    # recurrence uses the posterior state (observations provided)
    return new_belief, states[:, 0:S]

  # TODO(synk): at production sizes (T~50, B~50, E~1024) switch to a time-chunk
  # grid ("arbitrary") with a VMEM carry + bounded unroll so the slabs fit
  # v7x's 64 MiB VMEM and DMA overlaps compute; unnecessary at T=6, B=8.
  lax.fori_loop(0, T, step, (prev_belief_ref[...], prev_state_ref[...]),
                unroll=True if T <= 8 else 8)


# ----------------------------------------------------------------------------
# Wrapper
# ----------------------------------------------------------------------------
def transition_forward(params, prev_state, actions, prev_belief, observations,
                       nonterminals, noise_prior, noise_post):
  T, B, A = actions.shape
  S = prev_state.shape[1]
  H = prev_belief.shape[1]
  Hd = params["w_bp"].shape[1]
  f32 = jnp.float32

  # --- fuse weights (one-time, wrapper-side) --------------------------------
  w_ih, w_hh = params["w_ih"], params["w_hh"]
  b_ih, b_hh = params["b_ih"], params["b_hh"]
  zH = jnp.zeros((H, H), f32)
  w_gru = jnp.concatenate([
      jnp.concatenate([w_ih[:, :2 * H], w_ih[:, 2 * H:], zH], axis=1),   # hidden rows
      jnp.concatenate([w_hh[:, :2 * H], zH, w_hh[:, 2 * H:]], axis=1)],  # belief rows
      axis=0)                                                            # (2H,4H)
  b_gru = jnp.concatenate(
      [b_ih[:, :2 * H] + b_hh[:, :2 * H], b_ih[:, 2 * H:], b_hh[:, 2 * H:]],
      axis=1)                                                            # (1,4H)

  w_bel = jnp.concatenate([params["w_bp"], params["w_bq_b"]], axis=1)    # (H,2Hd)

  w_sp, w_sq = params["w_sp"], params["w_sq"]
  b_sp, b_sq = params["b_sp"], params["b_sq"]
  zS = jnp.zeros((Hd, S), f32)
  w_head = jnp.concatenate([
      jnp.concatenate([zS, w_sp[:, :S], zS, w_sp[:, S:]], axis=1),       # hp rows
      jnp.concatenate([w_sq[:, :S], zS, w_sq[:, S:], zS], axis=1)],      # hq rows
      axis=0)                                                            # (2Hd,4S)
  b_head = jnp.concatenate(
      [b_sq[:, :S], b_sp[:, :S], b_sq[:, S:], b_sp[:, S:]], axis=1)      # (1,4S)

  # --- hoist recurrence-independent projections out of the time loop --------
  act_proj = jnp.einsum("tba,ah->tbh", actions, params["w_sa_a"],
                        precision=HIGHEST) + params["b_sa"]              # (T,B,H)
  obs_proj = jnp.einsum("tbe,eh->tbh", observations, params["w_bq_o"],
                        precision=HIGHEST) + params["b_bq"]              # (T,B,Hd)
  pq_bias = jnp.concatenate(
      [jnp.broadcast_to(params["b_bp"], (T, B, Hd)), obs_proj], axis=2)  # (T,B,2Hd)

  # step t (t>0) uses nonterminals[t-1]; pre-shift (row 0 = ones) & pre-broadcast.
  nt = jnp.concatenate([jnp.ones((1, B), f32), nonterminals[:-1]], axis=0)
  nt = jnp.broadcast_to(nt[..., None], (T, B, S))                        # (T,B,S)

  noise2 = jnp.concatenate([noise_post, noise_prior], axis=2)            # (T,B,2S) [q|p]

  outf = H + 6 * S
  # TODO(synk): for B>=16 on v7x add a leading "parallel" batch-tile grid axis
  # (second TensorCore) and consider bf16 weight slabs on v6e/v7x.
  slab = pl.pallas_call(
      transition_kernel,
      out_shape=jax.ShapeDtypeStruct((T, B, outf), f32),
  )(prev_state, prev_belief, nt, act_proj, pq_bias, noise2,
    params["w_sa_s"], w_gru, b_gru, w_bel, w_head, b_head)

  beliefs = slab[:, :, 0:H]
  q_mean = slab[:, :, H:H + S]
  p_mean = slab[:, :, H + S:H + 2 * S]
  q_std = slab[:, :, H + 2 * S:H + 3 * S]
  p_std = slab[:, :, H + 3 * S:H + 4 * S]
  q_state = slab[:, :, H + 4 * S:H + 5 * S]
  p_state = slab[:, :, H + 5 * S:H + 6 * S]
  return beliefs, p_state, p_mean, p_std, q_state, q_mean, q_std


# ----------------------------------------------------------------------------
# Pure-JAX reference (mirrors the PyTorch forward exactly, unfused params)
# ----------------------------------------------------------------------------
def reference_forward(params, prev_state, actions, prev_belief, observations,
                      nonterminals, noise_prior, noise_post):
  mm = lambda a, b: jnp.dot(a, b, precision=HIGHEST)
  seq = actions.shape[0]
  H = prev_belief.shape[1]
  S = prev_state.shape[1]
  belief, post_state = prev_belief, prev_state
  outs = [[] for _ in range(7)]
  for t in range(seq):
    state = post_state
    if t > 0:
      state = state * nonterminals[t - 1][:, None]
    hidden = jnp.maximum(
        mm(state, params["w_sa_s"]) + mm(actions[t], params["w_sa_a"])
        + params["b_sa"], 0.0)
    gx = mm(hidden, params["w_ih"]) + params["b_ih"]
    gh = mm(belief, params["w_hh"]) + params["b_hh"]
    r = jax.nn.sigmoid(gx[:, :H] + gh[:, :H])
    z = jax.nn.sigmoid(gx[:, H:2 * H] + gh[:, H:2 * H])
    n = jnp.tanh(gx[:, 2 * H:] + r * gh[:, 2 * H:])
    belief = (1.0 - z) * n + z * belief

    hp = jnp.maximum(mm(belief, params["w_bp"]) + params["b_bp"], 0.0)
    sp = mm(hp, params["w_sp"]) + params["b_sp"]
    p_mean, p_raw = sp[:, :S], sp[:, S:]
    p_std = _softplus(p_raw) + MIN_STD_DEV
    p_state = p_mean + p_std * noise_prior[t]

    hq = jnp.maximum(
        mm(belief, params["w_bq_b"]) + mm(observations[t], params["w_bq_o"])
        + params["b_bq"], 0.0)
    sq = mm(hq, params["w_sq"]) + params["b_sq"]
    q_mean, q_raw = sq[:, :S], sq[:, S:]
    q_std = _softplus(q_raw) + MIN_STD_DEV
    q_state = q_mean + q_std * noise_post[t]

    for lst, v in zip(outs,
                      [belief, p_state, p_mean, p_std, q_state, q_mean, q_std]):
      lst.append(v)
    post_state = q_state
  return tuple(jnp.stack(l, axis=0) for l in outs)


# ----------------------------------------------------------------------------
# Main
# ----------------------------------------------------------------------------
if __name__ == "__main__":
  # small, module-consistent sizes
  B, S, A, H, Hd, E, seq = 8, 8, 4, 32, 32, 16, 6

  key = jax.random.PRNGKey(0)
  ks = jax.random.split(key, 24)
  rnd = lambda k, shp: (0.1 * jax.random.normal(k, shp)).astype(jnp.float32)

  params = dict(
      w_sa_s=rnd(ks[0], (S, H)), w_sa_a=rnd(ks[1], (A, H)),
      b_sa=rnd(ks[2], (1, H)),
      w_ih=rnd(ks[3], (H, 3 * H)), b_ih=rnd(ks[4], (1, 3 * H)),
      w_hh=rnd(ks[5], (H, 3 * H)), b_hh=rnd(ks[6], (1, 3 * H)),
      w_bp=rnd(ks[7], (H, Hd)), b_bp=rnd(ks[8], (1, Hd)),
      w_sp=rnd(ks[9], (Hd, 2 * S)), b_sp=rnd(ks[10], (1, 2 * S)),
      w_bq_b=rnd(ks[11], (H, Hd)), w_bq_o=rnd(ks[12], (E, Hd)),
      b_bq=rnd(ks[13], (1, Hd)),
      w_sq=rnd(ks[14], (Hd, 2 * S)), b_sq=rnd(ks[15], (1, 2 * S)),
  )

  prev_state = jax.random.normal(ks[16], (B, S), jnp.float32)
  prev_belief = jax.random.normal(ks[17], (B, H), jnp.float32)
  actions = jax.random.normal(ks[18], (seq, B, A), jnp.float32)
  observations = jax.random.normal(ks[19], (seq, B, E), jnp.float32)
  nonterminals = (jax.random.uniform(ks[20], (seq, B)) > 0.1).astype(jnp.float32)
  # TODO(synk): torch.randn_like is drawn inside the torch loop; here the
  # Gaussian noise is pre-sampled deterministically and passed to the kernel.
  noise_prior = jax.random.normal(ks[21], (seq, B, S), jnp.float32)
  noise_post = jax.random.normal(ks[22], (seq, B, S), jnp.float32)

  outs = transition_forward(params, prev_state, actions, prev_belief,
                            observations, nonterminals, noise_prior, noise_post)
  outs = jax.block_until_ready(outs)

  refs = reference_forward(params, prev_state, actions, prev_belief,
                           observations, nonterminals, noise_prior, noise_post)

  names = ["beliefs", "prior_states", "prior_means", "prior_std_devs",
           "posterior_states", "posterior_means", "posterior_std_devs"]
  # tightened from 1e-2; slack covers f32 accumulation-order + EUP approx diffs
  for name, o, r in zip(names, outs, refs):
    np.testing.assert_allclose(np.asarray(o), np.asarray(r),
                               rtol=1e-4, atol=1e-5, err_msg=name)

  print("KERNEL_OK")
</pallas_src>

<mosaic_0001>
module attributes {stable_mosaic.version = 11 : i64} {
  func.func @transition_kernel(%arg0: memref<8x8xf32, #tpu.memory_space<vmem>>, %arg1: memref<8x32xf32, #tpu.memory_space<vmem>>, %arg2: memref<6x8x8xf32, #tpu.memory_space<vmem>>, %arg3: memref<6x8x32xf32, #tpu.memory_space<vmem>>, %arg4: memref<6x8x64xf32, #tpu.memory_space<vmem>>, %arg5: memref<6x8x16xf32, #tpu.memory_space<vmem>>, %arg6: memref<8x32xf32, #tpu.memory_space<vmem>>, %arg7: memref<64x128xf32, #tpu.memory_space<vmem>>, %arg8: memref<1x128xf32, #tpu.memory_space<vmem>>, %arg9: memref<32x64xf32, #tpu.memory_space<vmem>>, %arg10: memref<64x32xf32, #tpu.memory_space<vmem>>, %arg11: memref<1x32xf32, #tpu.memory_space<vmem>>, %arg12: memref<6x8x80xf32, #tpu.memory_space<vmem>>) attributes {dimension_semantics = [], scalar_prefetch = 0 : i64, scratch_operands = 0 : i64, tpu.core_type = #tpu.core_type<tc>} {
    %c0 = arith.constant 0 : index
    %c0_0 = arith.constant 0 : index
    %0 = vector.load %arg6[%c0, %c0_0] : memref<8x32xf32, #tpu.memory_space<vmem>>, vector<8x32xf32>
    %c0_1 = arith.constant 0 : index
    %c0_2 = arith.constant 0 : index
    %1 = vector.load %arg7[%c0_1, %c0_2] : memref<64x128xf32, #tpu.memory_space<vmem>>, vector<64x128xf32>
    %c0_3 = arith.constant 0 : index
    %c0_4 = arith.constant 0 : index
    %2 = vector.load %arg9[%c0_3, %c0_4] : memref<32x64xf32, #tpu.memory_space<vmem>>, vector<32x64xf32>
    %c0_5 = arith.constant 0 : index
    %c0_6 = arith.constant 0 : index
    %3 = vector.load %arg10[%c0_5, %c0_6] : memref<64x32xf32, #tpu.memory_space<vmem>>, vector<64x32xf32>
    %c0_7 = arith.constant 0 : index
    %c0_8 = arith.constant 0 : index
    %4 = vector.load %arg8[%c0_7, %c0_8] : memref<1x128xf32, #tpu.memory_space<vmem>>, vector<1x128xf32>
    %5 = vector.shape_cast %4 : vector<1x128xf32> to vector<1x128xf32>
    %6 = vector.broadcast %5 : vector<1x128xf32> to vector<8x128xf32>
    %c0_9 = arith.constant 0 : index
    %c0_10 = arith.constant 0 : index
    %7 = vector.load %arg11[%c0_9, %c0_10] : memref<1x32xf32, #tpu.memory_space<vmem>>, vector<1x32xf32>
    %8 = vector.shape_cast %7 : vector<1x32xf32> to vector<1x32xf32>
    %9 = vector.broadcast %8 : vector<1x32xf32> to vector<8x32xf32>
    %10 = tpu.iota {dimensions = array<i32: 1>} : vector<8x32xi32>
    %c16_i32 = arith.constant 16 : i32
    %11 = vector.broadcast %c16_i32 : i32 to vector<8x32xi32>
    %12 = arith.cmpi sge, %10, %11 : vector<8x32xi32>
    %c0_11 = arith.constant 0 : index
    %c0_12 = arith.constant 0 : index
    %13 = vector.load %arg1[%c0_11, %c0_12] : memref<8x32xf32, #tpu.memory_space<vmem>>, vector<8x32xf32>
    %c0_13 = arith.constant 0 : index
    %c0_14 = arith.constant 0 : index
    %14 = vector.load %arg0[%c0_13, %c0_14] : memref<8x8xf32, #tpu.memory_space<vmem>>, vector<8x8xf32>
    %c0_i32 = arith.constant 0 : i32
    %15 = arith.index_cast %c0_i32 : i32 to index
    %c0_15 = arith.constant 0 : index
    %c0_16 = arith.constant 0 : index
    %16 = vector.load %arg2[%15, %c0_15, %c0_16] : memref<6x8x8xf32, #tpu.memory_space<vmem>>, vector<1x8x8xf32>
    %17 = vector.shape_cast %16 : vector<1x8x8xf32> to vector<8x8xf32>
    %18 = arith.mulf %14, %17 : vector<8x8xf32>
    %cst = arith.constant dense<0.000000e+00> : vector<8x32xf32>
    %19 = tpu.matmul %18, %0, %cst {dimension_numbers = #tpu.dot_dimension_numbers<[1], [0], [0], [1], [0, 0, 1, 1], [], []>} : vector<8x8xf32>, vector<8x32xf32>, vector<8x32xf32> -> vector<8x32xf32>
    %20 = arith.index_cast %c0_i32 : i32 to index
    %c0_17 = arith.constant 0 : index
    %c0_18 = arith.constant 0 : index
    %21 = vector.load %arg3[%20, %c0_17, %c0_18] : memref<6x8x32xf32, #tpu.memory_space<vmem>>, vector<1x8x32xf32>
    %22 = vector.shape_cast %21 : vector<1x8x32xf32> to vector<8x32xf32>
    %23 = arith.addf %19, %22 : vector<8x32xf32>
    %cst_19 = arith.constant 0.000000e+00 : f32
    %24 = vector.broadcast %cst_19 : f32 to vector<8x32xf32>
    %25 = arith.maximumf %23, %24 : vector<8x32xf32>
    %26 = tpu.concatenate %25, %13 in 1 : vector<8x32xf32>, vector<8x32xf32> -> vector<8x64xf32>
    %cst_20 = arith.constant dense<0.000000e+00> : vector<8x128xf32>
    %27 = tpu.matmul %26, %1, %cst_20 {dimension_numbers = #tpu.dot_dimension_numbers<[1], [0], [0], [1], [0, 0, 1, 1], [], []>} : vector<8x64xf32>, vector<64x128xf32>, vector<8x128xf32> -> vector<8x128xf32>
    %28 = arith.addf %27, %6 : vector<8x128xf32>
    %29 = vector.extract_strided_slice %28 {offsets = [0, 0], sizes = [8, 32], strides = [1, 1]} : vector<8x128xf32> to vector<8x32xf32>
    %30 = arith.negf %29 : vector<8x32xf32>
    %31 = math.exp %30 : vector<8x32xf32>
    %cst_21 = arith.constant 1.000000e+00 : f32
    %32 = vector.broadcast %cst_21 : f32 to vector<8x32xf32>
    %33 = arith.addf %32, %31 : vector<8x32xf32>
    %34 = arith.divf %32, %33 : vector<8x32xf32>
    %35 = vector.extract_strided_slice %28 {offsets = [0, 32], sizes = [8, 32], strides = [1, 1]} : vector<8x128xf32> to vector<8x32xf32>
    %36 = arith.negf %35 : vector<8x32xf32>
    %37 = math.exp %36 : vector<8x32xf32>
    %cst_22 = arith.constant 1.000000e+00 : f32
    %38 = vector.broadcast %cst_22 : f32 to vector<8x32xf32>
    %39 = arith.addf %38, %37 : vector<8x32xf32>
    %40 = arith.divf %38, %39 : vector<8x32xf32>
    %41 = vector.extract_strided_slice %28 {offsets = [0, 64], sizes = [8, 32], strides = [1, 1]} : vector<8x128xf32> to vector<8x32xf32>
    %42 = vector.extract_strided_slice %28 {offsets = [0, 96], sizes = [8, 32], strides = [1, 1]} : vector<8x128xf32> to vector<8x32xf32>
    %43 = arith.mulf %34, %42 : vector<8x32xf32>
    %44 = arith.addf %41, %43 : vector<8x32xf32>
    %45 = math.tanh %44 : vector<8x32xf32>
    %cst_23 = arith.constant 1.000000e+00 : f32
    %46 = vector.broadcast %cst_23 : f32 to vector<8x32xf32>
    %47 = arith.subf %46, %40 : vector<8x32xf32>
    %48 = arith.mulf %47, %45 : vector<8x32xf32>
    %49 = arith.mulf %40, %13 : vector<8x32xf32>
    %50 = arith.addf %48, %49 : vector<8x32xf32>
    %cst_24 = arith.constant dense<0.000000e+00> : vector<8x64xf32>
    %51 = tpu.matmul %50, %2, %cst_24 {dimension_numbers = #tpu.dot_dimension_numbers<[1], [0], [0], [1], [0, 0, 1, 1], [], []>} : vector<8x32xf32>, vector<32x64xf32>, vector<8x64xf32> -> vector<8x64xf32>
    %52 = arith.index_cast %c0_i32 : i32 to index
    %c0_25 = arith.constant 0 : index
    %c0_26 = arith.constant 0 : index
    %53 = vector.load %arg4[%52, %c0_25, %c0_26] : memref<6x8x64xf32, #tpu.memory_space<vmem>>, vector<1x8x64xf32>
    %54 = vector.shape_cast %53 : vector<1x8x64xf32> to vector<8x64xf32>
    %55 = arith.addf %51, %54 : vector<8x64xf32>
    %cst_27 = arith.constant 0.000000e+00 : f32
    %56 = vector.broadcast %cst_27 : f32 to vector<8x64xf32>
    %57 = arith.maximumf %55, %56 : vector<8x64xf32>
    %cst_28 = arith.constant dense<0.000000e+00> : vector<8x32xf32>
    %58 = tpu.matmul %57, %3, %cst_28 {dimension_numbers = #tpu.dot_dimension_numbers<[1], [0], [0], [1], [0, 0, 1, 1], [], []>} : vector<8x64xf32>, vector<64x32xf32>, vector<8x32xf32> -> vector<8x32xf32>
    %59 = arith.addf %58, %9 : vector<8x32xf32>
    %cst_29 = arith.constant 0.000000e+00 : f32
    %60 = vector.broadcast %cst_29 : f32 to vector<8x32xf32>
    %61 = arith.maximumf %59, %60 : vector<8x32xf32>
    %62 = math.absf %59 : vector<8x32xf32>
    %cst_30 = arith.constant 0.000000e+00 : f32
    %63 = vector.broadcast %cst_30 : f32 to vector<8x32xf32>
    %64 = arith.subf %63, %62 : vector<8x32xf32>
    %65 = math.exp %64 : vector<8x32xf32>
    %66 = math.log1p %65 : vector<8x32xf32>
    %67 = arith.addf %61, %66 : vector<8x32xf32>
    %cst_31 = arith.constant 1.000000e-01 : f32
    %68 = vector.broadcast %cst_31 : f32 to vector<8x32xf32>
    %69 = arith.addf %67, %68 : vector<8x32xf32>
    %70 = arith.select %12, %69, %59 : vector<8x32xi1>, vector<8x32xf32>
    %71 = vector.extract_strided_slice %70 {offsets = [0, 0], sizes = [8, 16], strides = [1, 1]} : vector<8x32xf32> to vector<8x16xf32>
    %72 = vector.extract_strided_slice %70 {offsets = [0, 16], sizes = [8, 16], strides = [1, 1]} : vector<8x32xf32> to vector<8x16xf32>
    %73 = arith.index_cast %c0_i32 : i32 to index
    %c0_32 = arith.constant 0 : index
    %c0_33 = arith.constant 0 : index
    %74 = vector.load %arg5[%73, %c0_32, %c0_33] : memref<6x8x16xf32, #tpu.memory_space<vmem>>, vector<1x8x16xf32>
    %75 = vector.shape_cast %74 : vector<1x8x16xf32> to vector<8x16xf32>
    %76 = arith.mulf %72, %75 : vector<8x16xf32>
    %77 = arith.addf %71, %76 : vector<8x16xf32>
    %78 = arith.index_cast %c0_i32 : i32 to index
    %c0_34 = arith.constant 0 : index
    %c0_35 = arith.constant 0 : index
    %79 = vector.load %arg12[%78, %c0_34, %c0_35] : memref<6x8x80xf32, #tpu.memory_space<vmem>>, vector<1x8x32xf32>
    %80 = vector.shape_cast %79 : vector<1x8x32xf32> to vector<8x32xf32>
    %81 = vector.shape_cast %50 : vector<8x32xf32> to vector<1x8x32xf32>
    tpu.vector_store %arg12[%78, %c0_34, %c0_35], %81 {strides = array<i32>} : memref<6x8x80xf32, #tpu.memory_space<vmem>>, vector<1x8x32xf32>,
    %82 = arith.index_cast %c0_i32 : i32 to index
    %c0_36 = arith.constant 0 : index
    %c32 = arith.constant 32 : index
    %83 = vector.load %arg12[%82, %c0_36, %c32] : memref<6x8x80xf32, #tpu.memory_space<vmem>>, vector<1x8x32xf32>
    %84 = vector.shape_cast %83 : vector<1x8x32xf32> to vector<8x32xf32>
    %85 = vector.shape_cast %70 : vector<8x32xf32> to vector<1x8x32xf32>
    tpu.vector_store %arg12[%82, %c0_36, %c32], %85 {strides = array<i32>} : memref<6x8x80xf32, #tpu.memory_space<vmem>>, vector<1x8x32xf32>,
    %86 = arith.index_cast %c0_i32 : i32 to index
    %c0_37 = arith.constant 0 : index
    %c64 = arith.constant 64 : index
    %87 = vector.load %arg12[%86, %c0_37, %c64] : memref<6x8x80xf32, #tpu.memory_space<vmem>>, vector<1x8x16xf32>
    %88 = vector.shape_cast %87 : vector<1x8x16xf32> to vector<8x16xf32>
    %89 = vector.shape_cast %77 : vector<8x16xf32> to vector<1x8x16xf32>
    tpu.vector_store %arg12[%86, %c0_37, %c64], %89 {strides = array<i32>} : memref<6x8x80xf32, #tpu.memory_space<vmem>>, vector<1x8x16xf32>,
    %90 = vector.extract_strided_slice %77 {offsets = [0, 0], sizes = [8, 8], strides = [1, 1]} : vector<8x16xf32> to vector<8x8xf32>
    %c1_i32 = arith.constant 1 : i32
    %91 = arith.index_cast %c1_i32 : i32 to index
    %c0_38 = arith.constant 0 : index
    %c0_39 = arith.constant 0 : index
    %92 = vector.load %arg2[%91, %c0_38, %c0_39] : memref<6x8x8xf32, #tpu.memory_space<vmem>>, vector<1x8x8xf32>
    %93 = vector.shape_cast %92 : vector<1x8x8xf32> to vector<8x8xf32>
    %94 = arith.mulf %90, %93 : vector<8x8xf32>
    %cst_40 = arith.constant dense<0.000000e+00> : vector<8x32xf32>
    %95 = tpu.matmul %94, %0, %cst_40 {dimension_numbers = #tpu.dot_dimension_numbers<[1], [0], [0], [1], [0, 0, 1, 1], [], []>} : vector<8x8xf32>, vector<8x32xf32>, vector<8x32xf32> -> vector<8x32xf32>
    %96 = arith.index_cast %c1_i32 : i32 to index
    %c0_41 = arith.constant 0 : index
    %c0_42 = arith.constant 0 : index
    %97 = vector.load %arg3[%96, %c0_41, %c0_42] : memref<6x8x32xf32, #tpu.memory_space<vmem>>, vector<1x8x32xf32>
    %98 = vector.shape_cast %97 : vector<1x8x32xf32> to vector<8x32xf32>
    %99 = arith.addf %95, %98 : vector<8x32xf32>
    %cst_43 = arith.constant 0.000000e+00 : f32
    %100 = vector.broadcast %cst_43 : f32 to vector<8x32xf32>
    %101 = arith.maximumf %99, %100 : vector<8x32xf32>
    %102 = tpu.concatenate %101, %50 in 1 : vector<8x32xf32>, vector<8x32xf32> -> vector<8x64xf32>
    %cst_44 = arith.constant dense<0.000000e+00> : vector<8x128xf32>
    %103 = tpu.matmul %102, %1, %cst_44 {dimension_numbers = #tpu.dot_dimension_numbers<[1], [0], [0], [1], [0, 0, 1, 1], [], []>} : vector<8x64xf32>, vector<64x128xf32>, vector<8x128xf32> -> vector<8x128xf32>
    %104 = arith.addf %103, %6 : vector<8x128xf32>
    %105 = vector.extract_strided_slice %104 {offsets = [0, 0], sizes = [8, 32], strides = [1, 1]} : vector<8x128xf32> to vector<8x32xf32>
    %106 = arith.negf %105 : vector<8x32xf32>
    %107 = math.exp %106 : vector<8x32xf32>
    %cst_45 = arith.constant 1.000000e+00 : f32
    %108 = vector.broadcast %cst_45 : f32 to vector<8x32xf32>
    %109 = arith.addf %108, %107 : vector<8x32xf32>
    %110 = arith.divf %108, %109 : vector<8x32xf32>
    %111 = vector.extract_strided_slice %104 {offsets = [0, 32], sizes = [8, 32], strides = [1, 1]} : vector<8x128xf32> to vector<8x32xf32>
    %112 = arith.negf %111 : vector<8x32xf32>
    %113 = math.exp %112 : vector<8x32xf32>
    %cst_46 = arith.constant 1.000000e+00 : f32
    %114 = vector.broadcast %cst_46 : f32 to vector<8x32xf32>
    %115 = arith.addf %114, %113 : vector<8x32xf32>
    %116 = arith.divf %114, %115 : vector<8x32xf32>
    %117 = vector.extract_strided_slice %104 {offsets = [0, 64], sizes = [8, 32], strides = [1, 1]} : vector<8x128xf32> to vector<8x32xf32>
    %118 = vector.extract_strided_slice %104 {offsets = [0, 96], sizes = [8, 32], strides = [1, 1]} : vector<8x128xf32> to vector<8x32xf32>
    %119 = arith.mulf %110, %118 : vector<8x32xf32>
    %120 = arith.addf %117, %119 : vector<8x32xf32>
    %121 = math.tanh %120 : vector<8x32xf32>
    %cst_47 = arith.constant 1.000000e+00 : f32
    %122 = vector.broadcast %cst_47 : f32 to vector<8x32xf32>
    %123 = arith.subf %122, %116 : vector<8x32xf32>
    %124 = arith.mulf %123, %121 : vector<8x32xf32>
    %125 = arith.mulf %116, %50 : vector<8x32xf32>
    %126 = arith.addf %124, %125 : vector<8x32xf32>
    %cst_48 = arith.constant dense<0.000000e+00> : vector<8x64xf32>
    %127 = tpu.matmul %126, %2, %cst_48 {dimension_numbers = #tpu.dot_dimension_numbers<[1], [0], [0], [1], [0, 0, 1, 1], [], []>} : vector<8x32xf32>, vector<32x64xf32>, vector<8x64xf32> -> vector<8x64xf32>
    %128 = arith.index_cast %c1_i32 : i32 to index
    %c0_49 = arith.constant 0 : index
    %c0_50 = arith.constant 0 : index
    %129 = vector.load %arg4[%128, %c0_49, %c0_50] : memref<6x8x64xf32, #tpu.memory_space<vmem>>, vector<1x8x64xf32>
    %130 = vector.shape_cast %129 : vector<1x8x64xf32> to vector<8x64xf32>
    %131 = arith.addf %127, %130 : vector<8x64xf32>
    %cst_51 = arith.constant 0.000000e+00 : f32
    %132 = vector.broadcast %cst_51 : f32 to vector<8x64xf32>
    %133 = arith.maximumf %131, %132 : vector<8x64xf32>
    %cst_52 = arith.constant dense<0.000000e+00> : vector<8x32xf32>
    %134 = tpu.matmul %133, %3, %cst_52 {dimension_numbers = #tpu.dot_dimension_numbers<[1], [0], [0], [1], [0, 0, 1, 1], [], []>} : vector<8x64xf32>, vector<64x32xf32>, vector<8x32xf32> -> vector<8x32xf32>
    %135 = arith.addf %134, %9 : vector<8x32xf32>
    %cst_53 = arith.constant 0.000000e+00 : f32
    %136 = vector.broadcast %cst_53 : f32 to vector<8x32xf32>
    %137 = arith.maximumf %135, %136 : vector<8x32xf32>
    %138 = math.absf %135 : vector<8x32xf32>
    %cst_54 = arith.constant 0.000000e+00 : f32
    %139 = vector.broadcast %cst_54 : f32 to vector<8x32xf32>
    %140 = arith.subf %139, %138 : vector<8x32xf32>
    %141 = math.exp %140 : vector<8x32xf32>
    %142 = math.log1p %141 : vector<8x32xf32>
    %143 = arith.addf %137, %142 : vector<8x32xf32>
    %cst_55 = arith.constant 1.000000e-01 : f32
    %144 = vector.broadcast %cst_55 : f32 to vector<8x32xf32>
    %145 = arith.addf %143, %144 : vector<8x32xf32>
    %146 = arith.select %12, %145, %135 : vector<8x32xi1>, vector<8x32xf32>
    %147 = vector.extract_strided_slice %146 {offsets = [0, 0], sizes = [8, 16], strides = [1, 1]} : vector<8x32xf32> to vector<8x16xf32>
    %148 = vector.extract_strided_slice %146 {offsets = [0, 16], sizes = [8, 16], strides = [1, 1]} : vector<8x32xf32> to vector<8x16xf32>
    %149 = arith.index_cast %c1_i32 : i32 to index
    %c0_56 = arith.constant 0 : index
    %c0_57 = arith.constant 0 : index
    %150 = vector.load %arg5[%149, %c0_56, %c0_57] : memref<6x8x16xf32, #tpu.memory_space<vmem>>, vector<1x8x16xf32>
    %151 = vector.shape_cast %150 : vector<1x8x16xf32> to vector<8x16xf32>
    %152 = arith.mulf %148, %151 : vector<8x16xf32>
    %153 = arith.addf %147, %152 : vector<8x16xf32>
    %154 = arith.index_cast %c1_i32 : i32 to index
    %c0_58 = arith.constant 0 : index
    %c0_59 = arith.constant 0 : index
    %155 = vector.load %arg12[%154, %c0_58, %c0_59] : memref<6x8x80xf32, #tpu.memory_space<vmem>>, vector<1x8x32xf32>
    %156 = vector.shape_cast %155 : vector<1x8x32xf32> to vector<8x32xf32>
    %157 = vector.shape_cast %126 : vector<8x32xf32> to vector<1x8x32xf32>
    tpu.vector_store %arg12[%154, %c0_58, %c0_59], %157 {strides = array<i32>} : memref<6x8x80xf32, #tpu.memory_space<vmem>>, vector<1x8x32xf32>,
    %158 = arith.index_cast %c1_i32 : i32 to index
    %c0_60 = arith.constant 0 : index
    %c32_61 = arith.constant 32 : index
    %159 = vector.load %arg12[%158, %c0_60, %c32_61] : memref<6x8x80xf32, #tpu.memory_space<vmem>>, vector<1x8x32xf32>
    %160 = vector.shape_cast %159 : vector<1x8x32xf32> to vector<8x32xf32>
    %161 = vector.shape_cast %146 : vector<8x32xf32> to vector<1x8x32xf32>
    tpu.vector_store %arg12[%158, %c0_60, %c32_61], %161 {strides = array<i32>} : memref<6x8x80xf32, #tpu.memory_space<vmem>>, vector<1x8x32xf32>,
    %162 = arith.index_cast %c1_i32 : i32 to index
    %c0_62 = arith.constant 0 : index
    %c64_63 = arith.constant 64 : index
    %163 = vector.load %arg12[%162, %c0_62, %c64_63] : memref<6x8x80xf32, #tpu.memory_space<vmem>>, vector<1x8x16xf32>
    %164 = vector.shape_cast %163 : vector<1x8x16xf32> to vector<8x16xf32>
    %165 = vector.shape_cast %153 : vector<8x16xf32> to vector<1x8x16xf32>
    tpu.vector_store %arg12[%162, %c0_62, %c64_63], %165 {strides = array<i32>} : memref<6x8x80xf32, #tpu.memory_space<vmem>>, vector<1x8x16xf32>,
    %166 = vector.extract_strided_slice %153 {offsets = [0, 0], sizes = [8, 8], strides = [1, 1]} : vector<8x16xf32> to vector<8x8xf32>
    %c2_i32 = arith.constant 2 : i32
    %167 = arith.index_cast %c2_i32 : i32 to index
    %c0_64 = arith.constant 0 : index
    %c0_65 = arith.constant 0 : index
    %168 = vector.load %arg2[%167, %c0_64, %c0_65] : memref<6x8x8xf32, #tpu.memory_space<vmem>>, vector<1x8x8xf32>
    %169 = vector.shape_cast %168 : vector<1x8x8xf32> to vector<8x8xf32>
    %170 = arith.mulf %166, %169 : vector<8x8xf32>
    %cst_66 = arith.constant dense<0.000000e+00> : vector<8x32xf32>
    %171 = tpu.matmul %170, %0, %cst_66 {dimension_numbers = #tpu.dot_dimension_numbers<[1], [0], [0], [1], [0, 0, 1, 1], [], []>} : vector<8x8xf32>, vector<8x32xf32>, vector<8x32xf32> -> vector<8x32xf32>
    %172 = arith.index_cast %c2_i32 : i32 to index
    %c0_67 = arith.constant 0 : index
    %c0_68 = arith.constant 0 : index
    %173 = vector.load %arg3[%172, %c0_67, %c0_68] : memref<6x8x32xf32, #tpu.memory_space<vmem>>, vector<1x8x32xf32>
    %174 = vector.shape_cast %173 : vector<1x8x32xf32> to vector<8x32xf32>
    %175 = arith.addf %171, %174 : vector<8x32xf32>
    %cst_69 = arith.constant 0.000000e+00 : f32
    %176 = vector.broadcast %cst_69 : f32 to vector<8x32xf32>
    %177 = arith.maximumf %175, %176 : vector<8x32xf32>
    %178 = tpu.concatenate %177, %126 in 1 : vector<8x32xf32>, vector<8x32xf32> -> vector<8x64xf32>
    %cst_70 = arith.constant dense<0.000000e+00> : vector<8x128xf32>
    %179 = tpu.matmul %178, %1, %cst_70 {dimension_numbers = #tpu.dot_dimension_numbers<[1], [0], [0], [1], [0, 0, 1, 1], [], []>} : vector<8x64xf32>, vector<64x128xf32>, vector<8x128xf32> -> vector<8x128xf32>
    %180 = arith.addf %179, %6 : vector<8x128xf32>
    %181 = vector.extract_strided_slice %180 {offsets = [0, 0], sizes = [8, 32], strides = [1, 1]} : vector<8x128xf32> to vector<8x32xf32>
    %182 = arith.negf %181 : vector<8x32xf32>
    %183 = math.exp %182 : vector<8x32xf32>
    %cst_71 = arith.constant 1.000000e+00 : f32
    %184 = vector.broadcast %cst_71 : f32 to vector<8x32xf32>
    %185 = arith.addf %184, %183 : vector<8x32xf32>
    %186 = arith.divf %184, %185 : vector<8x32xf32>
    %187 = vector.extract_strided_slice %180 {offsets = [0, 32], sizes = [8, 32], strides = [1, 1]} : vector<8x128xf32> to vector<8x32xf32>
    %188 = arith.negf %187 : vector<8x32xf32>
    %189 = math.exp %188 : vector<8x32xf32>
    %cst_72 = arith.constant 1.000000e+00 : f32
    %190 = vector.broadcast %cst_72 : f32 to vector<8x32xf32>
    %191 = arith.addf %190, %189 : vector<8x32xf32>
    %192 = arith.divf %190, %191 : vector<8x32xf32>
    %193 = vector.extract_strided_slice %180 {offsets = [0, 64], sizes = [8, 32], strides = [1, 1]} : vector<8x128xf32> to vector<8x32xf32>
    %194 = vector.extract_strided_slice %180 {offsets = [0, 96], sizes = [8, 32], strides = [1, 1]} : vector<8x128xf32> to vector<8x32xf32>
    %195 = arith.mulf %186, %194 : vector<8x32xf32>
    %196 = arith.addf %193, %195 : vector<8x32xf32>
    %197 = math.tanh %196 : vector<8x32xf32>
    %cst_73 = arith.constant 1.000000e+00 : f32
    %198 = vector.broadcast %cst_73 : f32 to vector<8x32xf32>
    %199 = arith.subf %198, %192 : vector<8x32xf32>
    %200 = arith.mulf %199, %197 : vector<8x32xf32>
    %201 = arith.mulf %192, %126 : vector<8x32xf32>
    %202 = arith.addf %200, %201 : vector<8x32xf32>
    %cst_74 = arith.constant dense<0.000000e+00> : vector<8x64xf32>
    %203 = tpu.matmul %202, %2, %cst_74 {dimension_numbers = #tpu.dot_dimension_numbers<[1], [0], [0], [1], [0, 0, 1, 1], [], []>} : vector<8x32xf32>, vector<32x64xf32>, vector<8x64xf32> -> vector<8x64xf32>
    %204 = arith.index_cast %c2_i32 : i32 to index
    %c0_75 = arith.constant 0 : index
    %c0_76 = arith.constant 0 : index
    %205 = vector.load %arg4[%204, %c0_75, %c0_76] : memref<6x8x64xf32, #tpu.memory_space<vmem>>, vector<1x8x64xf32>
    %206 = vector.shape_cast %205 : vector<1x8x64xf32> to vector<8x64xf32>
    %207 = arith.addf %203, %206 : vector<8x64xf32>
    %cst_77 = arith.constant 0.000000e+00 : f32
    %208 = vector.broadcast %cst_77 : f32 to vector<8x64xf32>
    %209 = arith.maximumf %207, %208 : vector<8x64xf32>
    %cst_78 = arith.constant dense<0.000000e+00> : vector<8x32xf32>
    %210 = tpu.matmul %209, %3, %cst_78 {dimension_numbers = #tpu.dot_dimension_numbers<[1], [0], [0], [1], [0, 0, 1, 1], [], []>} : vector<8x64xf32>, vector<64x32xf32>, vector<8x32xf32> -> vector<8x32xf32>
    %211 = arith.addf %210, %9 : vector<8x32xf32>
    %cst_79 = arith.constant 0.000000e+00 : f32
    %212 = vector.broadcast %cst_79 : f32 to vector<8x32xf32>
    %213 = arith.maximumf %211, %212 : vector<8x32xf32>
    %214 = math.absf %211 : vector<8x32xf32>
    %cst_80 = arith.constant 0.000000e+00 : f32
    %215 = vector.broadcast %cst_80 : f32 to vector<8x32xf32>
    %216 = arith.subf %215, %214 : vector<8x32xf32>
    %217 = math.exp %216 : vector<8x32xf32>
    %218 = math.log1p %217 : vector<8x32xf32>
    %219 = arith.addf %213, %218 : vector<8x32xf32>
    %cst_81 = arith.constant 1.000000e-01 : f32
    %220 = vector.broadcast %cst_81 : f32 to vector<8x32xf32>
    %221 = arith.addf %219, %220 : vector<8x32xf32>
    %222 = arith.select %12, %221, %211 : vector<8x32xi1>, vector<8x32xf32>
    %223 = vector.extract_strided_slice %222 {offsets = [0, 0], sizes = [8, 16], strides = [1, 1]} : vector<8x32xf32> to vector<8x16xf32>
    %224 = vector.extract_strided_slice %222 {offsets = [0, 16], sizes = [8, 16], strides = [1, 1]} : vector<8x32xf32> to vector<8x16xf32>
    %225 = arith.index_cast %c2_i32 : i32 to index
    %c0_82 = arith.constant 0 : index
    %c0_83 = arith.constant 0 : index
    %226 = vector.load %arg5[%225, %c0_82, %c0_83] : memref<6x8x16xf32, #tpu.memory_space<vmem>>, vector<1x8x16xf32>
    %227 = vector.shape_cast %226 : vector<1x8x16xf32> to vector<8x16xf32>
    %228 = arith.mulf %224, %227 : vector<8x16xf32>
    %229 = arith.addf %223, %228 : vector<8x16xf32>
    %230 = arith.index_cast %c2_i32 : i32 to index
    %c0_84 = arith.constant 0 : index
    %c0_85 = arith.constant 0 : index
    %231 = vector.load %arg12[%230, %c0_84, %c0_85] : memref<6x8x80xf32, #tpu.memory_space<vmem>>, vector<1x8x32xf32>
    %232 = vector.shape_cast %231 : vector<1x8x32xf32> to vector<8x32xf32>
    %233 = vector.shape_cast %202 : vector<8x32xf32> to vector<1x8x32xf32>
    tpu.vector_store %arg12[%230, %c0_84, %c0_85], %233 {strides = array<i32>} : memref<6x8x80xf32, #tpu.memory_space<vmem>>, vector<1x8x32xf32>,
    %234 = arith.index_cast %c2_i32 : i32 to index
    %c0_86 = arith.constant 0 : index
    %c32_87 = arith.constant 32 : index
    %235 = vector.load %arg12[%234, %c0_86, %c32_87] : memref<6x8x80xf32, #tpu.memory_space<vmem>>, vector<1x8x32xf32>
    %236 = vector.shape_cast %235 : vector<1x8x32xf32> to vector<8x32xf32>
    %237 = vector.shape_cast %222 : vector<8x32xf32> to vector<1x8x32xf32>
    tpu.vector_store %arg12[%234, %c0_86, %c32_87], %237 {strides = array<i32>} : memref<6x8x80xf32, #tpu.memory_space<vmem>>, vector<1x8x32xf32>,
    %238 = arith.index_cast %c2_i32 : i32 to index
    %c0_88 = arith.constant 0 : index
    %c64_89 = arith.constant 64 : index
    %239 = vector.load %arg12[%238, %c0_88, %c64_89] : memref<6x8x80xf32, #tpu.memory_space<vmem>>, vector<1x8x16xf32>
    %240 = vector.shape_cast %239 : vector<1x8x16xf32> to vector<8x16xf32>
    %241 = vector.shape_cast %229 : vector<8x16xf32> to vector<1x8x16xf32>
    tpu.vector_store %arg12[%238, %c0_88, %c64_89], %241 {strides = array<i32>} : memref<6x8x80xf32, #tpu.memory_space<vmem>>, vector<1x8x16xf32>,
    %242 = vector.extract_strided_slice %229 {offsets = [0, 0], sizes = [8, 8], strides = [1, 1]} : vector<8x16xf32> to vector<8x8xf32>
    %c3_i32 = arith.constant 3 : i32
    %243 = arith.index_cast %c3_i32 : i32 to index
    %c0_90 = arith.constant 0 : index
    %c0_91 = arith.constant 0 : index
    %244 = vector.load %arg2[%243, %c0_90, %c0_91] : memref<6x8x8xf32, #tpu.memory_space<vmem>>, vector<1x8x8xf32>
    %245 = vector.shape_cast %244 : vector<1x8x8xf32> to vector<8x8xf32>
    %246 = arith.mulf %242, %245 : vector<8x8xf32>
    %cst_92 = arith.constant dense<0.000000e+00> : vector<8x32xf32>
    %247 = tpu.matmul %246, %0, %cst_92 {dimension_numbers = #tpu.dot_dimension_numbers<[1], [0], [0], [1], [0, 0, 1, 1], [], []>} : vector<8x8xf32>, vector<8x32xf32>, vector<8x32xf32> -> vector<8x32xf32>
    %248 = arith.index_cast %c3_i32 : i32 to index
    %c0_93 = arith.constant 0 : index
    %c0_94 = arith.constant 0 : index
    %249 = vector.load %arg3[%248, %c0_93, %c0_94] : memref<6x8x32xf32, #tpu.memory_space<vmem>>, vector<1x8x32xf32>
    %250 = vector.shape_cast %249 : vector<1x8x32xf32> to vector<8x32xf32>
    %251 = arith.addf %247, %250 : vector<8x32xf32>
    %cst_95 = arith.constant 0.000000e+00 : f32
    %252 = vector.broadcast %cst_95 : f32 to vector<8x32xf32>
    %253 = arith.maximumf %251, %252 : vector<8x32xf32>
    %254 = tpu.concatenate %253, %202 in 1 : vector<8x32xf32>, vector<8x32xf32> -> vector<8x64xf32>
    %cst_96 = arith.constant dense<0.000000e+00> : vector<8x128xf32>
    %255 = tpu.matmul %254, %1, %cst_96 {dimension_numbers = #tpu.dot_dimension_numbers<[1], [0], [0], [1], [0, 0, 1, 1], [], []>} : vector<8x64xf32>, vector<64x128xf32>, vector<8x128xf32> -> vector<8x128xf32>
    %256 = arith.addf %255, %6 : vector<8x128xf32>
    %257 = vector.extract_strided_slice %256 {offsets = [0, 0], sizes = [8, 32], strides = [1, 1]} : vector<8x128xf32> to vector<8x32xf32>
    %258 = arith.negf %257 : vector<8x32xf32>
    %259 = math.exp %258 : vector<8x32xf32>
    %cst_97 = arith.constant 1.000000e+00 : f32
    %260 = vector.broadcast %cst_97 : f32 to vector<8x32xf32>
    %261 = arith.addf %260, %259 : vector<8x32xf32>
    %262 = arith.divf %260, %261 : vector<8x32xf32>
    %263 = vector.extract_strided_slice %256 {offsets = [0, 32], sizes = [8, 32], strides = [1, 1]} : vector<8x128xf32> to vector<8x32xf32>
    %264 = arith.negf %263 : vector<8x32xf32>
    %265 = math.exp %264 : vector<8x32xf32>
    %cst_98 = arith.constant 1.000000e+00 : f32
    %266 = vector.broadcast %cst_98 : f32 to vector<8x32xf32>
    %267 = arith.addf %266, %265 : vector<8x32xf32>
    %268 = arith.divf %266, %267 : vector<8x32xf32>
    %269 = vector.extract_strided_slice %256 {offsets = [0, 64], sizes = [8, 32], strides = [1, 1]} : vector<8x128xf32> to vector<8x32xf32>
    %270 = vector.extract_strided_slice %256 {offsets = [0, 96], sizes = [8, 32], strides = [1, 1]} : vector<8x128xf32> to vector<8x32xf32>
    %271 = arith.mulf %262, %270 : vector<8x32xf32>
    %272 = arith.addf %269, %271 : vector<8x32xf32>
    %273 = math.tanh %272 : vector<8x32xf32>
    %cst_99 = arith.constant 1.000000e+00 : f32
    %274 = vector.broadcast %cst_99 : f32 to vector<8x32xf32>
    %275 = arith.subf %274, %268 : vector<8x32xf32>
    %276 = arith.mulf %275, %273 : vector<8x32xf32>
    %277 = arith.mulf %268, %202 : vector<8x32xf32>
    %278 = arith.addf %276, %277 : vector<8x32xf32>
    %cst_100 = arith.constant dense<0.000000e+00> : vector<8x64xf32>
    %279 = tpu.matmul %278, %2, %cst_100 {dimension_numbers = #tpu.dot_dimension_numbers<[1], [0], [0], [1], [0, 0, 1, 1], [], []>} : vector<8x32xf32>, vector<32x64xf32>, vector<8x64xf32> -> vector<8x64xf32>
    %280 = arith.index_cast %c3_i32 : i32 to index
    %c0_101 = arith.constant 0 : index
    %c0_102 = arith.constant 0 : index
    %281 = vector.load %arg4[%280, %c0_101, %c0_102] : memref<6x8x64xf32, #tpu.memory_space<vmem>>, vector<1x8x64xf32>
    %282 = vector.shape_cast %281 : vector<1x8x64xf32> to vector<8x64xf32>
    %283 = arith.addf %279, %282 : vector<8x64xf32>
    %cst_103 = arith.constant 0.000000e+00 : f32
    %284 = vector.broadcast %cst_103 : f32 to vector<8x64xf32>
    %285 = arith.maximumf %283, %284 : vector<8x64xf32>
    %cst_104 = arith.constant dense<0.000000e+00> : vector<8x32xf32>
    %286 = tpu.matmul %285, %3, %cst_104 {dimension_numbers = #tpu.dot_dimension_numbers<[1], [0], [0], [1], [0, 0, 1, 1], [], []>} : vector<8x64xf32>, vector<64x32xf32>, vector<8x32xf32> -> vector<8x32xf32>
    %287 = arith.addf %286, %9 : vector<8x32xf32>
    %cst_105 = arith.constant 0.000000e+00 : f32
    %288 = vector.broadcast %cst_105 : f32 to vector<8x32xf32>
    %289 = arith.maximumf %287, %288 : vector<8x32xf32>
    %290 = math.absf %287 : vector<8x32xf32>
    %cst_106 = arith.constant 0.000000e+00 : f32
    %291 = vector.broadcast %cst_106 : f32 to vector<8x32xf32>
    %292 = arith.subf %291, %290 : vector<8x32xf32>
    %293 = math.exp %292 : vector<8x32xf32>
    %294 = math.log1p %293 : vector<8x32xf32>
    %295 = arith.addf %289, %294 : vector<8x32xf32>
    %cst_107 = arith.constant 1.000000e-01 : f32
    %296 = vector.broadcast %cst_107 : f32 to vector<8x32xf32>
    %297 = arith.addf %295, %296 : vector<8x32xf32>
    %298 = arith.select %12, %297, %287 : vector<8x32xi1>, vector<8x32xf32>
    %299 = vector.extract_strided_slice %298 {offsets = [0, 0], sizes = [8, 16], strides = [1, 1]} : vector<8x32xf32> to vector<8x16xf32>
    %300 = vector.extract_strided_slice %298 {offsets = [0, 16], sizes = [8, 16], strides = [1, 1]} : vector<8x32xf32> to vector<8x16xf32>
    %301 = arith.index_cast %c3_i32 : i32 to index
    %c0_108 = arith.constant 0 : index
    %c0_109 = arith.constant 0 : index
    %302 = vector.load %arg5[%301, %c0_108, %c0_109] : memref<6x8x16xf32, #tpu.memory_space<vmem>>, vector<1x8x16xf32>
    %303 = vector.shape_cast %302 : vector<1x8x16xf32> to vector<8x16xf32>
    %304 = arith.mulf %300, %303 : vector<8x16xf32>
    %305 = arith.addf %299, %304 : vector<8x16xf32>
    %306 = arith.index_cast %c3_i32 : i32 to index
    %c0_110 = arith.constant 0 : index
    %c0_111 = arith.constant 0 : index
    %307 = vector.load %arg12[%306, %c0_110, %c0_111] : memref<6x8x80xf32, #tpu.memory_space<vmem>>, vector<1x8x32xf32>
    %308 = vector.shape_cast %307 : vector<1x8x32xf32> to vector<8x32xf32>
    %309 = vector.shape_cast %278 : vector<8x32xf32> to vector<1x8x32xf32>
    tpu.vector_store %arg12[%306, %c0_110, %c0_111], %309 {strides = array<i32>} : memref<6x8x80xf32, #tpu.memory_space<vmem>>, vector<1x8x32xf32>,
    %310 = arith.index_cast %c3_i32 : i32 to index
    %c0_112 = arith.constant 0 : index
    %c32_113 = arith.constant 32 : index
    %311 = vector.load %arg12[%310, %c0_112, %c32_113] : memref<6x8x80xf32, #tpu.memory_space<vmem>>, vector<1x8x32xf32>
    %312 = vector.shape_cast %311 : vector<1x8x32xf32> to vector<8x32xf32>
    %313 = vector.shape_cast %298 : vector<8x32xf32> to vector<1x8x32xf32>
    tpu.vector_store %arg12[%310, %c0_112, %c32_113], %313 {strides = array<i32>} : memref<6x8x80xf32, #tpu.memory_space<vmem>>, vector<1x8x32xf32>,
    %314 = arith.index_cast %c3_i32 : i32 to index
    %c0_114 = arith.constant 0 : index
    %c64_115 = arith.constant 64 : index
    %315 = vector.load %arg12[%314, %c0_114, %c64_115] : memref<6x8x80xf32, #tpu.memory_space<vmem>>, vector<1x8x16xf32>
    %316 = vector.shape_cast %315 : vector<1x8x16xf32> to vector<8x16xf32>
    %317 = vector.shape_cast %305 : vector<8x16xf32> to vector<1x8x16xf32>
    tpu.vector_store %arg12[%314, %c0_114, %c64_115], %317 {strides = array<i32>} : memref<6x8x80xf32, #tpu.memory_space<vmem>>, vector<1x8x16xf32>,
    %318 = vector.extract_strided_slice %305 {offsets = [0, 0], sizes = [8, 8], strides = [1, 1]} : vector<8x16xf32> to vector<8x8xf32>
    %c4_i32 = arith.constant 4 : i32
    %319 = arith.index_cast %c4_i32 : i32 to index
    %c0_116 = arith.constant 0 : index
    %c0_117 = arith.constant 0 : index
    %320 = vector.load %arg2[%319, %c0_116, %c0_117] : memref<6x8x8xf32, #tpu.memory_space<vmem>>, vector<1x8x8xf32>
    %321 = vector.shape_cast %320 : vector<1x8x8xf32> to vector<8x8xf32>
    %322 = arith.mulf %318, %321 : vector<8x8xf32>
    %cst_118 = arith.constant dense<0.000000e+00> : vector<8x32xf32>
    %323 = tpu.matmul %322, %0, %cst_118 {dimension_numbers = #tpu.dot_dimension_numbers<[1], [0], [0], [1], [0, 0, 1, 1], [], []>} : vector<8x8xf32>, vector<8x32xf32>, vector<8x32xf32> -> vector<8x32xf32>
    %324 = arith.index_cast %c4_i32 : i32 to index
    %c0_119 = arith.constant 0 : index
    %c0_120 = arith.constant 0 : index
    %325 = vector.load %arg3[%324, %c0_119, %c0_120] : memref<6x8x32xf32, #tpu.memory_space<vmem>>, vector<1x8x32xf32>
    %326 = vector.shape_cast %325 : vector<1x8x32xf32> to vector<8x32xf32>
    %327 = arith.addf %323, %326 : vector<8x32xf32>
    %cst_121 = arith.constant 0.000000e+00 : f32
    %328 = vector.broadcast %cst_121 : f32 to vector<8x32xf32>
    %329 = arith.maximumf %327, %328 : vector<8x32xf32>
    %330 = tpu.concatenate %329, %278 in 1 : vector<8x32xf32>, vector<8x32xf32> -> vector<8x64xf32>
    %cst_122 = arith.constant dense<0.000000e+00> : vector<8x128xf32>
    %331 = tpu.matmul %330, %1, %cst_122 {dimension_numbers = #tpu.dot_dimension_numbers<[1], [0], [0], [1], [0, 0, 1, 1], [], []>} : vector<8x64xf32>, vector<64x128xf32>, vector<8x128xf32> -> vector<8x128xf32>
    %332 = arith.addf %331, %6 : vector<8x128xf32>
    %333 = vector.extract_strided_slice %332 {offsets = [0, 0], sizes = [8, 32], strides = [1, 1]} : vector<8x128xf32> to vector<8x32xf32>
    %334 = arith.negf %333 : vector<8x32xf32>
    %335 = math.exp %334 : vector<8x32xf32>
    %cst_123 = arith.constant 1.000000e+00 : f32
    %336 = vector.broadcast %cst_123 : f32 to vector<8x32xf32>
    %337 = arith.addf %336, %335 : vector<8x32xf32>
    %338 = arith.divf %336, %337 : vector<8x32xf32>
    %339 = vector.extract_strided_slice %332 {offsets = [0, 32], sizes = [8, 32], strides = [1, 1]} : vector<8x128xf32> to vector<8x32xf32>
    %340 = arith.negf %339 : vector<8x32xf32>
    %341 = math.exp %340 : vector<8x32xf32>
    %cst_124 = arith.constant 1.000000e+00 : f32
    %342 = vector.broadcast %cst_124 : f32 to vector<8x32xf32>
    %343 = arith.addf %342, %341 : vector<8x32xf32>
    %344 = arith.divf %342, %343 : vector<8x32xf32>
    %345 = vector.extract_strided_slice %332 {offsets = [0, 64], sizes = [8, 32], strides = [1, 1]} : vector<8x128xf32> to vector<8x32xf32>
    %346 = vector.extract_strided_slice %332 {offsets = [0, 96], sizes = [8, 32], strides = [1, 1]} : vector<8x128xf32> to vector<8x32xf32>
    %347 = arith.mulf %338, %346 : vector<8x32xf32>
    %348 = arith.addf %345, %347 : vector<8x32xf32>
    %349 = math.tanh %348 : vector<8x32xf32>
    %cst_125 = arith.constant 1.000000e+00 : f32
    %350 = vector.broadcast %cst_125 : f32 to vector<8x32xf32>
    %351 = arith.subf %350, %344 : vector<8x32xf32>
    %352 = arith.mulf %351, %349 : vector<8x32xf32>
    %353 = arith.mulf %344, %278 : vector<8x32xf32>
    %354 = arith.addf %352, %353 : vector<8x32xf32>
    %cst_126 = arith.constant dense<0.000000e+00> : vector<8x64xf32>
    %355 = tpu.matmul %354, %2, %cst_126 {dimension_numbers = #tpu.dot_dimension_numbers<[1], [0], [0], [1], [0, 0, 1, 1], [], []>} : vector<8x32xf32>, vector<32x64xf32>, vector<8x64xf32> -> vector<8x64xf32>
    %356 = arith.index_cast %c4_i32 : i32 to index
    %c0_127 = arith.constant 0 : index
    %c0_128 = arith.constant 0 : index
    %357 = vector.load %arg4[%356, %c0_127, %c0_128] : memref<6x8x64xf32, #tpu.memory_space<vmem>>, vector<1x8x64xf32>
    %358 = vector.shape_cast %357 : vector<1x8x64xf32> to vector<8x64xf32>
    %359 = arith.addf %355, %358 : vector<8x64xf32>
    %cst_129 = arith.constant 0.000000e+00 : f32
    %360 = vector.broadcast %cst_129 : f32 to vector<8x64xf32>
    %361 = arith.maximumf %359, %360 : vector<8x64xf32>
    %cst_130 = arith.constant dense<0.000000e+00> : vector<8x32xf32>
    %362 = tpu.matmul %361, %3, %cst_130 {dimension_numbers = #tpu.dot_dimension_numbers<[1], [0], [0], [1], [0, 0, 1, 1], [], []>} : vector<8x64xf32>, vector<64x32xf32>, vector<8x32xf32> -> vector<8x32xf32>
    %363 = arith.addf %362, %9 : vector<8x32xf32>
    %cst_131 = arith.constant 0.000000e+00 : f32
    %364 = vector.broadcast %cst_131 : f32 to vector<8x32xf32>
    %365 = arith.maximumf %363, %364 : vector<8x32xf32>
    %366 = math.absf %363 : vector<8x32xf32>
    %cst_132 = arith.constant 0.000000e+00 : f32
    %367 = vector.broadcast %cst_132 : f32 to vector<8x32xf32>
    %368 = arith.subf %367, %366 : vector<8x32xf32>
    %369 = math.exp %368 : vector<8x32xf32>
    %370 = math.log1p %369 : vector<8x32xf32>
    %371 = arith.addf %365, %370 : vector<8x32xf32>
    %cst_133 = arith.constant 1.000000e-01 : f32
    %372 = vector.broadcast %cst_133 : f32 to vector<8x32xf32>
    %373 = arith.addf %371, %372 : vector<8x32xf32>
    %374 = arith.select %12, %373, %363 : vector<8x32xi1>, vector<8x32xf32>
    %375 = vector.extract_strided_slice %374 {offsets = [0, 0], sizes = [8, 16], strides = [1, 1]} : vector<8x32xf32> to vector<8x16xf32>
    %376 = vector.extract_strided_slice %374 {offsets = [0, 16], sizes = [8, 16], strides = [1, 1]} : vector<8x32xf32> to vector<8x16xf32>
    %377 = arith.index_cast %c4_i32 : i32 to index
    %c0_134 = arith.constant 0 : index
    %c0_135 = arith.constant 0 : index
    %378 = vector.load %arg5[%377, %c0_134, %c0_135] : memref<6x8x16xf32, #tpu.memory_space<vmem>>, vector<1x8x16xf32>
    %379 = vector.shape_cast %378 : vector<1x8x16xf32> to vector<8x16xf32>
    %380 = arith.mulf %376, %379 : vector<8x16xf32>
    %381 = arith.addf %375, %380 : vector<8x16xf32>
    %382 = arith.index_cast %c4_i32 : i32 to index
    %c0_136 = arith.constant 0 : index
    %c0_137 = arith.constant 0 : index
    %383 = vector.load %arg12[%382, %c0_136, %c0_137] : memref<6x8x80xf32, #tpu.memory_space<vmem>>, vector<1x8x32xf32>
    %384 = vector.shape_cast %383 : vector<1x8x32xf32> to vector<8x32xf32>
    %385 = vector.shape_cast %354 : vector<8x32xf32> to vector<1x8x32xf32>
    tpu.vector_store %arg12[%382, %c0_136, %c0_137], %385 {strides = array<i32>} : memref<6x8x80xf32, #tpu.memory_space<vmem>>, vector<1x8x32xf32>,
    %386 = arith.index_cast %c4_i32 : i32 to index
    %c0_138 = arith.constant 0 : index
    %c32_139 = arith.constant 32 : index
    %387 = vector.load %arg12[%386, %c0_138, %c32_139] : memref<6x8x80xf32, #tpu.memory_space<vmem>>, vector<1x8x32xf32>
    %388 = vector.shape_cast %387 : vector<1x8x32xf32> to vector<8x32xf32>
    %389 = vector.shape_cast %374 : vector<8x32xf32> to vector<1x8x32xf32>
    tpu.vector_store %arg12[%386, %c0_138, %c32_139], %389 {strides = array<i32>} : memref<6x8x80xf32, #tpu.memory_space<vmem>>, vector<1x8x32xf32>,
    %390 = arith.index_cast %c4_i32 : i32 to index
    %c0_140 = arith.constant 0 : index
    %c64_141 = arith.constant 64 : index
    %391 = vector.load %arg12[%390, %c0_140, %c64_141] : memref<6x8x80xf32, #tpu.memory_space<vmem>>, vector<1x8x16xf32>
    %392 = vector.shape_cast %391 : vector<1x8x16xf32> to vector<8x16xf32>
    %393 = vector.shape_cast %381 : vector<8x16xf32> to vector<1x8x16xf32>
    tpu.vector_store %arg12[%390, %c0_140, %c64_141], %393 {strides = array<i32>} : memref<6x8x80xf32, #tpu.memory_space<vmem>>, vector<1x8x16xf32>,
    %394 = vector.extract_strided_slice %381 {offsets = [0, 0], sizes = [8, 8], strides = [1, 1]} : vector<8x16xf32> to vector<8x8xf32>
    %c5_i32 = arith.constant 5 : i32
    %395 = arith.index_cast %c5_i32 : i32 to index
    %c0_142 = arith.constant 0 : index
    %c0_143 = arith.constant 0 : index
    %396 = vector.load %arg2[%395, %c0_142, %c0_143] : memref<6x8x8xf32, #tpu.memory_space<vmem>>, vector<1x8x8xf32>
    %397 = vector.shape_cast %396 : vector<1x8x8xf32> to vector<8x8xf32>
    %398 = arith.mulf %394, %397 : vector<8x8xf32>
    %cst_144 = arith.constant dense<0.000000e+00> : vector<8x32xf32>
    %399 = tpu.matmul %398, %0, %cst_144 {dimension_numbers = #tpu.dot_dimension_numbers<[1], [0], [0], [1], [0, 0, 1, 1], [], []>} : vector<8x8xf32>, vector<8x32xf32>, vector<8x32xf32> -> vector<8x32xf32>
    %400 = arith.index_cast %c5_i32 : i32 to index
    %c0_145 = arith.constant 0 : index
    %c0_146 = arith.constant 0 : index
    %401 = vector.load %arg3[%400, %c0_145, %c0_146] : memref<6x8x32xf32, #tpu.memory_space<vmem>>, vector<1x8x32xf32>
    %402 = vector.shape_cast %401 : vector<1x8x32xf32> to vector<8x32xf32>
    %403 = arith.addf %399, %402 : vector<8x32xf32>
    %cst_147 = arith.constant 0.000000e+00 : f32
    %404 = vector.broadcast %cst_147 : f32 to vector<8x32xf32>
    %405 = arith.maximumf %403, %404 : vector<8x32xf32>
    %406 = tpu.concatenate %405, %354 in 1 : vector<8x32xf32>, vector<8x32xf32> -> vector<8x64xf32>
    %cst_148 = arith.constant dense<0.000000e+00> : vector<8x128xf32>
    %407 = tpu.matmul %406, %1, %cst_148 {dimension_numbers = #tpu.dot_dimension_numbers<[1], [0], [0], [1], [0, 0, 1, 1], [], []>} : vector<8x64xf32>, vector<64x128xf32>, vector<8x128xf32> -> vector<8x128xf32>
    %408 = arith.addf %407, %6 : vector<8x128xf32>
    %409 = vector.extract_strided_slice %408 {offsets = [0, 0], sizes = [8, 32], strides = [1, 1]} : vector<8x128xf32> to vector<8x32xf32>
    %410 = arith.negf %409 : vector<8x32xf32>
    %411 = math.exp %410 : vector<8x32xf32>
    %cst_149 = arith.constant 1.000000e+00 : f32
    %412 = vector.broadcast %cst_149 : f32 to vector<8x32xf32>
    %413 = arith.addf %412, %411 : vector<8x32xf32>
    %414 = arith.divf %412, %413 : vector<8x32xf32>
    %415 = vector.extract_strided_slice %408 {offsets = [0, 32], sizes = [8, 32], strides = [1, 1]} : vector<8x128xf32> to vector<8x32xf32>
    %416 = arith.negf %415 : vector<8x32xf32>
    %417 = math.exp %416 : vector<8x32xf32>
    %cst_150 = arith.constant 1.000000e+00 : f32
    %418 = vector.broadcast %cst_150 : f32 to vector<8x32xf32>
    %419 = arith.addf %418, %417 : vector<8x32xf32>
    %420 = arith.divf %418, %419 : vector<8x32xf32>
    %421 = vector.extract_strided_slice %408 {offsets = [0, 64], sizes = [8, 32], strides = [1, 1]} : vector<8x128xf32> to vector<8x32xf32>
    %422 = vector.extract_strided_slice %408 {offsets = [0, 96], sizes = [8, 32], strides = [1, 1]} : vector<8x128xf32> to vector<8x32xf32>
    %423 = arith.mulf %414, %422 : vector<8x32xf32>
    %424 = arith.addf %421, %423 : vector<8x32xf32>
    %425 = math.tanh %424 : vector<8x32xf32>
    %cst_151 = arith.constant 1.000000e+00 : f32
    %426 = vector.broadcast %cst_151 : f32 to vector<8x32xf32>
    %427 = arith.subf %426, %420 : vector<8x32xf32>
    %428 = arith.mulf %427, %425 : vector<8x32xf32>
    %429 = arith.mulf %420, %354 : vector<8x32xf32>
    %430 = arith.addf %428, %429 : vector<8x32xf32>
    %cst_152 = arith.constant dense<0.000000e+00> : vector<8x64xf32>
    %431 = tpu.matmul %430, %2, %cst_152 {dimension_numbers = #tpu.dot_dimension_numbers<[1], [0], [0], [1], [0, 0, 1, 1], [], []>} : vector<8x32xf32>, vector<32x64xf32>, vector<8x64xf32> -> vector<8x64xf32>
    %432 = arith.index_cast %c5_i32 : i32 to index
    %c0_153 = arith.constant 0 : index
    %c0_154 = arith.constant 0 : index
    %433 = vector.load %arg4[%432, %c0_153, %c0_154] : memref<6x8x64xf32, #tpu.memory_space<vmem>>, vector<1x8x64xf32>
    %434 = vector.shape_cast %433 : vector<1x8x64xf32> to vector<8x64xf32>
    %435 = arith.addf %431, %434 : vector<8x64xf32>
    %cst_155 = arith.constant 0.000000e+00 : f32
    %436 = vector.broadcast %cst_155 : f32 to vector<8x64xf32>
    %437 = arith.maximumf %435, %436 : vector<8x64xf32>
    %cst_156 = arith.constant dense<0.000000e+00> : vector<8x32xf32>
    %438 = tpu.matmul %437, %3, %cst_156 {dimension_numbers = #tpu.dot_dimension_numbers<[1], [0], [0], [1], [0, 0, 1, 1], [], []>} : vector<8x64xf32>, vector<64x32xf32>, vector<8x32xf32> -> vector<8x32xf32>
    %439 = arith.addf %438, %9 : vector<8x32xf32>
    %cst_157 = arith.constant 0.000000e+00 : f32
    %440 = vector.broadcast %cst_157 : f32 to vector<8x32xf32>
    %441 = arith.maximumf %439, %440 : vector<8x32xf32>
    %442 = math.absf %439 : vector<8x32xf32>
    %cst_158 = arith.constant 0.000000e+00 : f32
    %443 = vector.broadcast %cst_158 : f32 to vector<8x32xf32>
    %444 = arith.subf %443, %442 : vector<8x32xf32>
    %445 = math.exp %444 : vector<8x32xf32>
    %446 = math.log1p %445 : vector<8x32xf32>
    %447 = arith.addf %441, %446 : vector<8x32xf32>
    %cst_159 = arith.constant 1.000000e-01 : f32
    %448 = vector.broadcast %cst_159 : f32 to vector<8x32xf32>
    %449 = arith.addf %447, %448 : vector<8x32xf32>
    %450 = arith.select %12, %449, %439 : vector<8x32xi1>, vector<8x32xf32>
    %451 = vector.extract_strided_slice %450 {offsets = [0, 0], sizes = [8, 16], strides = [1, 1]} : vector<8x32xf32> to vector<8x16xf32>
    %452 = vector.extract_strided_slice %450 {offsets = [0, 16], sizes = [8, 16], strides = [1, 1]} : vector<8x32xf32> to vector<8x16xf32>
    %453 = arith.index_cast %c5_i32 : i32 to index
    %c0_160 = arith.constant 0 : index
    %c0_161 = arith.constant 0 : index
    %454 = vector.load %arg5[%453, %c0_160, %c0_161] : memref<6x8x16xf32, #tpu.memory_space<vmem>>, vector<1x8x16xf32>
    %455 = vector.shape_cast %454 : vector<1x8x16xf32> to vector<8x16xf32>
    %456 = arith.mulf %452, %455 : vector<8x16xf32>
    %457 = arith.addf %451, %456 : vector<8x16xf32>
    %458 = arith.index_cast %c5_i32 : i32 to index
    %c0_162 = arith.constant 0 : index
    %c0_163 = arith.constant 0 : index
    %459 = vector.load %arg12[%458, %c0_162, %c0_163] : memref<6x8x80xf32, #tpu.memory_space<vmem>>, vector<1x8x32xf32>
    %460 = vector.shape_cast %459 : vector<1x8x32xf32> to vector<8x32xf32>
    %461 = vector.shape_cast %430 : vector<8x32xf32> to vector<1x8x32xf32>
    tpu.vector_store %arg12[%458, %c0_162, %c0_163], %461 {strides = array<i32>} : memref<6x8x80xf32, #tpu.memory_space<vmem>>, vector<1x8x32xf32>,
    %462 = arith.index_cast %c5_i32 : i32 to index
    %c0_164 = arith.constant 0 : index
    %c32_165 = arith.constant 32 : index
    %463 = vector.load %arg12[%462, %c0_164, %c32_165] : memref<6x8x80xf32, #tpu.memory_space<vmem>>, vector<1x8x32xf32>
    %464 = vector.shape_cast %463 : vector<1x8x32xf32> to vector<8x32xf32>
    %465 = vector.shape_cast %450 : vector<8x32xf32> to vector<1x8x32xf32>
    tpu.vector_store %arg12[%462, %c0_164, %c32_165], %465 {strides = array<i32>} : memref<6x8x80xf32, #tpu.memory_space<vmem>>, vector<1x8x32xf32>,
    %466 = arith.index_cast %c5_i32 : i32 to index
    %c0_166 = arith.constant 0 : index
    %c64_167 = arith.constant 64 : index
    %467 = vector.load %arg12[%466, %c0_166, %c64_167] : memref<6x8x80xf32, #tpu.memory_space<vmem>>, vector<1x8x16xf32>
    %468 = vector.shape_cast %467 : vector<1x8x16xf32> to vector<8x16xf32>
    %469 = vector.shape_cast %457 : vector<8x16xf32> to vector<1x8x16xf32>
    tpu.vector_store %arg12[%466, %c0_166, %c64_167], %469 {strides = array<i32>} : memref<6x8x80xf32, #tpu.memory_space<vmem>>, vector<1x8x16xf32>,
    %470 = vector.extract_strided_slice %457 {offsets = [0, 0], sizes = [8, 8], strides = [1, 1]} : vector<8x16xf32> to vector<8x8xf32>
    %c6_i32 = arith.constant 6 : i32
    return
  }
}

</mosaic_0001>

<llo_original>
// kernel: tpu_custom_call.1
$region0: #{tpu_custom_call.1}
  #allocation0 [shape = 'u32[]', space=smem, size = 0x4, offset = 0x4, fixed_abs, tag = 'smem constant byte address 0x4 - core index']
  #allocation1 [shape = 'u32[144,128]{1,0:T(1,128)}', space=vmem, size = 0x12000, scoped, tag = 'internal scratch']
  %s0 = inlined_call_operand.vmem [shape: f32[8,8], index: 0, kind: input, shape index: {}]
  %s1 = inlined_call_operand.hbm [shape: f32[8,32], index: 1, kind: input, shape index: {}]
  %s2 = inlined_call_operand.vmem [shape: f32[6,8,8], index: 2, kind: input, shape index: {}]
  %s3 = inlined_call_operand.hbm [shape: f32[6,8,32], index: 3, kind: input, shape index: {}]
  %s4 = inlined_call_operand.hbm [shape: f32[6,8,64], index: 4, kind: input, shape index: {}]
  %s5 = inlined_call_operand.hbm [shape: f32[6,8,16], index: 5, kind: input, shape index: {}]
  %s6 = inlined_call_operand.hbm [shape: f32[8,32], index: 6, kind: input, shape index: {}]
  %s7 = inlined_call_operand.vmem [shape: f32[64,128], index: 7, kind: input, shape index: {}]
  %s8 = inlined_call_operand.vmem [shape: f32[1,128], index: 8, kind: input, shape index: {}]
  %s9 = inlined_call_operand.hbm [shape: f32[32,64], index: 9, kind: input, shape index: {}]
  %s10 = inlined_call_operand.vmem [shape: f32[64,32], index: 10, kind: input, shape index: {}]
  %s11 = inlined_call_operand.vmem [shape: f32[1,32], index: 11, kind: input, shape index: {}]
  %s12 = inlined_call_operand.hbm [shape: f32[6,8,80], index: 12, kind: output, shape index: {}]
  %s13 = sld [smem:[#allocation0]]
  $region82: #{tpu_custom_call.1} parent=0
    _
  %s15 = ssub.s32 1, %s13
  %s16 = scalar_select 0, %s15, %s13
  $region1: #{tpu_custom_call.1} parent=0
    #allocation2 [shape = 'u8[4096]{0}', space=vmem, size = 0x1000, scoped, tag = 'input window, operand 1, single buffered']
    #allocation3 [shape = 's32[1]{0}', space=sflag, size = 0x4, scoped, tag = 'scoped memory for tpu_custom_call.1']
    #allocation4 [shape = 's32[1]{0}', space=sflag, size = 0x4, scoped, tag = 'scoped memory for tpu_custom_call.1']
    #allocation5 [shape = 'u8[24576]{0}', space=vmem, size = 0x6000, scoped, tag = 'input window, operand 3, single buffered']
    #allocation6 [shape = 's32[1]{0}', space=sflag, size = 0x4, scoped, tag = 'scoped memory for tpu_custom_call.1']
    #allocation7 [shape = 'u8[24576]{0}', space=vmem, size = 0x6000, scoped, tag = 'input window, operand 4, single buffered']
    #allocation8 [shape = 'u8[24576]{0}', space=vmem, size = 0x6000, scoped, tag = 'input window, operand 5, single buffered']
    #allocation9 [shape = 's32[1]{0}', space=sflag, size = 0x4, scoped, tag = 'scoped memory for tpu_custom_call.1']
    #allocation10 [shape = 'u8[4096]{0}', space=vmem, size = 0x1000, scoped, tag = 'input window, operand 6, single buffered']
    #allocation11 [shape = 'u8[16384]{0}', space=vmem, size = 0x4000, scoped, tag = 'input window, operand 9, single buffered']
    #allocation12 [shape = 's32[1]{0}', space=sflag, size = 0x4, scoped, tag = 'scoped memory for tpu_custom_call.1']
    #allocation13 [shape = 'u8[24576]{0}', space=vmem, size = 0x6000, scoped, tag = 'output window, operand 0, single buffered']
    %17 = vsyncpa [#allocation3], 0
    %18 = vsyncpa [#allocation6], 0
    %19 = vsyncpa [#allocation9], 0
    %20 = vsyncpa [#allocation12], 0
    %21 = vsyncpa [#allocation4], 0
    // Predicated region
    $region2: #{tpu_custom_call.1} parent=1 // pred_check
      _
    $region3: #{tpu_custom_call.1} parent=1 // pred_check_branch
      %23 = sbr.rel (0) target = $region5
    $region4: #{tpu_custom_call.1} parent=1 // pred_region
      _
    $region5: #{tpu_custom_call.1} parent=1 // pred_fallthru
      _
    // Predicated region
    $region6: #{tpu_custom_call.1} parent=1 // pred_check
      _
    $region7: #{tpu_custom_call.1} parent=1 // pred_check_branch
      %25 = sbr.rel (0) target = $region9
    $region8: #{tpu_custom_call.1} parent=1 // pred_region
      %s27 = ssub.s32 128, 128
      %28 = vsyncadd [#allocation3], %s27
      %s30 = sshll.u32 [#allocation2], 4
      %s31 = int_to_ptr.vmem [resolvable:$true] %s30
      %33 = dma.hbm_to_vmem [thread:$0]  %s1, 128, %s31, [#allocation3]
    $region9: #{tpu_custom_call.1} parent=1 // pred_fallthru
      _
    // Predicated region
    $region10: #{tpu_custom_call.1} parent=1 // pred_check
      _
    $region11: #{tpu_custom_call.1} parent=1 // pred_check_branch
      %35 = sbr.rel (0) target = $region13
    $region12: #{tpu_custom_call.1} parent=1 // pred_region
      _
    $region13: #{tpu_custom_call.1} parent=1 // pred_fallthru
      _
    // Predicated region
    $region14: #{tpu_custom_call.1} parent=1 // pred_check
      _
    $region15: #{tpu_custom_call.1} parent=1 // pred_check_branch
      %37 = sbr.rel (0) target = $region17
    $region16: #{tpu_custom_call.1} parent=1 // pred_region
      %s39 = ssub.s32 768, 768
      %40 = vsyncadd [#allocation6], %s39
      %s41 = sshll.u32 [#allocation5], 4
      %s42 = int_to_ptr.vmem [resolvable:$true] %s41
      %47 = dma.hbm_to_vmem [thread:$0]  %s3, 768, %s42, [#allocation6], 128, 128, 8
    $region17: #{tpu_custom_call.1} parent=1 // pred_fallthru
      _
    // Predicated region
    $region18: #{tpu_custom_call.1} parent=1 // pred_check
      _
    $region19: #{tpu_custom_call.1} parent=1 // pred_check_branch
      %49 = sbr.rel (0) target = $region21
    $region20: #{tpu_custom_call.1} parent=1 // pred_region
      %s51 = ssub.s32 768, 768
      %52 = vsyncadd [#allocation6], %s51
      %s53 = sshll.u32 [#allocation7], 4
      %s54 = int_to_ptr.vmem [resolvable:$true] %s53
      %59 = dma.hbm_to_vmem [thread:$0]  %s4, 768, %s54, [#allocation6], 128, 128, 8
    $region21: #{tpu_custom_call.1} parent=1 // pred_fallthru
      _
    // Predicated region
    $region22: #{tpu_custom_call.1} parent=1 // pred_check
      _
    $region23: #{tpu_custom_call.1} parent=1 // pred_check_branch
      %61 = sbr.rel (0) target = $region25
    $region24: #{tpu_custom_call.1} parent=1 // pred_region
      %s63 = ssub.s32 768, 768
      %64 = vsyncadd [#allocation9], %s63
      %s65 = sshll.u32 [#allocation8], 4
      %s66 = int_to_ptr.vmem [resolvable:$true] %s65
      %71 = dma.hbm_to_vmem [thread:$0]  %s5, 768, %s66, [#allocation9], 128, 128, 8
    $region25: #{tpu_custom_call.1} parent=1 // pred_fallthru
      _
    // Predicated region
    $region26: #{tpu_custom_call.1} parent=1 // pred_check
      _
    $region27: #{tpu_custom_call.1} parent=1 // pred_check_branch
      %73 = sbr.rel (0) target = $region29
    $region28: #{tpu_custom_call.1} parent=1 // pred_region
      %s75 = ssub.s32 128, 128
      %76 = vsyncadd [#allocation9], %s75
      %s78 = sshll.u32 [#allocation10], 4
      %s79 = int_to_ptr.vmem [resolvable:$true] %s78
      %81 = dma.hbm_to_vmem [thread:$0]  %s6, 128, %s79, [#allocation9]
    $region29: #{tpu_custom_call.1} parent=1 // pred_fallthru
      _
    // Predicated region
    $region30: #{tpu_custom_call.1} parent=1 // pred_check
      _
    $region31: #{tpu_custom_call.1} parent=1 // pred_check_branch
      %83 = sbr.rel (0) target = $region33
    $region32: #{tpu_custom_call.1} parent=1 // pred_region
      _
    $region33: #{tpu_custom_call.1} parent=1 // pred_fallthru
      _
    // Predicated region
    $region34: #{tpu_custom_call.1} parent=1 // pred_check
      _
    $region35: #{tpu_custom_call.1} parent=1 // pred_check_branch
      %85 = sbr.rel (0) target = $region37
    $region36: #{tpu_custom_call.1} parent=1 // pred_region
      _
    $region37: #{tpu_custom_call.1} parent=1 // pred_fallthru
      _
    // Predicated region
    $region38: #{tpu_custom_call.1} parent=1 // pred_check
      _
    $region39: #{tpu_custom_call.1} parent=1 // pred_check_branch
      %87 = sbr.rel (0) target = $region41
    $region40: #{tpu_custom_call.1} parent=1 // pred_region
      %s89 = ssub.s32 512, 512
      %90 = vsyncadd [#allocation12], %s89
      %s91 = sshll.u32 [#allocation11], 4
      %s92 = int_to_ptr.vmem [resolvable:$true] %s91
      %97 = dma.hbm_to_vmem [thread:$0]  %s9, 512, %s92, [#allocation12], 128, 128, 8
    $region41: #{tpu_custom_call.1} parent=1 // pred_fallthru
      _
    // Predicated region
    $region42: #{tpu_custom_call.1} parent=1 // pred_check
      _
    $region43: #{tpu_custom_call.1} parent=1 // pred_check_branch
      %99 = sbr.rel (0) target = $region45
    $region44: #{tpu_custom_call.1} parent=1 // pred_region
      _
    $region45: #{tpu_custom_call.1} parent=1 // pred_fallthru
      _
    // Predicated region
    $region46: #{tpu_custom_call.1} parent=1 // pred_check
      _
    $region47: #{tpu_custom_call.1} parent=1 // pred_check_branch
      %101 = sbr.rel (0) target = $region49
    $region48: #{tpu_custom_call.1} parent=1 // pred_region
      _
    $region49: #{tpu_custom_call.1} parent=1 // pred_fallthru
      _
    // Predicated region
    $region50: #{tpu_custom_call.1} parent=1 // pred_check
      _
    $region51: #{tpu_custom_call.1} parent=1 // pred_check_branch
      %103 = sbr.rel (0) target = $region53
    $region52: #{tpu_custom_call.1} parent=1 // pred_region
      %104 = dma.done [#allocation3], 128
    $region53: #{tpu_custom_call.1} parent=1 // pred_fallthru
      _
    // Predicated region
    $region54: #{tpu_custom_call.1} parent=1 // pred_check
      _
    $region55: #{tpu_custom_call.1} parent=1 // pred_check_branch
      %106 = sbr.rel (0) target = $region57
    $region56: #{tpu_custom_call.1} parent=1 // pred_region
      %107 = dma.done [#allocation6], 768
    $region57: #{tpu_custom_call.1} parent=1 // pred_fallthru
      _
    // Predicated region
    $region58: #{tpu_custom_call.1} parent=1 // pred_check
      _
    $region59: #{tpu_custom_call.1} parent=1 // pred_check_branch
      %109 = sbr.rel (0) target = $region61
    $region60: #{tpu_custom_call.1} parent=1 // pred_region
      %110 = dma.done [#allocation6], 768
    $region61: #{tpu_custom_call.1} parent=1 // pred_fallthru
      _
    // Predicated region
    $region62: #{tpu_custom_call.1} parent=1 // pred_check
      _
    $region63: #{tpu_custom_call.1} parent=1 // pred_check_branch
      %112 = sbr.rel (0) target = $region65
    $region64: #{tpu_custom_call.1} parent=1 // pred_region
      %113 = dma.done [#allocation9], 768
    $region65: #{tpu_custom_call.1} parent=1 // pred_fallthru
      _
    // Predicated region
    $region66: #{tpu_custom_call.1} parent=1 // pred_check
      _
    $region67: #{tpu_custom_call.1} parent=1 // pred_check_branch
      %115 = sbr.rel (0) target = $region69
    $region68: #{tpu_custom_call.1} parent=1 // pred_region
      %116 = dma.done [#allocation9], 128
    $region69: #{tpu_custom_call.1} parent=1 // pred_fallthru
      _
    // Predicated region
    $region70: #{tpu_custom_call.1} parent=1 // pred_check
      _
    $region71: #{tpu_custom_call.1} parent=1 // pred_check_branch
      %118 = sbr.rel (0) target = $region73
    $region72: #{tpu_custom_call.1} parent=1 // pred_region
      %119 = dma.done [#allocation12], 512
    $region73: #{tpu_custom_call.1} parent=1 // pred_fallthru
      _
    %v120 = vld [vmem:[#allocation10] sm:$0xff]
    %v121 = vld [vmem:[%s7] sm:$0xff]
    %v122 = vld [vmem:[%s7 + $0x8] sm:$0xff]
    %v123 = vld [vmem:[%s7 + $0x10] sm:$0xff]
    %v124 = vld [vmem:[%s7 + $0x18] sm:$0xff]
    %v125 = vld [vmem:[%s7 + $0x20] sm:$0xff]
    %v126 = vld [vmem:[%s7 + $0x28] sm:$0xff]
    %v127 = vld [vmem:[%s7 + $0x30] sm:$0xff]
    %v128 = vld [vmem:[%s7 + $0x38] sm:$0xff]
    %v129 = vld [vmem:[#allocation11] sm:$0xff]
    %v130 = vld [vmem:[#allocation11 + $0x8] sm:$0xff]
    %v131 = vld [vmem:[#allocation11 + $0x10] sm:$0xff]
    %v132 = vld [vmem:[#allocation11 + $0x18] sm:$0xff]
    %v133 = vld [vmem:[%s10] sm:$0xff]
    %v134 = vld [vmem:[%s10 + $0x8] sm:$0xff]
    %v135 = vld [vmem:[%s10 + $0x10] sm:$0xff]
    %v136 = vld [vmem:[%s10 + $0x18] sm:$0xff]
    %v137 = vld [vmem:[%s10 + $0x20] sm:$0xff]
    %v138 = vld [vmem:[%s10 + $0x28] sm:$0xff]
    %v139 = vld [vmem:[%s10 + $0x30] sm:$0xff]
    %v140 = vld [vmem:[%s10 + $0x38] sm:$0xff]
    %v141 = vld [vmem:[%s8] sm:$0x1]
    %v143 = vlaneseq
    %v144 = vshrl.u32 %v143, 7
    %v145 = vsub.s32 0, %v144
    %v146 = vrot.slane %v141, %v145
    %v148 = vld [vmem:[%s11] sm:$0x1]
    %v150 = vlaneseq
    %v151 = vshrl.u32 %v150, 7
    %v152 = vsub.s32 0, %v151
    %v153 = vrot.slane %v148, %v152
    %v155 = vlaneseq
    %v156 = vand.u32 %v155, 127
    %vm157 = vcmp.ge.s32.totalorder %v156, 16
    %v158 = vld [vmem:[#allocation2] sm:$0xff]
    %v159 = vld [vmem:[%s0] sm:$0xff]
    %v160 = vld [vmem:[%s2] sm:$0xff]
    %v161 = vmul.f32 %v159, %v160
    %v162 = vld [vmem:[#allocation5] sm:$0xff]
    %vm163 = vcmask 64512
    %v165 = vsel %vm163, %v161, 0
    %167 = vmatprep.subr.mxu0 0.0
    %168 = vmatpush1.msra.mxu0 %v120
    %169 = vmatprep.subr.mxu0 0.0
    %170 = vmatpush1.msra.mxu0 0.0
    %171 = vmatprep.subr.mxu0 0.0
    %172 = vmatpush1.msra.mxu0 0.0
    %173 = vmatprep.subr.mxu0 0.0
    %174 = vmatpush1.msra.mxu0 0.0
    %175 = vmatprep.subr.mxu0 0.0
    %176 = vmatpush1.msra.mxu0 0.0
    %177 = vmatprep.subr.mxu0 0.0
    %178 = vmatpush1.msra.mxu0 0.0
    %179 = vmatprep.subr.mxu0 0.0
    %180 = vmatpush1.msra.mxu0 0.0
    %181 = vmatprep.subr.mxu0 0.0
    %182 = vmatpush1.msra.mxu0 0.0
    %183 = vmatprep.subr.mxu0 0.0
    %184 = vmatpush1.msra.mxu0 0.0
    %185 = vmatprep.subr.mxu0 0.0
    %186 = vmatpush1.msra.mxu0 0.0
    %187 = vmatprep.subr.mxu0 0.0
    %188 = vmatpush1.msra.mxu0 0.0
    %189 = vmatprep.subr.mxu0 0.0
    %190 = vmatpush1.msra.mxu0 0.0
    %191 = vmatprep.subr.mxu0 0.0
    %192 = vmatpush1.msra.mxu0 0.0
    %193 = vmatprep.subr.mxu0 0.0
    %194 = vmatpush1.msra.mxu0 0.0
    %195 = vmatprep.subr.mxu0 0.0
    %196 = vmatpush1.msra.mxu0 0.0
    %197 = vmatprep.subr.mxu0 0.0
    %198 = vmatpush1.msra.mxu0 0.0
    %199 = vmatprep.subr.mxu0 0.0
    %200 = vmatpush1.msra.mxu0 0.0
    %201 = vmatprep.subr.mxu0 0.0
    %202 = vmatpush1.msra.mxu0 0.0
    %203 = vmatprep.subr.mxu0 0.0
    %204 = vmatpush1.msra.mxu0 0.0
    %205 = vmatprep.subr.mxu0 0.0
    %206 = vmatpush1.msra.mxu0 0.0
    %207 = vmatprep.subr.mxu0 0.0
    %208 = vmatpush1.msra.mxu0 0.0
    %209 = vmatprep.subr.mxu0 0.0
    %210 = vmatpush1.msra.mxu0 0.0
    %211 = vmatprep.subr.mxu0 0.0
    %212 = vmatpush1.msra.mxu0 0.0
    %213 = vmatprep.subr.mxu0 0.0
    %214 = vmatpush1.msra.mxu0 0.0
    %215 = vmatprep.subr.mxu0 0.0
    %216 = vmatpush1.msra.mxu0 0.0
    %217 = vmatprep.subr.mxu0 0.0
    %218 = vmatpush1.msra.mxu0 0.0
    %219 = vmatprep.subr.mxu0 0.0
    %220 = vmatpush1.msra.mxu0 0.0
    %221 = vmatprep.subr.mxu0 0.0
    %222 = vmatpush1.msra.mxu0 0.0
    %223 = vmatprep.subr.mxu0 0.0
    %224 = vmatpush1.msra.mxu0 0.0
    %225 = vmatprep.subr.mxu0 0.0
    %226 = vmatpush1.msra.mxu0 0.0
    %227 = vmatprep.subr.mxu0 0.0
    %228 = vmatpush1.msra.mxu0 0.0
    %229 = vmatprep.subr.mxu0 0.0
    %230 = vmatpush1.msra.mxu0 0.0
    %231 = vmatprep.mubr.f32.mxu0 0.0
    %232 = vmatmul.mubr.f32.gmra.mrb[0].mxu0 %v165
    %v233 = vpop.f32.mrb[0].mxu0
    %v234 = vadd.f32 %v162, %v233
    %v235 = vpop.f32.mrb[0].mxu0
    %236 = vdwg.mxu0
    %v237 = vmax.f32 %v234, 0.0
    %239 = vrot.lane.b32.xlu0 %v158, 32
    %v240 = vpop.permute.xlu0 %239
    %vm242 = vcmask 261120
    %v243 = vsel %vm242, %v237, %v240
    %vm244 = vcmask 523264
    %v246 = vsel %vm244, %v243, 0
    %248 = vmatprep.subr.mxu0 0.0
    %249 = vmatpush1.msra.mxu0 %v121
    %250 = vmatprep.subr.mxu0 0.0
    %251 = vmatpush1.msra.mxu0 %v122
    %252 = vmatprep.subr.mxu0 0.0
    %253 = vmatpush1.msra.mxu0 %v123
    %254 = vmatprep.subr.mxu0 0.0
    %255 = vmatpush1.msra.mxu0 %v124
    %256 = vmatprep.subr.mxu0 0.0
    %257 = vmatpush1.msra.mxu0 %v125
    %258 = vmatprep.subr.mxu0 0.0
    %259 = vmatpush1.msra.mxu0 %v126
    %260 = vmatprep.subr.mxu0 0.0
    %261 = vmatpush1.msra.mxu0 %v127
    %262 = vmatprep.subr.mxu0 0.0
    %263 = vmatpush1.msra.mxu0 %v128
    %264 = vmatprep.subr.mxu0 0.0
    %265 = vmatpush1.msra.mxu0 0.0
    %266 = vmatprep.subr.mxu0 0.0
    %267 = vmatpush1.msra.mxu0 0.0
    %268 = vmatprep.subr.mxu0 0.0
    %269 = vmatpush1.msra.mxu0 0.0
    %270 = vmatprep.subr.mxu0 0.0
    %271 = vmatpush1.msra.mxu0 0.0
    %272 = vmatprep.subr.mxu0 0.0
    %273 = vmatpush1.msra.mxu0 0.0
    %274 = vmatprep.subr.mxu0 0.0
    %275 = vmatpush1.msra.mxu0 0.0
    %276 = vmatprep.subr.mxu0 0.0
    %277 = vmatpush1.msra.mxu0 0.0
    %278 = vmatprep.subr.mxu0 0.0
    %279 = vmatpush1.msra.mxu0 0.0
    %280 = vmatprep.subr.mxu0 0.0
    %281 = vmatpush1.msra.mxu0 0.0
    %282 = vmatprep.subr.mxu0 0.0
    %283 = vmatpush1.msra.mxu0 0.0
    %284 = vmatprep.subr.mxu0 0.0
    %285 = vmatpush1.msra.mxu0 0.0
    %286 = vmatprep.subr.mxu0 0.0
    %287 = vmatpush1.msra.mxu0 0.0
    %288 = vmatprep.subr.mxu0 0.0
    %289 = vmatpush1.msra.mxu0 0.0
    %290 = vmatprep.subr.mxu0 0.0
    %291 = vmatpush1.msra.mxu0 0.0
    %292 = vmatprep.subr.mxu0 0.0
    %293 = vmatpush1.msra.mxu0 0.0
    %294 = vmatprep.subr.mxu0 0.0
    %295 = vmatpush1.msra.mxu0 0.0
    %296 = vmatprep.subr.mxu0 0.0
    %297 = vmatpush1.msra.mxu0 0.0
    %298 = vmatprep.subr.mxu0 0.0
    %299 = vmatpush1.msra.mxu0 0.0
    %300 = vmatprep.subr.mxu0 0.0
    %301 = vmatpush1.msra.mxu0 0.0
    %302 = vmatprep.subr.mxu0 0.0
    %303 = vmatpush1.msra.mxu0 0.0
    %304 = vmatprep.subr.mxu0 0.0
    %305 = vmatpush1.msra.mxu0 0.0
    %306 = vmatprep.subr.mxu0 0.0
    %307 = vmatpush1.msra.mxu0 0.0
    %308 = vmatprep.subr.mxu0 0.0
    %309 = vmatpush1.msra.mxu0 0.0
    %310 = vmatprep.subr.mxu0 0.0
    %311 = vmatpush1.msra.mxu0 0.0
    %312 = vmatprep.mubr.f32.mxu0 0.0
    %313 = vmatmul.mubr.f32.gmra.mrb[0].mxu0 %v246
    %v314 = vpop.f32.mrb[0].mxu0
    %v315 = vadd.f32 %v146, %v314
    %v316 = vpop.f32.mrb[0].mxu0
    %317 = vdwg.mxu0
    %v318 = vxor.u32 %v315, 2147483648
    %v319 = vmul.f32 %v318, 1.442695
    %v320 = vpow.pop %v319
    %v321 = vadd.f32 %v320, 1.0
    %v322 = vrcp.pop %v321
    %v323 = vmul.f32 1.0, %v322
    %325 = vrot.lane.b32.xlu0 %v315, 32
    %v326 = vpop.permute.xlu0 %325
    %v328 = vmul.f32 %v323, %v326
    %330 = vrot.lane.b32.xlu0 %v328, 64
    %v331 = vpop.permute.xlu0 %330
    %v333 = vadd.f32 %v315, %v331
    %v334 = vtanh.pop %v333
    %v335 = vsub.f32 1.0, %v323
    %337 = vrot.lane.b32.xlu0 %v334, 96
    %v338 = vpop.permute.xlu0 %337
    %v340 = vmul.f32 %v335, %v338
    %v341 = vmul.f32 %v323, %v240
    %v342 = vadd.f32 %v340, %v341
    %v343 = vld [vmem:[#allocation7] sm:$0xff]
    %345 = vrot.lane.b32.xlu0 %v342, 96
    %v346 = vpop.permute.xlu0 %345
    %v347 = vsel %vm242, %v346, 0
    %349 = vmatprep.subr.mxu0 0.0
    %350 = vmatpush1.msra.mxu0 %v129
    %351 = vmatprep.subr.mxu0 0.0
    %352 = vmatpush1.msra.mxu0 %v130
    %353 = vmatprep.subr.mxu0 0.0
    %354 = vmatpush1.msra.mxu0 %v131
    %355 = vmatprep.subr.mxu0 0.0
    %356 = vmatpush1.msra.mxu0 %v132
    %357 = vmatprep.subr.mxu0 0.0
    %358 = vmatpush1.msra.mxu0 0.0
    %359 = vmatprep.subr.mxu0 0.0
    %360 = vmatpush1.msra.mxu0 0.0
    %361 = vmatprep.subr.mxu0 0.0
    %362 = vmatpush1.msra.mxu0 0.0
    %363 = vmatprep.subr.mxu0 0.0
    %364 = vmatpush1.msra.mxu0 0.0
    %365 = vmatprep.subr.mxu0 0.0
    %366 = vmatpush1.msra.mxu0 0.0
    %367 = vmatprep.subr.mxu0 0.0
    %368 = vmatpush1.msra.mxu0 0.0
    %369 = vmatprep.subr.mxu0 0.0
    %370 = vmatpush1.msra.mxu0 0.0
    %371 = vmatprep.subr.mxu0 0.0
    %372 = vmatpush1.msra.mxu0 0.0
    %373 = vmatprep.subr.mxu0 0.0
    %374 = vmatpush1.msra.mxu0 0.0
    %375 = vmatprep.subr.mxu0 0.0
    %376 = vmatpush1.msra.mxu0 0.0
    %377 = vmatprep.subr.mxu0 0.0
    %378 = vmatpush1.msra.mxu0 0.0
    %379 = vmatprep.subr.mxu0 0.0
    %380 = vmatpush1.msra.mxu0 0.0
    %381 = vmatprep.subr.mxu0 0.0
    %382 = vmatpush1.msra.mxu0 0.0
    %383 = vmatprep.subr.mxu0 0.0
    %384 = vmatpush1.msra.mxu0 0.0
    %385 = vmatprep.subr.mxu0 0.0
    %386 = vmatpush1.msra.mxu0 0.0
    %387 = vmatprep.subr.mxu0 0.0
    %388 = vmatpush1.msra.mxu0 0.0
    %389 = vmatprep.subr.mxu0 0.0
    %390 = vmatpush1.msra.mxu0 0.0
    %391 = vmatprep.subr.mxu0 0.0
    %392 = vmatpush1.msra.mxu0 0.0
    %393 = vmatprep.subr.mxu0 0.0
    %394 = vmatpush1.msra.mxu0 0.0
    %395 = vmatprep.subr.mxu0 0.0
    %396 = vmatpush1.msra.mxu0 0.0
    %397 = vmatprep.subr.mxu0 0.0
    %398 = vmatpush1.msra.mxu0 0.0
    %399 = vmatprep.subr.mxu0 0.0
    %400 = vmatpush1.msra.mxu0 0.0
    %401 = vmatprep.subr.mxu0 0.0
    %402 = vmatpush1.msra.mxu0 0.0
    %403 = vmatprep.subr.mxu0 0.0
    %404 = vmatpush1.msra.mxu0 0.0
    %405 = vmatprep.subr.mxu0 0.0
    %406 = vmatpush1.msra.mxu0 0.0
    %407 = vmatprep.subr.mxu0 0.0
    %408 = vmatpush1.msra.mxu0 0.0
    %409 = vmatprep.subr.mxu0 0.0
    %410 = vmatpush1.msra.mxu0 0.0
    %411 = vmatprep.subr.mxu0 0.0
    %412 = vmatpush1.msra.mxu0 0.0
    %413 = vmatprep.mubr.f32.mxu0 0.0
    %414 = vmatmul.mubr.f32.gmra.mrb[0].mxu0 %v347
    %v415 = vpop.f32.mrb[0].mxu0
    %v416 = vadd.f32 %v343, %v415
    %v417 = vpop.f32.mrb[0].mxu0
    %418 = vdwg.mxu0
    %v419 = vmax.f32 %v416, 0.0
    %v421 = vsel %vm244, %v419, 0
    %423 = vmatprep.subr.mxu0 0.0
    %424 = vmatpush1.msra.mxu0 %v133
    %425 = vmatprep.subr.mxu0 0.0
    %426 = vmatpush1.msra.mxu0 %v134
    %427 = vmatprep.subr.mxu0 0.0
    %428 = vmatpush1.msra.mxu0 %v135
    %429 = vmatprep.subr.mxu0 0.0
    %430 = vmatpush1.msra.mxu0 %v136
    %431 = vmatprep.subr.mxu0 0.0
    %432 = vmatpush1.msra.mxu0 %v137
    %433 = vmatprep.subr.mxu0 0.0
    %434 = vmatpush1.msra.mxu0 %v138
    %435 = vmatprep.subr.mxu0 0.0
    %436 = vmatpush1.msra.mxu0 %v139
    %437 = vmatprep.subr.mxu0 0.0
    %438 = vmatpush1.msra.mxu0 %v140
    %439 = vmatprep.subr.mxu0 0.0
    %440 = vmatpush1.msra.mxu0 0.0
    %441 = vmatprep.subr.mxu0 0.0
    %442 = vmatpush1.msra.mxu0 0.0
    %443 = vmatprep.subr.mxu0 0.0
    %444 = vmatpush1.msra.mxu0 0.0
    %445 = vmatprep.subr.mxu0 0.0
    %446 = vmatpush1.msra.mxu0 0.0
    %447 = vmatprep.subr.mxu0 0.0
    %448 = vmatpush1.msra.mxu0 0.0
    %449 = vmatprep.subr.mxu0 0.0
    %450 = vmatpush1.msra.mxu0 0.0
    %451 = vmatprep.subr.mxu0 0.0
    %452 = vmatpush1.msra.mxu0 0.0
    %453 = vmatprep.subr.mxu0 0.0
    %454 = vmatpush1.msra.mxu0 0.0
    %455 = vmatprep.subr.mxu0 0.0
    %456 = vmatpush1.msra.mxu0 0.0
    %457 = vmatprep.subr.mxu0 0.0
    %458 = vmatpush1.msra.mxu0 0.0
    %459 = vmatprep.subr.mxu0 0.0
    %460 = vmatpush1.msra.mxu0 0.0
    %461 = vmatprep.subr.mxu0 0.0
    %462 = vmatpush1.msra.mxu0 0.0
    %463 = vmatprep.subr.mxu0 0.0
    %464 = vmatpush1.msra.mxu0 0.0
    %465 = vmatprep.subr.mxu0 0.0
    %466 = vmatpush1.msra.mxu0 0.0
    %467 = vmatprep.subr.mxu0 0.0
    %468 = vmatpush1.msra.mxu0 0.0
    %469 = vmatprep.subr.mxu0 0.0
    %470 = vmatpush1.msra.mxu0 0.0
    %471 = vmatprep.subr.mxu0 0.0
    %472 = vmatpush1.msra.mxu0 0.0
    %473 = vmatprep.subr.mxu0 0.0
    %474 = vmatpush1.msra.mxu0 0.0
    %475 = vmatprep.subr.mxu0 0.0
    %476 = vmatpush1.msra.mxu0 0.0
    %477 = vmatprep.subr.mxu0 0.0
    %478 = vmatpush1.msra.mxu0 0.0
    %479 = vmatprep.subr.mxu0 0.0
    %480 = vmatpush1.msra.mxu0 0.0
    %481 = vmatprep.subr.mxu0 0.0
    %482 = vmatpush1.msra.mxu0 0.0
    %483 = vmatprep.subr.mxu0 0.0
    %484 = vmatpush1.msra.mxu0 0.0
    %485 = vmatprep.subr.mxu0 0.0
    %486 = vmatpush1.msra.mxu0 0.0
    %487 = vmatprep.mubr.f32.mxu0 0.0
    %488 = vmatmul.mubr.f32.gmra.mrb[0].mxu0 %v421
    %v489 = vpop.f32.mrb[0].mxu0
    %v490 = vadd.f32 %v153, %v489
    %v491 = vpop.f32.mrb[0].mxu0
    %492 = vdwg.mxu0
    %v493 = vmax.f32 %v490, 0.0
    %v494 = vand.u32 2147483647, %v490
    %v495 = vsub.f32 0.0, %v494
    %v496 = vmul.f32 %v495, 1.442695
    %v497 = vpow.pop %v496
    %v498 = vadd.f32 %v497, 1.0
    %v499 = vlog2.pop %v498
    %v500 = vmul.f32 %v499, 0.6931472
    %v501 = vmul.f32 -0.5, %v497
    %v502 = vadd.f32 %v501, 1.0
    %v503 = vmul.f32 %v502, %v497
    %v504 = vand.u32 2147483647, %v497
    %vm505 = vcmp.lt.f32.partialorder %v504, 0.0004427343
    %v506 = vsel %vm505, %v503, %v500
    %v507 = vadd.f32 %v493, %v506
    %v508 = vadd.f32 %v507, 0.1
    %v509 = vsel %vm157, %v508, %v490
    %v510 = vld [vmem:[#allocation8] sm:$0xff]
    %512 = vrot.lane.b32.xlu0 %v510, 16
    %v513 = vpop.permute.xlu0 %512
    %v515 = vmul.f32 %v509, %v513
    %517 = vrot.lane.b32.xlu0 %v515, 112
    %v518 = vpop.permute.xlu0 %517
    %v520 = vadd.f32 %v509, %v518
    %522 = vst.msk [vmem:[#allocation13] sm:$0xff] %vm242, %v346
    %524 = vrot.lane.b32.xlu0 %v509, 32
    %v525 = vpop.permute.xlu0 %524
    %vm527 = vcmask 523520
    %528 = vst.msk [vmem:[#allocation13] sm:$0xff] %vm527, %v525
    %530 = vrot.lane.b32.xlu0 %v520, 64
    %v531 = vpop.permute.xlu0 %530
    %vm533 = vcmask 654848
    %534 = vst.msk [vmem:[#allocation13] sm:$0xff] %vm533, %v531
    %s535 = scalar_lea.vmem %s2, 8
    %v536 = vld [vmem:[%s535] sm:$0xff]
    %v537 = vmul.f32 %v520, %v536
    %s538 = scalar_lea.vmem [#allocation5], 8
    %v539 = vld [vmem:[%s538] sm:$0xff]
    %v541 = vsel %vm163, %v537, 0
    %543 = vmatprep.subr.mxu0 0.0
    %544 = vmatpush1.msra.mxu0 %v120
    %545 = vmatprep.subr.mxu0 0.0
    %546 = vmatpush1.msra.mxu0 0.0
    %547 = vmatprep.subr.mxu0 0.0
    %548 = vmatpush1.msra.mxu0 0.0
    %549 = vmatprep.subr.mxu0 0.0
    %550 = vmatpush1.msra.mxu0 0.0
    %551 = vmatprep.subr.mxu0 0.0
    %552 = vmatpush1.msra.mxu0 0.0
    %553 = vmatprep.subr.mxu0 0.0
    %554 = vmatpush1.msra.mxu0 0.0
    %555 = vmatprep.subr.mxu0 0.0
    %556 = vmatpush1.msra.mxu0 0.0
    %557 = vmatprep.subr.mxu0 0.0
    %558 = vmatpush1.msra.mxu0 0.0
    %559 = vmatprep.subr.mxu0 0.0
    %560 = vmatpush1.msra.mxu0 0.0
    %561 = vmatprep.subr.mxu0 0.0
    %562 = vmatpush1.msra.mxu0 0.0
    %563 = vmatprep.subr.mxu0 0.0
    %564 = vmatpush1.msra.mxu0 0.0
    %565 = vmatprep.subr.mxu0 0.0
    %566 = vmatpush1.msra.mxu0 0.0
    %567 = vmatprep.subr.mxu0 0.0
    %568 = vmatpush1.msra.mxu0 0.0
    %569 = vmatprep.subr.mxu0 0.0
    %570 = vmatpush1.msra.mxu0 0.0
    %571 = vmatprep.subr.mxu0 0.0
    %572 = vmatpush1.msra.mxu0 0.0
    %573 = vmatprep.subr.mxu0 0.0
    %574 = vmatpush1.msra.mxu0 0.0
    %575 = vmatprep.subr.mxu0 0.0
    %576 = vmatpush1.msra.mxu0 0.0
    %577 = vmatprep.subr.mxu0 0.0
    %578 = vmatpush1.msra.mxu0 0.0
    %579 = vmatprep.subr.mxu0 0.0
    %580 = vmatpush1.msra.mxu0 0.0
    %581 = vmatprep.subr.mxu0 0.0
    %582 = vmatpush1.msra.mxu0 0.0
    %583 = vmatprep.subr.mxu0 0.0
    %584 = vmatpush1.msra.mxu0 0.0
    %585 = vmatprep.subr.mxu0 0.0
    %586 = vmatpush1.msra.mxu0 0.0
    %587 = vmatprep.subr.mxu0 0.0
    %588 = vmatpush1.msra.mxu0 0.0
    %589 = vmatprep.subr.mxu0 0.0
    %590 = vmatpush1.msra.mxu0 0.0
    %591 = vmatprep.subr.mxu0 0.0
    %592 = vmatpush1.msra.mxu0 0.0
    %593 = vmatprep.subr.mxu0 0.0
    %594 = vmatpush1.msra.mxu0 0.0
    %595 = vmatprep.subr.mxu0 0.0
    %596 = vmatpush1.msra.mxu0 0.0
    %597 = vmatprep.subr.mxu0 0.0
    %598 = vmatpush1.msra.mxu0 0.0
    %599 = vmatprep.subr.mxu0 0.0
    %600 = vmatpush1.msra.mxu0 0.0
    %601 = vmatprep.subr.mxu0 0.0
    %602 = vmatpush1.msra.mxu0 0.0
    %603 = vmatprep.subr.mxu0 0.0
    %604 = vmatpush1.msra.mxu0 0.0
    %605 = vmatprep.subr.mxu0 0.0
    %606 = vmatpush1.msra.mxu0 0.0
    %607 = vmatprep.mubr.f32.mxu0 0.0
    %608 = vmatmul.mubr.f32.gmra.mrb[0].mxu0 %v541
    %v609 = vpop.f32.mrb[0].mxu0
    %v610 = vadd.f32 %v539, %v609
    %v611 = vpop.f32.mrb[0].mxu0
    %612 = vdwg.mxu0
    %v613 = vmax.f32 %v610, 0.0
    %v614 = vsel %vm242, %v613, %v342
    %v616 = vsel %vm244, %v614, 0
    %618 = vmatprep.subr.mxu0 0.0
    %619 = vmatpush1.msra.mxu0 %v121
    %620 = vmatprep.subr.mxu0 0.0
    %621 = vmatpush1.msra.mxu0 %v122
    %622 = vmatprep.subr.mxu0 0.0
    %623 = vmatpush1.msra.mxu0 %v123
    %624 = vmatprep.subr.mxu0 0.0
    %625 = vmatpush1.msra.mxu0 %v124
    %626 = vmatprep.subr.mxu0 0.0
    %627 = vmatpush1.msra.mxu0 %v125
    %628 = vmatprep.subr.mxu0 0.0
    %629 = vmatpush1.msra.mxu0 %v126
    %630 = vmatprep.subr.mxu0 0.0
    %631 = vmatpush1.msra.mxu0 %v127
    %632 = vmatprep.subr.mxu0 0.0
    %633 = vmatpush1.msra.mxu0 %v128
    %634 = vmatprep.subr.mxu0 0.0
    %635 = vmatpush1.msra.mxu0 0.0
    %636 = vmatprep.subr.mxu0 0.0
    %637 = vmatpush1.msra.mxu0 0.0
    %638 = vmatprep.subr.mxu0 0.0
    %639 = vmatpush1.msra.mxu0 0.0
    %640 = vmatprep.subr.mxu0 0.0
    %641 = vmatpush1.msra.mxu0 0.0
    %642 = vmatprep.subr.mxu0 0.0
    %643 = vmatpush1.msra.mxu0 0.0
    %644 = vmatprep.subr.mxu0 0.0
    %645 = vmatpush1.msra.mxu0 0.0
    %646 = vmatprep.subr.mxu0 0.0
    %647 = vmatpush1.msra.mxu0 0.0
    %648 = vmatprep.subr.mxu0 0.0
    %649 = vmatpush1.msra.mxu0 0.0
    %650 = vmatprep.subr.mxu0 0.0
    %651 = vmatpush1.msra.mxu0 0.0
    %652 = vmatprep.subr.mxu0 0.0
    %653 = vmatpush1.msra.mxu0 0.0
    %654 = vmatprep.subr.mxu0 0.0
    %655 = vmatpush1.msra.mxu0 0.0
    %656 = vmatprep.subr.mxu0 0.0
    %657 = vmatpush1.msra.mxu0 0.0
    %658 = vmatprep.subr.mxu0 0.0
    %659 = vmatpush1.msra.mxu0 0.0
    %660 = vmatprep.subr.mxu0 0.0
    %661 = vmatpush1.msra.mxu0 0.0
    %662 = vmatprep.subr.mxu0 0.0
    %663 = vmatpush1.msra.mxu0 0.0
    %664 = vmatprep.subr.mxu0 0.0
    %665 = vmatpush1.msra.mxu0 0.0
    %666 = vmatprep.subr.mxu0 0.0
    %667 = vmatpush1.msra.mxu0 0.0
    %668 = vmatprep.subr.mxu0 0.0
    %669 = vmatpush1.msra.mxu0 0.0
    %670 = vmatprep.subr.mxu0 0.0
    %671 = vmatpush1.msra.mxu0 0.0
    %672 = vmatprep.subr.mxu0 0.0
    %673 = vmatpush1.msra.mxu0 0.0
    %674 = vmatprep.subr.mxu0 0.0
    %675 = vmatpush1.msra.mxu0 0.0
    %676 = vmatprep.subr.mxu0 0.0
    %677 = vmatpush1.msra.mxu0 0.0
    %678 = vmatprep.subr.mxu0 0.0
    %679 = vmatpush1.msra.mxu0 0.0
    %680 = vmatprep.subr.mxu0 0.0
    %681 = vmatpush1.msra.mxu0 0.0
    %682 = vmatprep.mubr.f32.mxu0 0.0
    %683 = vmatmul.mubr.f32.gmra.mrb[0].mxu0 %v616
    %v684 = vpop.f32.mrb[0].mxu0
    %v685 = vadd.f32 %v146, %v684
    %v686 = vpop.f32.mrb[0].mxu0
    %687 = vdwg.mxu0
    %v688 = vxor.u32 %v685, 2147483648
    %v689 = vmul.f32 %v688, 1.442695
    %v690 = vpow.pop %v689
    %v691 = vadd.f32 %v690, 1.0
    %v692 = vrcp.pop %v691
    %v693 = vmul.f32 1.0, %v692
    %695 = vrot.lane.b32.xlu0 %v685, 32
    %v696 = vpop.permute.xlu0 %695
    %v698 = vmul.f32 %v693, %v696
    %700 = vrot.lane.b32.xlu0 %v698, 64
    %v701 = vpop.permute.xlu0 %700
    %v703 = vadd.f32 %v685, %v701
    %v704 = vtanh.pop %v703
    %v705 = vsub.f32 1.0, %v693
    %707 = vrot.lane.b32.xlu0 %v704, 96
    %v708 = vpop.permute.xlu0 %707
    %v710 = vmul.f32 %v705, %v708
    %v711 = vmul.f32 %v693, %v342
    %v712 = vadd.f32 %v710, %v711
    %s713 = scalar_lea.vmem [#allocation7], 8
    %v714 = vld [vmem:[%s713] sm:$0xff]
    %716 = vrot.lane.b32.xlu0 %v712, 96
    %v717 = vpop.permute.xlu0 %716
    %v718 = vsel %vm242, %v717, 0
    %720 = vmatprep.subr.mxu0 0.0
    %721 = vmatpush1.msra.mxu0 %v129
    %722 = vmatprep.subr.mxu0 0.0
    %723 = vmatpush1.msra.mxu0 %v130
    %724 = vmatprep.subr.mxu0 0.0
    %725 = vmatpush1.msra.mxu0 %v131
    %726 = vmatprep.subr.mxu0 0.0
    %727 = vmatpush1.msra.mxu0 %v132
    %728 = vmatprep.subr.mxu0 0.0
    %729 = vmatpush1.msra.mxu0 0.0
    %730 = vmatprep.subr.mxu0 0.0
    %731 = vmatpush1.msra.mxu0 0.0
    %732 = vmatprep.subr.mxu0 0.0
    %733 = vmatpush1.msra.mxu0 0.0
    %734 = vmatprep.subr.mxu0 0.0
    %735 = vmatpush1.msra.mxu0 0.0
    %736 = vmatprep.subr.mxu0 0.0
    %737 = vmatpush1.msra.mxu0 0.0
    %738 = vmatprep.subr.mxu0 0.0
    %739 = vmatpush1.msra.mxu0 0.0
    %740 = vmatprep.subr.mxu0 0.0
    %741 = vmatpush1.msra.mxu0 0.0
    %742 = vmatprep.subr.mxu0 0.0
    %743 = vmatpush1.msra.mxu0 0.0
    %744 = vmatprep.subr.mxu0 0.0
    %745 = vmatpush1.msra.mxu0 0.0
    %746 = vmatprep.subr.mxu0 0.0
    %747 = vmatpush1.msra.mxu0 0.0
    %748 = vmatprep.subr.mxu0 0.0
    %749 = vmatpush1.msra.mxu0 0.0
    %750 = vmatprep.subr.mxu0 0.0
    %751 = vmatpush1.msra.mxu0 0.0
    %752 = vmatprep.subr.mxu0 0.0
    %753 = vmatpush1.msra.mxu0 0.0
    %754 = vmatprep.subr.mxu0 0.0
    %755 = vmatpush1.msra.mxu0 0.0
    %756 = vmatprep.subr.mxu0 0.0
    %757 = vmatpush1.msra.mxu0 0.0
    %758 = vmatprep.subr.mxu0 0.0
    %759 = vmatpush1.msra.mxu0 0.0
    %760 = vmatprep.subr.mxu0 0.0
    %761 = vmatpush1.msra.mxu0 0.0
    %762 = vmatprep.subr.mxu0 0.0
    %763 = vmatpush1.msra.mxu0 0.0
    %764 = vmatprep.subr.mxu0 0.0
    %765 = vmatpush1.msra.mxu0 0.0
    %766 = vmatprep.subr.mxu0 0.0
    %767 = vmatpush1.msra.mxu0 0.0
    %768 = vmatprep.subr.mxu0 0.0
    %769 = vmatpush1.msra.mxu0 0.0
    %770 = vmatprep.subr.mxu0 0.0
    %771 = vmatpush1.msra.mxu0 0.0
    %772 = vmatprep.subr.mxu0 0.0
    %773 = vmatpush1.msra.mxu0 0.0
    %774 = vmatprep.subr.mxu0 0.0
    %775 = vmatpush1.msra.mxu0 0.0
    %776 = vmatprep.subr.mxu0 0.0
    %777 = vmatpush1.msra.mxu0 0.0
    %778 = vmatprep.subr.mxu0 0.0
    %779 = vmatpush1.msra.mxu0 0.0
    %780 = vmatprep.subr.mxu0 0.0
    %781 = vmatpush1.msra.mxu0 0.0
    %782 = vmatprep.subr.mxu0 0.0
    %783 = vmatpush1.msra.mxu0 0.0
    %784 = vmatprep.mubr.f32.mxu0 0.0
    %785 = vmatmul.mubr.f32.gmra.mrb[0].mxu0 %v718
    %v786 = vpop.f32.mrb[0].mxu0
    %v787 = vadd.f32 %v714, %v786
    %v788 = vpop.f32.mrb[0].mxu0
    %789 = vdwg.mxu0
    %v790 = vmax.f32 %v787, 0.0
    %v792 = vsel %vm244, %v790, 0
    %794 = vmatprep.subr.mxu0 0.0
    %795 = vmatpush1.msra.mxu0 %v133
    %796 = vmatprep.subr.mxu0 0.0
    %797 = vmatpush1.msra.mxu0 %v134
    %798 = vmatprep.subr.mxu0 0.0
    %799 = vmatpush1.msra.mxu0 %v135
    %800 = vmatprep.subr.mxu0 0.0
    %801 = vmatpush1.msra.mxu0 %v136
    %802 = vmatprep.subr.mxu0 0.0
    %803 = vmatpush1.msra.mxu0 %v137
    %804 = vmatprep.subr.mxu0 0.0
    %805 = vmatpush1.msra.mxu0 %v138
    %806 = vmatprep.subr.mxu0 0.0
    %807 = vmatpush1.msra.mxu0 %v139
    %808 = vmatprep.subr.mxu0 0.0
    %809 = vmatpush1.msra.mxu0 %v140
    %810 = vmatprep.subr.mxu0 0.0
    %811 = vmatpush1.msra.mxu0 0.0
    %812 = vmatprep.subr.mxu0 0.0
    %813 = vmatpush1.msra.mxu0 0.0
    %814 = vmatprep.subr.mxu0 0.0
    %815 = vmatpush1.msra.mxu0 0.0
    %816 = vmatprep.subr.mxu0 0.0
    %817 = vmatpush1.msra.mxu0 0.0
    %818 = vmatprep.subr.mxu0 0.0
    %819 = vmatpush1.msra.mxu0 0.0
    %820 = vmatprep.subr.mxu0 0.0
    %821 = vmatpush1.msra.mxu0 0.0
    %822 = vmatprep.subr.mxu0 0.0
    %823 = vmatpush1.msra.mxu0 0.0
    %824 = vmatprep.subr.mxu0 0.0
    %825 = vmatpush1.msra.mxu0 0.0
    %826 = vmatprep.subr.mxu0 0.0
    %827 = vmatpush1.msra.mxu0 0.0
    %828 = vmatprep.subr.mxu0 0.0
    %829 = vmatpush1.msra.mxu0 0.0
    %830 = vmatprep.subr.mxu0 0.0
    %831 = vmatpush1.msra.mxu0 0.0
    %832 = vmatprep.subr.mxu0 0.0
    %833 = vmatpush1.msra.mxu0 0.0
    %834 = vmatprep.subr.mxu0 0.0
    %835 = vmatpush1.msra.mxu0 0.0
    %836 = vmatprep.subr.mxu0 0.0
    %837 = vmatpush1.msra.mxu0 0.0
    %838 = vmatprep.subr.mxu0 0.0
    %839 = vmatpush1.msra.mxu0 0.0
    %840 = vmatprep.subr.mxu0 0.0
    %841 = vmatpush1.msra.mxu0 0.0
    %842 = vmatprep.subr.mxu0 0.0
    %843 = vmatpush1.msra.mxu0 0.0
    %844 = vmatprep.subr.mxu0 0.0
    %845 = vmatpush1.msra.mxu0 0.0
    %846 = vmatprep.subr.mxu0 0.0
    %847 = vmatpush1.msra.mxu0 0.0
    %848 = vmatprep.subr.mxu0 0.0
    %849 = vmatpush1.msra.mxu0 0.0
    %850 = vmatprep.subr.mxu0 0.0
    %851 = vmatpush1.msra.mxu0 0.0
    %852 = vmatprep.subr.mxu0 0.0
    %853 = vmatpush1.msra.mxu0 0.0
    %854 = vmatprep.subr.mxu0 0.0
    %855 = vmatpush1.msra.mxu0 0.0
    %856 = vmatprep.subr.mxu0 0.0
    %857 = vmatpush1.msra.mxu0 0.0
    %858 = vmatprep.mubr.f32.mxu0 0.0
    %859 = vmatmul.mubr.f32.gmra.mrb[0].mxu0 %v792
    %v860 = vpop.f32.mrb[0].mxu0
    %v861 = vadd.f32 %v153, %v860
    %v862 = vpop.f32.mrb[0].mxu0
    %863 = vdwg.mxu0
    %v864 = vmax.f32 %v861, 0.0
    %v865 = vand.u32 2147483647, %v861
    %v866 = vsub.f32 0.0, %v865
    %v867 = vmul.f32 %v866, 1.442695
    %v868 = vpow.pop %v867
    %v869 = vadd.f32 %v868, 1.0
    %v870 = vlog2.pop %v869
    %v871 = vmul.f32 %v870, 0.6931472
    %v872 = vmul.f32 -0.5, %v868
    %v873 = vadd.f32 %v872, 1.0
    %v874 = vmul.f32 %v873, %v868
    %v875 = vand.u32 2147483647, %v868
    %vm876 = vcmp.lt.f32.partialorder %v875, 0.0004427343
    %v877 = vsel %vm876, %v874, %v871
    %v878 = vadd.f32 %v864, %v877
    %v879 = vadd.f32 %v878, 0.1
    %v880 = vsel %vm157, %v879, %v861
    %s881 = scalar_lea.vmem [#allocation8], 8
    %v882 = vld [vmem:[%s881] sm:$0xff]
    %884 = vrot.lane.b32.xlu0 %v882, 16
    %v885 = vpop.permute.xlu0 %884
    %v887 = vmul.f32 %v880, %v885
    %889 = vrot.lane.b32.xlu0 %v887, 112
    %v890 = vpop.permute.xlu0 %889
    %v892 = vadd.f32 %v880, %v890
    %s894 = scalar_lea.vmem [#allocation13], 8
    %895 = vst.msk [vmem:[%s894] sm:$0xff] %vm242, %v717
    %897 = vrot.lane.b32.xlu0 %v880, 32
    %v898 = vpop.permute.xlu0 %897
    %900 = vst.msk [vmem:[%s894] sm:$0xff] %vm527, %v898
    %902 = vrot.lane.b32.xlu0 %v892, 64
    %v903 = vpop.permute.xlu0 %902
    %905 = vst.msk [vmem:[%s894] sm:$0xff] %vm533, %v903
    %s906 = scalar_lea.vmem %s2, 16
    %v907 = vld [vmem:[%s906] sm:$0xff]
    %v908 = vmul.f32 %v892, %v907
    %s909 = scalar_lea.vmem [#allocation5], 16
    %v910 = vld [vmem:[%s909] sm:$0xff]
    %v912 = vsel %vm163, %v908, 0
    %914 = vmatprep.subr.mxu0 0.0
    %915 = vmatpush1.msra.mxu0 %v120
    %916 = vmatprep.subr.mxu0 0.0
    %917 = vmatpush1.msra.mxu0 0.0
    %918 = vmatprep.subr.mxu0 0.0
    %919 = vmatpush1.msra.mxu0 0.0
    %920 = vmatprep.subr.mxu0 0.0
    %921 = vmatpush1.msra.mxu0 0.0
    %922 = vmatprep.subr.mxu0 0.0
    %923 = vmatpush1.msra.mxu0 0.0
    %924 = vmatprep.subr.mxu0 0.0
    %925 = vmatpush1.msra.mxu0 0.0
    %926 = vmatprep.subr.mxu0 0.0
    %927 = vmatpush1.msra.mxu0 0.0
    %928 = vmatprep.subr.mxu0 0.0
    %929 = vmatpush1.msra.mxu0 0.0
    %930 = vmatprep.subr.mxu0 0.0
    %931 = vmatpush1.msra.mxu0 0.0
    %932 = vmatprep.subr.mxu0 0.0
    %933 = vmatpush1.msra.mxu0 0.0
    %934 = vmatprep.subr.mxu0 0.0
    %935 = vmatpush1.msra.mxu0 0.0
    %936 = vmatprep.subr.mxu0 0.0
    %937 = vmatpush1.msra.mxu0 0.0
    %938 = vmatprep.subr.mxu0 0.0
    %939 = vmatpush1.msra.mxu0 0.0
    %940 = vmatprep.subr.mxu0 0.0
    %941 = vmatpush1.msra.mxu0 0.0
    %942 = vmatprep.subr.mxu0 0.0
    %943 = vmatpush1.msra.mxu0 0.0
    %944 = vmatprep.subr.mxu0 0.0
    %945 = vmatpush1.msra.mxu0 0.0
    %946 = vmatprep.subr.mxu0 0.0
    %947 = vmatpush1.msra.mxu0 0.0
    %948 = vmatprep.subr.mxu0 0.0
    %949 = vmatpush1.msra.mxu0 0.0
    %950 = vmatprep.subr.mxu0 0.0
    %951 = vmatpush1.msra.mxu0 0.0
    %952 = vmatprep.subr.mxu0 0.0
    %953 = vmatpush1.msra.mxu0 0.0
    %954 = vmatprep.subr.mxu0 0.0
    %955 = vmatpush1.msra.mxu0 0.0
    %956 = vmatprep.subr.mxu0 0.0
    %957 = vmatpush1.msra.mxu0 0.0
    %958 = vmatprep.subr.mxu0 0.0
    %959 = vmatpush1.msra.mxu0 0.0
    %960 = vmatprep.subr.mxu0 0.0
    %961 = vmatpush1.msra.mxu0 0.0
    %962 = vmatprep.subr.mxu0 0.0
    %963 = vmatpush1.msra.mxu0 0.0
    %964 = vmatprep.subr.mxu0 0.0
    %965 = vmatpush1.msra.mxu0 0.0
    %966 = vmatprep.subr.mxu0 0.0
    %967 = vmatpush1.msra.mxu0 0.0
    %968 = vmatprep.subr.mxu0 0.0
    %969 = vmatpush1.msra.mxu0 0.0
    %970 = vmatprep.subr.mxu0 0.0
    %971 = vmatpush1.msra.mxu0 0.0
    %972 = vmatprep.subr.mxu0 0.0
    %973 = vmatpush1.msra.mxu0 0.0
    %974 = vmatprep.subr.mxu0 0.0
    %975 = vmatpush1.msra.mxu0 0.0
    %976 = vmatprep.subr.mxu0 0.0
    %977 = vmatpush1.msra.mxu0 0.0
    %978 = vmatprep.mubr.f32.mxu0 0.0
    %979 = vmatmul.mubr.f32.gmra.mrb[0].mxu0 %v912
    %v980 = vpop.f32.mrb[0].mxu0
    %v981 = vadd.f32 %v910, %v980
    %v982 = vpop.f32.mrb[0].mxu0
    %983 = vdwg.mxu0
    %v984 = vmax.f32 %v981, 0.0
    %v985 = vsel %vm242, %v984, %v712
    %v987 = vsel %vm244, %v985, 0
    %989 = vmatprep.subr.mxu0 0.0
    %990 = vmatpush1.msra.mxu0 %v121
    %991 = vmatprep.subr.mxu0 0.0
    %992 = vmatpush1.msra.mxu0 %v122
    %993 = vmatprep.subr.mxu0 0.0
    %994 = vmatpush1.msra.mxu0 %v123
    %995 = vmatprep.subr.mxu0 0.0
    %996 = vmatpush1.msra.mxu0 %v124
    %997 = vmatprep.subr.mxu0 0.0
    %998 = vmatpush1.msra.mxu0 %v125
    %999 = vmatprep.subr.mxu0 0.0
    %1000 = vmatpush1.msra.mxu0 %v126
    %1001 = vmatprep.subr.mxu0 0.0
    %1002 = vmatpush1.msra.mxu0 %v127
    %1003 = vmatprep.subr.mxu0 0.0
    %1004 = vmatpush1.msra.mxu0 %v128
    %1005 = vmatprep.subr.mxu0 0.0
    %1006 = vmatpush1.msra.mxu0 0.0
    %1007 = vmatprep.subr.mxu0 0.0
    %1008 = vmatpush1.msra.mxu0 0.0
    %1009 = vmatprep.subr.mxu0 0.0
    %1010 = vmatpush1.msra.mxu0 0.0
    %1011 = vmatprep.subr.mxu0 0.0
    %1012 = vmatpush1.msra.mxu0 0.0
    %1013 = vmatprep.subr.mxu0 0.0
    %1014 = vmatpush1.msra.mxu0 0.0
    %1015 = vmatprep.subr.mxu0 0.0
    %1016 = vmatpush1.msra.mxu0 0.0
    %1017 = vmatprep.subr.mxu0 0.0
    %1018 = vmatpush1.msra.mxu0 0.0
    %1019 = vmatprep.subr.mxu0 0.0
    %1020 = vmatpush1.msra.mxu0 0.0
    %1021 = vmatprep.subr.mxu0 0.0
    %1022 = vmatpush1.msra.mxu0 0.0
    %1023 = vmatprep.subr.mxu0 0.0
    %1024 = vmatpush1.msra.mxu0 0.0
    %1025 = vmatprep.subr.mxu0 0.0
    %1026 = vmatpush1.msra.mxu0 0.0
    %1027 = vmatprep.subr.mxu0 0.0
    %1028 = vmatpush1.msra.mxu0 0.0
    %1029 = vmatprep.subr.mxu0 0.0
    %1030 = vmatpush1.msra.mxu0 0.0
    %1031 = vmatprep.subr.mxu0 0.0
    %1032 = vmatpush1.msra.mxu0 0.0
    %1033 = vmatprep.subr.mxu0 0.0
    %1034 = vmatpush1.msra.mxu0 0.0
    %1035 = vmatprep.subr.mxu0 0.0
    %1036 = vmatpush1.msra.mxu0 0.0
    %1037 = vmatprep.subr.mxu0 0.0
    %1038 = vmatpush1.msra.mxu0 0.0
    %1039 = vmatprep.subr.mxu0 0.0
    %1040 = vmatpush1.msra.mxu0 0.0
    %1041 = vmatprep.subr.mxu0 0.0
    %1042 = vmatpush1.msra.mxu0 0.0
    %1043 = vmatprep.subr.mxu0 0.0
    %1044 = vmatpush1.msra.mxu0 0.0
    %1045 = vmatprep.subr.mxu0 0.0
    %1046 = vmatpush1.msra.mxu0 0.0
    %1047 = vmatprep.subr.mxu0 0.0
    %1048 = vmatpush1.msra.mxu0 0.0
    %1049 = vmatprep.subr.mxu0 0.0
    %1050 = vmatpush1.msra.mxu0 0.0
    %1051 = vmatprep.subr.mxu0 0.0
    %1052 = vmatpush1.msra.mxu0 0.0
    %1053 = vmatprep.mubr.f32.mxu0 0.0
    %1054 = vmatmul.mubr.f32.gmra.mrb[0].mxu0 %v987
    %v1055 = vpop.f32.mrb[0].mxu0
    %v1056 = vadd.f32 %v146, %v1055
    %v1057 = vpop.f32.mrb[0].mxu0
    %1058 = vdwg.mxu0
    %v1059 = vxor.u32 %v1056, 2147483648
    %v1060 = vmul.f32 %v1059, 1.442695
    %v1061 = vpow.pop %v1060
    %v1062 = vadd.f32 %v1061, 1.0
    %v1063 = vrcp.pop %v1062
    %v1064 = vmul.f32 1.0, %v1063
    %1066 = vrot.lane.b32.xlu0 %v1056, 32
    %v1067 = vpop.permute.xlu0 %1066
    %v1069 = vmul.f32 %v1064, %v1067
    %1071 = vrot.lane.b32.xlu0 %v1069, 64
    %v1072 = vpop.permute.xlu0 %1071
    %v1074 = vadd.f32 %v1056, %v1072
    %v1075 = vtanh.pop %v1074
    %v1076 = vsub.f32 1.0, %v1064
    %1078 = vrot.lane.b32.xlu0 %v1075, 96
    %v1079 = vpop.permute.xlu0 %1078
    %v1081 = vmul.f32 %v1076, %v1079
    %v1082 = vmul.f32 %v1064, %v712
    %v1083 = vadd.f32 %v1081, %v1082
    %s1084 = scalar_lea.vmem [#allocation7], 16
    %v1085 = vld [vmem:[%s1084] sm:$0xff]
    %1087 = vrot.lane.b32.xlu0 %v1083, 96
    %v1088 = vpop.permute.xlu0 %1087
    %v1089 = vsel %vm242, %v1088, 0
    %1091 = vmatprep.subr.mxu0 0.0
    %1092 = vmatpush1.msra.mxu0 %v129
    %1093 = vmatprep.subr.mxu0 0.0
    %1094 = vmatpush1.msra.mxu0 %v130
    %1095 = vmatprep.subr.mxu0 0.0
    %1096 = vmatpush1.msra.mxu0 %v131
    %1097 = vmatprep.subr.mxu0 0.0
    %1098 = vmatpush1.msra.mxu0 %v132
    %1099 = vmatprep.subr.mxu0 0.0
    %1100 = vmatpush1.msra.mxu0 0.0
    %1101 = vmatprep.subr.mxu0 0.0
    %1102 = vmatpush1.msra.mxu0 0.0
    %1103 = vmatprep.subr.mxu0 0.0
    %1104 = vmatpush1.msra.mxu0 0.0
    %1105 = vmatprep.subr.mxu0 0.0
    %1106 = vmatpush1.msra.mxu0 0.0
    %1107 = vmatprep.subr.mxu0 0.0
    %1108 = vmatpush1.msra.mxu0 0.0
    %1109 = vmatprep.subr.mxu0 0.0
    %1110 = vmatpush1.msra.mxu0 0.0
    %1111 = vmatprep.subr.mxu0 0.0
    %1112 = vmatpush1.msra.mxu0 0.0
    %1113 = vmatprep.subr.mxu0 0.0
    %1114 = vmatpush1.msra.mxu0 0.0
    %1115 = vmatprep.subr.mxu0 0.0
    %1116 = vmatpush1.msra.mxu0 0.0
    %1117 = vmatprep.subr.mxu0 0.0
    %1118 = vmatpush1.msra.mxu0 0.0
    %1119 = vmatprep.subr.mxu0 0.0
    %1120 = vmatpush1.msra.mxu0 0.0
    %1121 = vmatprep.subr.mxu0 0.0
    %1122 = vmatpush1.msra.mxu0 0.0
    %1123 = vmatprep.subr.mxu0 0.0
    %1124 = vmatpush1.msra.mxu0 0.0
    %1125 = vmatprep.subr.mxu0 0.0
    %1126 = vmatpush1.msra.mxu0 0.0
    %1127 = vmatprep.subr.mxu0 0.0
    %1128 = vmatpush1.msra.mxu0 0.0
    %1129 = vmatprep.subr.mxu0 0.0
    %1130 = vmatpush1.msra.mxu0 0.0
    %1131 = vmatprep.subr.mxu0 0.0
    %1132 = vmatpush1.msra.mxu0 0.0
    %1133 = vmatprep.subr.mxu0 0.0
    %1134 = vmatpush1.msra.mxu0 0.0
    %1135 = vmatprep.subr.mxu0 0.0
    %1136 = vmatpush1.msra.mxu0 0.0
    %1137 = vmatprep.subr.mxu0 0.0
    %1138 = vmatpush1.msra.mxu0 0.0
    %1139 = vmatprep.subr.mxu0 0.0
    %1140 = vmatpush1.msra.mxu0 0.0
    %1141 = vmatprep.subr.mxu0 0.0
    %1142 = vmatpush1.msra.mxu0 0.0
    %1143 = vmatprep.subr.mxu0 0.0
    %1144 = vmatpush1.msra.mxu0 0.0
    %1145 = vmatprep.subr.mxu0 0.0
    %1146 = vmatpush1.msra.mxu0 0.0
    %1147 = vmatprep.subr.mxu0 0.0
    %1148 = vmatpush1.msra.mxu0 0.0
    %1149 = vmatprep.subr.mxu0 0.0
    %1150 = vmatpush1.msra.mxu0 0.0
    %1151 = vmatprep.subr.mxu0 0.0
    %1152 = vmatpush1.msra.mxu0 0.0
    %1153 = vmatprep.subr.mxu0 0.0
    %1154 = vmatpush1.msra.mxu0 0.0
    %1155 = vmatprep.mubr.f32.mxu0 0.0
    %1156 = vmatmul.mubr.f32.gmra.mrb[0].mxu0 %v1089
    %v1157 = vpop.f32.mrb[0].mxu0
    %v1158 = vadd.f32 %v1085, %v1157
    %v1159 = vpop.f32.mrb[0].mxu0
    %1160 = vdwg.mxu0
    %v1161 = vmax.f32 %v1158, 0.0
    %v1163 = vsel %vm244, %v1161, 0
    %1165 = vmatprep.subr.mxu0 0.0
    %1166 = vmatpush1.msra.mxu0 %v133
    %1167 = vmatprep.subr.mxu0 0.0
    %1168 = vmatpush1.msra.mxu0 %v134
    %1169 = vmatprep.subr.mxu0 0.0
    %1170 = vmatpush1.msra.mxu0 %v135
    %1171 = vmatprep.subr.mxu0 0.0
    %1172 = vmatpush1.msra.mxu0 %v136
    %1173 = vmatprep.subr.mxu0 0.0
    %1174 = vmatpush1.msra.mxu0 %v137
    %1175 = vmatprep.subr.mxu0 0.0
    %1176 = vmatpush1.msra.mxu0 %v138
    %1177 = vmatprep.subr.mxu0 0.0
    %1178 = vmatpush1.msra.mxu0 %v139
    %1179 = vmatprep.subr.mxu0 0.0
    %1180 = vmatpush1.msra.mxu0 %v140
    %1181 = vmatprep.subr.mxu0 0.0
    %1182 = vmatpush1.msra.mxu0 0.0
    %1183 = vmatprep.subr.mxu0 0.0
    %1184 = vmatpush1.msra.mxu0 0.0
    %1185 = vmatprep.subr.mxu0 0.0
    %1186 = vmatpush1.msra.mxu0 0.0
    %1187 = vmatprep.subr.mxu0 0.0
    %1188 = vmatpush1.msra.mxu0 0.0
    %1189 = vmatprep.subr.mxu0 0.0
    %1190 = vmatpush1.msra.mxu0 0.0
    %1191 = vmatprep.subr.mxu0 0.0
    %1192 = vmatpush1.msra.mxu0 0.0
    %1193 = vmatprep.subr.mxu0 0.0
    %1194 = vmatpush1.msra.mxu0 0.0
    %1195 = vmatprep.subr.mxu0 0.0
    %1196 = vmatpush1.msra.mxu0 0.0
    %1197 = vmatprep.subr.mxu0 0.0
    %1198 = vmatpush1.msra.mxu0 0.0
    %1199 = vmatprep.subr.mxu0 0.0
    %1200 = vmatpush1.msra.mxu0 0.0
    %1201 = vmatprep.subr.mxu0 0.0
    %1202 = vmatpush1.msra.mxu0 0.0
    %1203 = vmatprep.subr.mxu0 0.0
    %1204 = vmatpush1.msra.mxu0 0.0
    %1205 = vmatprep.subr.mxu0 0.0
    %1206 = vmatpush1.msra.mxu0 0.0
    %1207 = vmatprep.subr.mxu0 0.0
    %1208 = vmatpush1.msra.mxu0 0.0
    %1209 = vmatprep.subr.mxu0 0.0
    %1210 = vmatpush1.msra.mxu0 0.0
    %1211 = vmatprep.subr.mxu0 0.0
    %1212 = vmatpush1.msra.mxu0 0.0
    %1213 = vmatprep.subr.mxu0 0.0
    %1214 = vmatpush1.msra.mxu0 0.0
    %1215 = vmatprep.subr.mxu0 0.0
    %1216 = vmatpush1.msra.mxu0 0.0
    %1217 = vmatprep.subr.mxu0 0.0
    %1218 = vmatpush1.msra.mxu0 0.0
    %1219 = vmatprep.subr.mxu0 0.0
    %1220 = vmatpush1.msra.mxu0 0.0
    %1221 = vmatprep.subr.mxu0 0.0
    %1222 = vmatpush1.msra.mxu0 0.0
    %1223 = vmatprep.subr.mxu0 0.0
    %1224 = vmatpush1.msra.mxu0 0.0
    %1225 = vmatprep.subr.mxu0 0.0
    %1226 = vmatpush1.msra.mxu0 0.0
    %1227 = vmatprep.subr.mxu0 0.0
    %1228 = vmatpush1.msra.mxu0 0.0
    %1229 = vmatprep.mubr.f32.mxu0 0.0
    %1230 = vmatmul.mubr.f32.gmra.mrb[0].mxu0 %v1163
    %v1231 = vpop.f32.mrb[0].mxu0
    %v1232 = vadd.f32 %v153, %v1231
    %v1233 = vpop.f32.mrb[0].mxu0
    %1234 = vdwg.mxu0
    %v1235 = vmax.f32 %v1232, 0.0
    %v1236 = vand.u32 2147483647, %v1232
    %v1237 = vsub.f32 0.0, %v1236
    %v1238 = vmul.f32 %v1237, 1.442695
    %v1239 = vpow.pop %v1238
    %v1240 = vadd.f32 %v1239, 1.0
    %v1241 = vlog2.pop %v1240
    %v1242 = vmul.f32 %v1241, 0.6931472
    %v1243 = vmul.f32 -0.5, %v1239
    %v1244 = vadd.f32 %v1243, 1.0
    %v1245 = vmul.f32 %v1244, %v1239
    %v1246 = vand.u32 2147483647, %v1239
    %vm1247 = vcmp.lt.f32.partialorder %v1246, 0.0004427343
    %v1248 = vsel %vm1247, %v1245, %v1242
    %v1249 = vadd.f32 %v1235, %v1248
    %v1250 = vadd.f32 %v1249, 0.1
    %v1251 = vsel %vm157, %v1250, %v1232
    %s1252 = scalar_lea.vmem [#allocation8], 16
    %v1253 = vld [vmem:[%s1252] sm:$0xff]
    %1255 = vrot.lane.b32.xlu0 %v1253, 16
    %v1256 = vpop.permute.xlu0 %1255
    %v1258 = vmul.f32 %v1251, %v1256
    %1260 = vrot.lane.b32.xlu0 %v1258, 112
    %v1261 = vpop.permute.xlu0 %1260
    %v1263 = vadd.f32 %v1251, %v1261
    %s1265 = scalar_lea.vmem [#allocation13], 16
    %1266 = vst.msk [vmem:[%s1265] sm:$0xff] %vm242, %v1088
    %1268 = vrot.lane.b32.xlu0 %v1251, 32
    %v1269 = vpop.permute.xlu0 %1268
    %1271 = vst.msk [vmem:[%s1265] sm:$0xff] %vm527, %v1269
    %1273 = vrot.lane.b32.xlu0 %v1263, 64
    %v1274 = vpop.permute.xlu0 %1273
    %1276 = vst.msk [vmem:[%s1265] sm:$0xff] %vm533, %v1274
    %s1277 = scalar_lea.vmem %s2, 24
    %v1278 = vld [vmem:[%s1277] sm:$0xff]
    %v1279 = vmul.f32 %v1263, %v1278
    %s1280 = scalar_lea.vmem [#allocation5], 24
    %v1281 = vld [vmem:[%s1280] sm:$0xff]
    %v1283 = vsel %vm163, %v1279, 0
    %1285 = vmatprep.subr.mxu0 0.0
    %1286 = vmatpush1.msra.mxu0 %v120
    %1287 = vmatprep.subr.mxu0 0.0
    %1288 = vmatpush1.msra.mxu0 0.0
    %1289 = vmatprep.subr.mxu0 0.0
    %1290 = vmatpush1.msra.mxu0 0.0
    %1291 = vmatprep.subr.mxu0 0.0
    %1292 = vmatpush1.msra.mxu0 0.0
    %1293 = vmatprep.subr.mxu0 0.0
    %1294 = vmatpush1.msra.mxu0 0.0
    %1295 = vmatprep.subr.mxu0 0.0
    %1296 = vmatpush1.msra.mxu0 0.0
    %1297 = vmatprep.subr.mxu0 0.0
    %1298 = vmatpush1.msra.mxu0 0.0
    %1299 = vmatprep.subr.mxu0 0.0
    %1300 = vmatpush1.msra.mxu0 0.0
    %1301 = vmatprep.subr.mxu0 0.0
    %1302 = vmatpush1.msra.mxu0 0.0
    %1303 = vmatprep.subr.mxu0 0.0
    %1304 = vmatpush1.msra.mxu0 0.0
    %1305 = vmatprep.subr.mxu0 0.0
    %1306 = vmatpush1.msra.mxu0 0.0
    %1307 = vmatprep.subr.mxu0 0.0
    %1308 = vmatpush1.msra.mxu0 0.0
    %1309 = vmatprep.subr.mxu0 0.0
    %1310 = vmatpush1.msra.mxu0 0.0
    %1311 = vmatprep.subr.mxu0 0.0
    %1312 = vmatpush1.msra.mxu0 0.0
    %1313 = vmatprep.subr.mxu0 0.0
    %1314 = vmatpush1.msra.mxu0 0.0
    %1315 = vmatprep.subr.mxu0 0.0
    %1316 = vmatpush1.msra.mxu0 0.0
    %1317 = vmatprep.subr.mxu0 0.0
    %1318 = vmatpush1.msra.mxu0 0.0
    %1319 = vmatprep.subr.mxu0 0.0
    %1320 = vmatpush1.msra.mxu0 0.0
    %1321 = vmatprep.subr.mxu0 0.0
    %1322 = vmatpush1.msra.mxu0 0.0
    %1323 = vmatprep.subr.mxu0 0.0
    %1324 = vmatpush1.msra.mxu0 0.0
    %1325 = vmatprep.subr.mxu0 0.0
    %1326 = vmatpush1.msra.mxu0 0.0
    %1327 = vmatprep.subr.mxu0 0.0
    %1328 = vmatpush1.msra.mxu0 0.0
    %1329 = vmatprep.subr.mxu0 0.0
    %1330 = vmatpush1.msra.mxu0 0.0
    %1331 = vmatprep.subr.mxu0 0.0
    %1332 = vmatpush1.msra.mxu0 0.0
    %1333 = vmatprep.subr.mxu0 0.0
    %1334 = vmatpush1.msra.mxu0 0.0
    %1335 = vmatprep.subr.mxu0 0.0
    %1336 = vmatpush1.msra.mxu0 0.0
    %1337 = vmatprep.subr.mxu0 0.0
    %1338 = vmatpush1.msra.mxu0 0.0
    %1339 = vmatprep.subr.mxu0 0.0
    %1340 = vmatpush1.msra.mxu0 0.0
    %1341 = vmatprep.subr.mxu0 0.0
    %1342 = vmatpush1.msra.mxu0 0.0
    %1343 = vmatprep.subr.mxu0 0.0
    %1344 = vmatpush1.msra.mxu0 0.0
    %1345 = vmatprep.subr.mxu0 0.0
    %1346 = vmatpush1.msra.mxu0 0.0
    %1347 = vmatprep.subr.mxu0 0.0
    %1348 = vmatpush1.msra.mxu0 0.0
    %1349 = vmatprep.mubr.f32.mxu0 0.0
    %1350 = vmatmul.mubr.f32.gmra.mrb[0].mxu0 %v1283
    %v1351 = vpop.f32.mrb[0].mxu0
    %v1352 = vadd.f32 %v1281, %v1351
    %v1353 = vpop.f32.mrb[0].mxu0
    %1354 = vdwg.mxu0
    %v1355 = vmax.f32 %v1352, 0.0
    %v1356 = vsel %vm242, %v1355, %v1083
    %v1358 = vsel %vm244, %v1356, 0
    %1360 = vmatprep.subr.mxu0 0.0
    %1361 = vmatpush1.msra.mxu0 %v121
    %1362 = vmatprep.subr.mxu0 0.0
    %1363 = vmatpush1.msra.mxu0 %v122
    %1364 = vmatprep.subr.mxu0 0.0
    %1365 = vmatpush1.msra.mxu0 %v123
    %1366 = vmatprep.subr.mxu0 0.0
    %1367 = vmatpush1.msra.mxu0 %v124
    %1368 = vmatprep.subr.mxu0 0.0
    %1369 = vmatpush1.msra.mxu0 %v125
    %1370 = vmatprep.subr.mxu0 0.0
    %1371 = vmatpush1.msra.mxu0 %v126
    %1372 = vmatprep.subr.mxu0 0.0
    %1373 = vmatpush1.msra.mxu0 %v127
    %1374 = vmatprep.subr.mxu0 0.0
    %1375 = vmatpush1.msra.mxu0 %v128
    %1376 = vmatprep.subr.mxu0 0.0
    %1377 = vmatpush1.msra.mxu0 0.0
    %1378 = vmatprep.subr.mxu0 0.0
    %1379 = vmatpush1.msra.mxu0 0.0
    %1380 = vmatprep.subr.mxu0 0.0
    %1381 = vmatpush1.msra.mxu0 0.0
    %1382 = vmatprep.subr.mxu0 0.0
    %1383 = vmatpush1.msra.mxu0 0.0
    %1384 = vmatprep.subr.mxu0 0.0
    %1385 = vmatpush1.msra.mxu0 0.0
    %1386 = vmatprep.subr.mxu0 0.0
    %1387 = vmatpush1.msra.mxu0 0.0
    %1388 = vmatprep.subr.mxu0 0.0
    %1389 = vmatpush1.msra.mxu0 0.0
    %1390 = vmatprep.subr.mxu0 0.0
    %1391 = vmatpush1.msra.mxu0 0.0
    %1392 = vmatprep.subr.mxu0 0.0
    %1393 = vmatpush1.msra.mxu0 0.0
    %1394 = vmatprep.subr.mxu0 0.0
    %1395 = vmatpush1.msra.mxu0 0.0
    %1396 = vmatprep.subr.mxu0 0.0
    %1397 = vmatpush1.msra.mxu0 0.0
    %1398 = vmatprep.subr.mxu0 0.0
    %1399 = vmatpush1.msra.mxu0 0.0
    %1400 = vmatprep.subr.mxu0 0.0
    %1401 = vmatpush1.msra.mxu0 0.0
    %1402 = vmatprep.subr.mxu0 0.0
    %1403 = vmatpush1.msra.mxu0 0.0
    %1404 = vmatprep.subr.mxu0 0.0
    %1405 = vmatpush1.msra.mxu0 0.0
    %1406 = vmatprep.subr.mxu0 0.0
    %1407 = vmatpush1.msra.mxu0 0.0
    %1408 = vmatprep.subr.mxu0 0.0
    %1409 = vmatpush1.msra.mxu0 0.0
    %1410 = vmatprep.subr.mxu0 0.0
    %1411 = vmatpush1.msra.mxu0 0.0
    %1412 = vmatprep.subr.mxu0 0.0
    %1413 = vmatpush1.msra.mxu0 0.0
    %1414 = vmatprep.subr.mxu0 0.0
    %1415 = vmatpush1.msra.mxu0 0.0
    %1416 = vmatprep.subr.mxu0 0.0
    %1417 = vmatpush1.msra.mxu0 0.0
    %1418 = vmatprep.subr.mxu0 0.0
    %1419 = vmatpush1.msra.mxu0 0.0
    %1420 = vmatprep.subr.mxu0 0.0
    %1421 = vmatpush1.msra.mxu0 0.0
    %1422 = vmatprep.subr.mxu0 0.0
    %1423 = vmatpush1.msra.mxu0 0.0
    %1424 = vmatprep.mubr.f32.mxu0 0.0
    %1425 = vmatmul.mubr.f32.gmra.mrb[0].mxu0 %v1358
    %v1426 = vpop.f32.mrb[0].mxu0
    %v1427 = vadd.f32 %v146, %v1426
    %v1428 = vpop.f32.mrb[0].mxu0
    %1429 = vdwg.mxu0
    %v1430 = vxor.u32 %v1427, 2147483648
    %v1431 = vmul.f32 %v1430, 1.442695
    %v1432 = vpow.pop %v1431
    %v1433 = vadd.f32 %v1432, 1.0
    %v1434 = vrcp.pop %v1433
    %v1435 = vmul.f32 1.0, %v1434
    %1437 = vrot.lane.b32.xlu0 %v1427, 32
    %v1438 = vpop.permute.xlu0 %1437
    %v1440 = vmul.f32 %v1435, %v1438
    %1442 = vrot.lane.b32.xlu0 %v1440, 64
    %v1443 = vpop.permute.xlu0 %1442
    %v1445 = vadd.f32 %v1427, %v1443
    %v1446 = vtanh.pop %v1445
    %v1447 = vsub.f32 1.0, %v1435
    %1449 = vrot.lane.b32.xlu0 %v1446, 96
    %v1450 = vpop.permute.xlu0 %1449
    %v1452 = vmul.f32 %v1447, %v1450
    %v1453 = vmul.f32 %v1435, %v1083
    %v1454 = vadd.f32 %v1452, %v1453
    %s1455 = scalar_lea.vmem [#allocation7], 24
    %v1456 = vld [vmem:[%s1455] sm:$0xff]
    %1458 = vrot.lane.b32.xlu0 %v1454, 96
    %v1459 = vpop.permute.xlu0 %1458
    %v1460 = vsel %vm242, %v1459, 0
    %1462 = vmatprep.subr.mxu0 0.0
    %1463 = vmatpush1.msra.mxu0 %v129
    %1464 = vmatprep.subr.mxu0 0.0
    %1465 = vmatpush1.msra.mxu0 %v130
    %1466 = vmatprep.subr.mxu0 0.0
    %1467 = vmatpush1.msra.mxu0 %v131
    %1468 = vmatprep.subr.mxu0 0.0
    %1469 = vmatpush1.msra.mxu0 %v132
    %1470 = vmatprep.subr.mxu0 0.0
    %1471 = vmatpush1.msra.mxu0 0.0
    %1472 = vmatprep.subr.mxu0 0.0
    %1473 = vmatpush1.msra.mxu0 0.0
    %1474 = vmatprep.subr.mxu0 0.0
    %1475 = vmatpush1.msra.mxu0 0.0
    %1476 = vmatprep.subr.mxu0 0.0
    %1477 = vmatpush1.msra.mxu0 0.0
    %1478 = vmatprep.subr.mxu0 0.0
    %1479 = vmatpush1.msra.mxu0 0.0
    %1480 = vmatprep.subr.mxu0 0.0
    %1481 = vmatpush1.msra.mxu0 0.0
    %1482 = vmatprep.subr.mxu0 0.0
    %1483 = vmatpush1.msra.mxu0 0.0
    %1484 = vmatprep.subr.mxu0 0.0
    %1485 = vmatpush1.msra.mxu0 0.0
    %1486 = vmatprep.subr.mxu0 0.0
    %1487 = vmatpush1.msra.mxu0 0.0
    %1488 = vmatprep.subr.mxu0 0.0
    %1489 = vmatpush1.msra.mxu0 0.0
    %1490 = vmatprep.subr.mxu0 0.0
    %1491 = vmatpush1.msra.mxu0 0.0
    %1492 = vmatprep.subr.mxu0 0.0
    %1493 = vmatpush1.msra.mxu0 0.0
    %1494 = vmatprep.subr.mxu0 0.0
    %1495 = vmatpush1.msra.mxu0 0.0
    %1496 = vmatprep.subr.mxu0 0.0
    %1497 = vmatpush1.msra.mxu0 0.0
    %1498 = vmatprep.subr.mxu0 0.0
    %1499 = vmatpush1.msra.mxu0 0.0
    %1500 = vmatprep.subr.mxu0 0.0
    %1501 = vmatpush1.msra.mxu0 0.0
    %1502 = vmatprep.subr.mxu0 0.0
    %1503 = vmatpush1.msra.mxu0 0.0
    %1504 = vmatprep.subr.mxu0 0.0
    %1505 = vmatpush1.msra.mxu0 0.0
    %1506 = vmatprep.subr.mxu0 0.0
    %1507 = vmatpush1.msra.mxu0 0.0
    %1508 = vmatprep.subr.mxu0 0.0
    %1509 = vmatpush1.msra.mxu0 0.0
    %1510 = vmatprep.subr.mxu0 0.0
    %1511 = vmatpush1.msra.mxu0 0.0
    %1512 = vmatprep.subr.mxu0 0.0
    %1513 = vmatpush1.msra.mxu0 0.0
    %1514 = vmatprep.subr.mxu0 0.0
    %1515 = vmatpush1.msra.mxu0 0.0
    %1516 = vmatprep.subr.mxu0 0.0
    %1517 = vmatpush1.msra.mxu0 0.0
    %1518 = vmatprep.subr.mxu0 0.0
    %1519 = vmatpush1.msra.mxu0 0.0
    %1520 = vmatprep.subr.mxu0 0.0
    %1521 = vmatpush1.msra.mxu0 0.0
    %1522 = vmatprep.subr.mxu0 0.0
    %1523 = vmatpush1.msra.mxu0 0.0
    %1524 = vmatprep.subr.mxu0 0.0
    %1525 = vmatpush1.msra.mxu0 0.0
    %1526 = vmatprep.mubr.f32.mxu0 0.0
    %1527 = vmatmul.mubr.f32.gmra.mrb[0].mxu0 %v1460
    %v1528 = vpop.f32.mrb[0].mxu0
    %v1529 = vadd.f32 %v1456, %v1528
    %v1530 = vpop.f32.mrb[0].mxu0
    %1531 = vdwg.mxu0
    %v1532 = vmax.f32 %v1529, 0.0
    %v1534 = vsel %vm244, %v1532, 0
    %1536 = vmatprep.subr.mxu0 0.0
    %1537 = vmatpush1.msra.mxu0 %v133
    %1538 = vmatprep.subr.mxu0 0.0
    %1539 = vmatpush1.msra.mxu0 %v134
    %1540 = vmatprep.subr.mxu0 0.0
    %1541 = vmatpush1.msra.mxu0 %v135
    %1542 = vmatprep.subr.mxu0 0.0
    %1543 = vmatpush1.msra.mxu0 %v136
    %1544 = vmatprep.subr.mxu0 0.0
    %1545 = vmatpush1.msra.mxu0 %v137
    %1546 = vmatprep.subr.mxu0 0.0
    %1547 = vmatpush1.msra.mxu0 %v138
    %1548 = vmatprep.subr.mxu0 0.0
    %1549 = vmatpush1.msra.mxu0 %v139
    %1550 = vmatprep.subr.mxu0 0.0
    %1551 = vmatpush1.msra.mxu0 %v140
    %1552 = vmatprep.subr.mxu0 0.0
    %1553 = vmatpush1.msra.mxu0 0.0
    %1554 = vmatprep.subr.mxu0 0.0
    %1555 = vmatpush1.msra.mxu0 0.0
    %1556 = vmatprep.subr.mxu0 0.0
    %1557 = vmatpush1.msra.mxu0 0.0
    %1558 = vmatprep.subr.mxu0 0.0
    %1559 = vmatpush1.msra.mxu0 0.0
    %1560 = vmatprep.subr.mxu0 0.0
    %1561 = vmatpush1.msra.mxu0 0.0
    %1562 = vmatprep.subr.mxu0 0.0
    %1563 = vmatpush1.msra.mxu0 0.0
    %1564 = vmatprep.subr.mxu0 0.0
    %1565 = vmatpush1.msra.mxu0 0.0
    %1566 = vmatprep.subr.mxu0 0.0
    %1567 = vmatpush1.msra.mxu0 0.0
    %1568 = vmatprep.subr.mxu0 0.0
    %1569 = vmatpush1.msra.mxu0 0.0
    %1570 = vmatprep.subr.mxu0 0.0
    %1571 = vmatpush1.msra.mxu0 0.0
    %1572 = vmatprep.subr.mxu0 0.0
    %1573 = vmatpush1.msra.mxu0 0.0
    %1574 = vmatprep.subr.mxu0 0.0
    %1575 = vmatpush1.msra.mxu0 0.0
    %1576 = vmatprep.subr.mxu0 0.0
    %1577 = vmatpush1.msra.mxu0 0.0
    %1578 = vmatprep.subr.mxu0 0.0
    %1579 = vmatpush1.msra.mxu0 0.0
    %1580 = vmatprep.subr.mxu0 0.0
    %1581 = vmatpush1.msra.mxu0 0.0
    %1582 = vmatprep.subr.mxu0 0.0
    %1583 = vmatpush1.msra.mxu0 0.0
    %1584 = vmatprep.subr.mxu0 0.0
    %1585 = vmatpush1.msra.mxu0 0.0
    %1586 = vmatprep.subr.mxu0 0.0
    %1587 = vmatpush1.msra.mxu0 0.0
    %1588 = vmatprep.subr.mxu0 0.0
    %1589 = vmatpush1.msra.mxu0 0.0
    %1590 = vmatprep.subr.mxu0 0.0
    %1591 = vmatpush1.msra.mxu0 0.0
    %1592 = vmatprep.subr.mxu0 0.0
    %1593 = vmatpush1.msra.mxu0 0.0
    %1594 = vmatprep.subr.mxu0 0.0
    %1595 = vmatpush1.msra.mxu0 0.0
    %1596 = vmatprep.subr.mxu0 0.0
    %1597 = vmatpush1.msra.mxu0 0.0
    %1598 = vmatprep.subr.mxu0 0.0
    %1599 = vmatpush1.msra.mxu0 0.0
    %1600 = vmatprep.mubr.f32.mxu0 0.0
    %1601 = vmatmul.mubr.f32.gmra.mrb[0].mxu0 %v1534
    %v1602 = vpop.f32.mrb[0].mxu0
    %v1603 = vadd.f32 %v153, %v1602
    %v1604 = vpop.f32.mrb[0].mxu0
    %1605 = vdwg.mxu0
    %v1606 = vmax.f32 %v1603, 0.0
    %v1607 = vand.u32 2147483647, %v1603
    %v1608 = vsub.f32 0.0, %v1607
    %v1609 = vmul.f32 %v1608, 1.442695
    %v1610 = vpow.pop %v1609
    %v1611 = vadd.f32 %v1610, 1.0
    %v1612 = vlog2.pop %v1611
    %v1613 = vmul.f32 %v1612, 0.6931472
    %v1614 = vmul.f32 -0.5, %v1610
    %v1615 = vadd.f32 %v1614, 1.0
    %v1616 = vmul.f32 %v1615, %v1610
    %v1617 = vand.u32 2147483647, %v1610
    %vm1618 = vcmp.lt.f32.partialorder %v1617, 0.0004427343
    %v1619 = vsel %vm1618, %v1616, %v1613
    %v1620 = vadd.f32 %v1606, %v1619
    %v1621 = vadd.f32 %v1620, 0.1
    %v1622 = vsel %vm157, %v1621, %v1603
    %s1623 = scalar_lea.vmem [#allocation8], 24
    %v1624 = vld [vmem:[%s1623] sm:$0xff]
    %1626 = vrot.lane.b32.xlu0 %v1624, 16
    %v1627 = vpop.permute.xlu0 %1626
    %v1629 = vmul.f32 %v1622, %v1627
    %1631 = vrot.lane.b32.xlu0 %v1629, 112
    %v1632 = vpop.permute.xlu0 %1631
    %v1634 = vadd.f32 %v1622, %v1632
    %s1636 = scalar_lea.vmem [#allocation13], 24
    %1637 = vst.msk [vmem:[%s1636] sm:$0xff] %vm242, %v1459
    %1639 = vrot.lane.b32.xlu0 %v1622, 32
    %v1640 = vpop.permute.xlu0 %1639
    %1642 = vst.msk [vmem:[%s1636] sm:$0xff] %vm527, %v1640
    %1644 = vrot.lane.b32.xlu0 %v1634, 64
    %v1645 = vpop.permute.xlu0 %1644
    %1647 = vst.msk [vmem:[%s1636] sm:$0xff] %vm533, %v1645
    %s1648 = scalar_lea.vmem %s2, 32
    %v1649 = vld [vmem:[%s1648] sm:$0xff]
    %v1650 = vmul.f32 %v1634, %v1649
    %s1651 = scalar_lea.vmem [#allocation5], 32
    %v1652 = vld [vmem:[%s1651] sm:$0xff]
    %v1654 = vsel %vm163, %v1650, 0
    %1656 = vmatprep.subr.mxu0 0.0
    %1657 = vmatpush1.msra.mxu0 %v120
    %1658 = vmatprep.subr.mxu0 0.0
    %1659 = vmatpush1.msra.mxu0 0.0
    %1660 = vmatprep.subr.mxu0 0.0
    %1661 = vmatpush1.msra.mxu0 0.0
    %1662 = vmatprep.subr.mxu0 0.0
    %1663 = vmatpush1.msra.mxu0 0.0
    %1664 = vmatprep.subr.mxu0 0.0
    %1665 = vmatpush1.msra.mxu0 0.0
    %1666 = vmatprep.subr.mxu0 0.0
    %1667 = vmatpush1.msra.mxu0 0.0
    %1668 = vmatprep.subr.mxu0 0.0
    %1669 = vmatpush1.msra.mxu0 0.0
    %1670 = vmatprep.subr.mxu0 0.0
    %1671 = vmatpush1.msra.mxu0 0.0
    %1672 = vmatprep.subr.mxu0 0.0
    %1673 = vmatpush1.msra.mxu0 0.0
    %1674 = vmatprep.subr.mxu0 0.0
    %1675 = vmatpush1.msra.mxu0 0.0
    %1676 = vmatprep.subr.mxu0 0.0
    %1677 = vmatpush1.msra.mxu0 0.0
    %1678 = vmatprep.subr.mxu0 0.0
    %1679 = vmatpush1.msra.mxu0 0.0
    %1680 = vmatprep.subr.mxu0 0.0
    %1681 = vmatpush1.msra.mxu0 0.0
    %1682 = vmatprep.subr.mxu0 0.0
    %1683 = vmatpush1.msra.mxu0 0.0
    %1684 = vmatprep.subr.mxu0 0.0
    %1685 = vmatpush1.msra.mxu0 0.0
    %1686 = vmatprep.subr.mxu0 0.0
    %1687 = vmatpush1.msra.mxu0 0.0
    %1688 = vmatprep.subr.mxu0 0.0
    %1689 = vmatpush1.msra.mxu0 0.0
    %1690 = vmatprep.subr.mxu0 0.0
    %1691 = vmatpush1.msra.mxu0 0.0
    %1692 = vmatprep.subr.mxu0 0.0
    %1693 = vmatpush1.msra.mxu0 0.0
    %1694 = vmatprep.subr.mxu0 0.0
    %1695 = vmatpush1.msra.mxu0 0.0
    %1696 = vmatprep.subr.mxu0 0.0
    %1697 = vmatpush1.msra.mxu0 0.0
    %1698 = vmatprep.subr.mxu0 0.0
    %1699 = vmatpush1.msra.mxu0 0.0
    %1700 = vmatprep.subr.mxu0 0.0
    %1701 = vmatpush1.msra.mxu0 0.0
    %1702 = vmatprep.subr.mxu0 0.0
    %1703 = vmatpush1.msra.mxu0 0.0
    %1704 = vmatprep.subr.mxu0 0.0
    %1705 = vmatpush1.msra.mxu0 0.0
    %1706 = vmatprep.subr.mxu0 0.0
    %1707 = vmatpush1.msra.mxu0 0.0
    %1708 = vmatprep.subr.mxu0 0.0
    %1709 = vmatpush1.msra.mxu0 0.0
    %1710 = vmatprep.subr.mxu0 0.0
    %1711 = vmatpush1.msra.mxu0 0.0
    %1712 = vmatprep.subr.mxu0 0.0
    %1713 = vmatpush1.msra.mxu0 0.0
    %1714 = vmatprep.subr.mxu0 0.0
    %1715 = vmatpush1.msra.mxu0 0.0
    %1716 = vmatprep.subr.mxu0 0.0
    %1717 = vmatpush1.msra.mxu0 0.0
    %1718 = vmatprep.subr.mxu0 0.0
    %1719 = vmatpush1.msra.mxu0 0.0
    %1720 = vmatprep.mubr.f32.mxu0 0.0
    %1721 = vmatmul.mubr.f32.gmra.mrb[0].mxu0 %v1654
    %v1722 = vpop.f32.mrb[0].mxu0
    %v1723 = vadd.f32 %v1652, %v1722
    %v1724 = vpop.f32.mrb[0].mxu0
    %1725 = vdwg.mxu0
    %v1726 = vmax.f32 %v1723, 0.0
    %v1727 = vsel %vm242, %v1726, %v1454
    %v1729 = vsel %vm244, %v1727, 0
    %1731 = vmatprep.subr.mxu0 0.0
    %1732 = vmatpush1.msra.mxu0 %v121
    %1733 = vmatprep.subr.mxu0 0.0
    %1734 = vmatpush1.msra.mxu0 %v122
    %1735 = vmatprep.subr.mxu0 0.0
    %1736 = vmatpush1.msra.mxu0 %v123
    %1737 = vmatprep.subr.mxu0 0.0
    %1738 = vmatpush1.msra.mxu0 %v124
    %1739 = vmatprep.subr.mxu0 0.0
    %1740 = vmatpush1.msra.mxu0 %v125
    %1741 = vmatprep.subr.mxu0 0.0
    %1742 = vmatpush1.msra.mxu0 %v126
    %1743 = vmatprep.subr.mxu0 0.0
    %1744 = vmatpush1.msra.mxu0 %v127
    %1745 = vmatprep.subr.mxu0 0.0
    %1746 = vmatpush1.msra.mxu0 %v128
    %1747 = vmatprep.subr.mxu0 0.0
    %1748 = vmatpush1.msra.mxu0 0.0
    %1749 = vmatprep.subr.mxu0 0.0
    %1750 = vmatpush1.msra.mxu0 0.0
    %1751 = vmatprep.subr.mxu0 0.0
    %1752 = vmatpush1.msra.mxu0 0.0
    %1753 = vmatprep.subr.mxu0 0.0
    %1754 = vmatpush1.msra.mxu0 0.0
    %1755 = vmatprep.subr.mxu0 0.0
    %1756 = vmatpush1.msra.mxu0 0.0
    %1757 = vmatprep.subr.mxu0 0.0
    %1758 = vmatpush1.msra.mxu0 0.0
    %1759 = vmatprep.subr.mxu0 0.0
    %1760 = vmatpush1.msra.mxu0 0.0
    %1761 = vmatprep.subr.mxu0 0.0
    %1762 = vmatpush1.msra.mxu0 0.0
    %1763 = vmatprep.subr.mxu0 0.0
    %1764 = vmatpush1.msra.mxu0 0.0
    %1765 = vmatprep.subr.mxu0 0.0
    %1766 = vmatpush1.msra.mxu0 0.0
    %1767 = vmatprep.subr.mxu0 0.0
    %1768 = vmatpush1.msra.mxu0 0.0
    %1769 = vmatprep.subr.mxu0 0.0
    %1770 = vmatpush1.msra.mxu0 0.0
    %1771 = vmatprep.subr.mxu0 0.0
    %1772 = vmatpush1.msra.mxu0 0.0
    %1773 = vmatprep.subr.mxu0 0.0
    %1774 = vmatpush1.msra.mxu0 0.0
    %1775 = vmatprep.subr.mxu0 0.0
    %1776 = vmatpush1.msra.mxu0 0.0
    %1777 = vmatprep.subr.mxu0 0.0
    %1778 = vmatpush1.msra.mxu0 0.0
    %1779 = vmatprep.subr.mxu0 0.0
    %1780 = vmatpush1.msra.mxu0 0.0
    %1781 = vmatprep.subr.mxu0 0.0
    %1782 = vmatpush1.msra.mxu0 0.0
    %1783 = vmatprep.subr.mxu0 0.0
    %1784 = vmatpush1.msra.mxu0 0.0
    %1785 = vmatprep.subr.mxu0 0.0
    %1786 = vmatpush1.msra.mxu0 0.0
    %1787 = vmatprep.subr.mxu0 0.0
    %1788 = vmatpush1.msra.mxu0 0.0
    %1789 = vmatprep.subr.mxu0 0.0
    %1790 = vmatpush1.msra.mxu0 0.0
    %1791 = vmatprep.subr.mxu0 0.0
    %1792 = vmatpush1.msra.mxu0 0.0
    %1793 = vmatprep.subr.mxu0 0.0
    %1794 = vmatpush1.msra.mxu0 0.0
    %1795 = vmatprep.mubr.f32.mxu0 0.0
    %1796 = vmatmul.mubr.f32.gmra.mrb[0].mxu0 %v1729
    %v1797 = vpop.f32.mrb[0].mxu0
    %v1798 = vadd.f32 %v146, %v1797
    %v1799 = vpop.f32.mrb[0].mxu0
    %1800 = vdwg.mxu0
    %v1801 = vxor.u32 %v1798, 2147483648
    %v1802 = vmul.f32 %v1801, 1.442695
    %v1803 = vpow.pop %v1802
    %v1804 = vadd.f32 %v1803, 1.0
    %v1805 = vrcp.pop %v1804
    %v1806 = vmul.f32 1.0, %v1805
    %1808 = vrot.lane.b32.xlu0 %v1798, 32
    %v1809 = vpop.permute.xlu0 %1808
    %v1811 = vmul.f32 %v1806, %v1809
    %1813 = vrot.lane.b32.xlu0 %v1811, 64
    %v1814 = vpop.permute.xlu0 %1813
    %v1816 = vadd.f32 %v1798, %v1814
    %v1817 = vtanh.pop %v1816
    %v1818 = vsub.f32 1.0, %v1806
    %1820 = vrot.lane.b32.xlu0 %v1817, 96
    %v1821 = vpop.permute.xlu0 %1820
    %v1823 = vmul.f32 %v1818, %v1821
    %v1824 = vmul.f32 %v1806, %v1454
    %v1825 = vadd.f32 %v1823, %v1824
    %s1826 = scalar_lea.vmem [#allocation7], 32
    %v1827 = vld [vmem:[%s1826] sm:$0xff]
    %1829 = vrot.lane.b32.xlu0 %v1825, 96
    %v1830 = vpop.permute.xlu0 %1829
    %v1831 = vsel %vm242, %v1830, 0
    %1833 = vmatprep.subr.mxu0 0.0
    %1834 = vmatpush1.msra.mxu0 %v129
    %1835 = vmatprep.subr.mxu0 0.0
    %1836 = vmatpush1.msra.mxu0 %v130
    %1837 = vmatprep.subr.mxu0 0.0
    %1838 = vmatpush1.msra.mxu0 %v131
    %1839 = vmatprep.subr.mxu0 0.0
    %1840 = vmatpush1.msra.mxu0 %v132
    %1841 = vmatprep.subr.mxu0 0.0
    %1842 = vmatpush1.msra.mxu0 0.0
    %1843 = vmatprep.subr.mxu0 0.0
    %1844 = vmatpush1.msra.mxu0 0.0
    %1845 = vmatprep.subr.mxu0 0.0
    %1846 = vmatpush1.msra.mxu0 0.0
    %1847 = vmatprep.subr.mxu0 0.0
    %1848 = vmatpush1.msra.mxu0 0.0
    %1849 = vmatprep.subr.mxu0 0.0
    %1850 = vmatpush1.msra.mxu0 0.0
    %1851 = vmatprep.subr.mxu0 0.0
    %1852 = vmatpush1.msra.mxu0 0.0
    %1853 = vmatprep.subr.mxu0 0.0
    %1854 = vmatpush1.msra.mxu0 0.0
    %1855 = vmatprep.subr.mxu0 0.0
    %1856 = vmatpush1.msra.mxu0 0.0
    %1857 = vmatprep.subr.mxu0 0.0
    %1858 = vmatpush1.msra.mxu0 0.0
    %1859 = vmatprep.subr.mxu0 0.0
    %1860 = vmatpush1.msra.mxu0 0.0
    %1861 = vmatprep.subr.mxu0 0.0
    %1862 = vmatpush1.msra.mxu0 0.0
    %1863 = vmatprep.subr.mxu0 0.0
    %1864 = vmatpush1.msra.mxu0 0.0
    %1865 = vmatprep.subr.mxu0 0.0
    %1866 = vmatpush1.msra.mxu0 0.0
    %1867 = vmatprep.subr.mxu0 0.0
    %1868 = vmatpush1.msra.mxu0 0.0
    %1869 = vmatprep.subr.mxu0 0.0
    %1870 = vmatpush1.msra.mxu0 0.0
    %1871 = vmatprep.subr.mxu0 0.0
    %1872 = vmatpush1.msra.mxu0 0.0
    %1873 = vmatprep.subr.mxu0 0.0
    %1874 = vmatpush1.msra.mxu0 0.0
    %1875 = vmatprep.subr.mxu0 0.0
    %1876 = vmatpush1.msra.mxu0 0.0
    %1877 = vmatprep.subr.mxu0 0.0
    %1878 = vmatpush1.msra.mxu0 0.0
    %1879 = vmatprep.subr.mxu0 0.0
    %1880 = vmatpush1.msra.mxu0 0.0
    %1881 = vmatprep.subr.mxu0 0.0
    %1882 = vmatpush1.msra.mxu0 0.0
    %1883 = vmatprep.subr.mxu0 0.0
    %1884 = vmatpush1.msra.mxu0 0.0
    %1885 = vmatprep.subr.mxu0 0.0
    %1886 = vmatpush1.msra.mxu0 0.0
    %1887 = vmatprep.subr.mxu0 0.0
    %1888 = vmatpush1.msra.mxu0 0.0
    %1889 = vmatprep.subr.mxu0 0.0
    %1890 = vmatpush1.msra.mxu0 0.0
    %1891 = vmatprep.subr.mxu0 0.0
    %1892 = vmatpush1.msra.mxu0 0.0
    %1893 = vmatprep.subr.mxu0 0.0
    %1894 = vmatpush1.msra.mxu0 0.0
    %1895 = vmatprep.subr.mxu0 0.0
    %1896 = vmatpush1.msra.mxu0 0.0
    %1897 = vmatprep.mubr.f32.mxu0 0.0
    %1898 = vmatmul.mubr.f32.gmra.mrb[0].mxu0 %v1831
    %v1899 = vpop.f32.mrb[0].mxu0
    %v1900 = vadd.f32 %v1827, %v1899
    %v1901 = vpop.f32.mrb[0].mxu0
    %1902 = vdwg.mxu0
    %v1903 = vmax.f32 %v1900, 0.0
    %v1905 = vsel %vm244, %v1903, 0
    %1907 = vmatprep.subr.mxu0 0.0
    %1908 = vmatpush1.msra.mxu0 %v133
    %1909 = vmatprep.subr.mxu0 0.0
    %1910 = vmatpush1.msra.mxu0 %v134
    %1911 = vmatprep.subr.mxu0 0.0
    %1912 = vmatpush1.msra.mxu0 %v135
    %1913 = vmatprep.subr.mxu0 0.0
    %1914 = vmatpush1.msra.mxu0 %v136
    %1915 = vmatprep.subr.mxu0 0.0
    %1916 = vmatpush1.msra.mxu0 %v137
    %1917 = vmatprep.subr.mxu0 0.0
    %1918 = vmatpush1.msra.mxu0 %v138
    %1919 = vmatprep.subr.mxu0 0.0
    %1920 = vmatpush1.msra.mxu0 %v139
    %1921 = vmatprep.subr.mxu0 0.0
    %1922 = vmatpush1.msra.mxu0 %v140
    %1923 = vmatprep.subr.mxu0 0.0
    %1924 = vmatpush1.msra.mxu0 0.0
    %1925 = vmatprep.subr.mxu0 0.0
    %1926 = vmatpush1.msra.mxu0 0.0
    %1927 = vmatprep.subr.mxu0 0.0
    %1928 = vmatpush1.msra.mxu0 0.0
    %1929 = vmatprep.subr.mxu0 0.0
    %1930 = vmatpush1.msra.mxu0 0.0
    %1931 = vmatprep.subr.mxu0 0.0
    %1932 = vmatpush1.msra.mxu0 0.0
    %1933 = vmatprep.subr.mxu0 0.0
    %1934 = vmatpush1.msra.mxu0 0.0
    %1935 = vmatprep.subr.mxu0 0.0
    %1936 = vmatpush1.msra.mxu0 0.0
    %1937 = vmatprep.subr.mxu0 0.0
    %1938 = vmatpush1.msra.mxu0 0.0
    %1939 = vmatprep.subr.mxu0 0.0
    %1940 = vmatpush1.msra.mxu0 0.0
    %1941 = vmatprep.subr.mxu0 0.0
    %1942 = vmatpush1.msra.mxu0 0.0
    %1943 = vmatprep.subr.mxu0 0.0
    %1944 = vmatpush1.msra.mxu0 0.0
    %1945 = vmatprep.subr.mxu0 0.0
    %1946 = vmatpush1.msra.mxu0 0.0
    %1947 = vmatprep.subr.mxu0 0.0
    %1948 = vmatpush1.msra.mxu0 0.0
    %1949 = vmatprep.subr.mxu0 0.0
    %1950 = vmatpush1.msra.mxu0 0.0
    %1951 = vmatprep.subr.mxu0 0.0
    %1952 = vmatpush1.msra.mxu0 0.0
    %1953 = vmatprep.subr.mxu0 0.0
    %1954 = vmatpush1.msra.mxu0 0.0
    %1955 = vmatprep.subr.mxu0 0.0
    %1956 = vmatpush1.msra.mxu0 0.0
    %1957 = vmatprep.subr.mxu0 0.0
    %1958 = vmatpush1.msra.mxu0 0.0
    %1959 = vmatprep.subr.mxu0 0.0
    %1960 = vmatpush1.msra.mxu0 0.0
    %1961 = vmatprep.subr.mxu0 0.0
    %1962 = vmatpush1.msra.mxu0 0.0
    %1963 = vmatprep.subr.mxu0 0.0
    %1964 = vmatpush1.msra.mxu0 0.0
    %1965 = vmatprep.subr.mxu0 0.0
    %1966 = vmatpush1.msra.mxu0 0.0
    %1967 = vmatprep.subr.mxu0 0.0
    %1968 = vmatpush1.msra.mxu0 0.0
    %1969 = vmatprep.subr.mxu0 0.0
    %1970 = vmatpush1.msra.mxu0 0.0
    %1971 = vmatprep.mubr.f32.mxu0 0.0
    %1972 = vmatmul.mubr.f32.gmra.mrb[0].mxu0 %v1905
    %v1973 = vpop.f32.mrb[0].mxu0
    %v1974 = vadd.f32 %v153, %v1973
    %v1975 = vpop.f32.mrb[0].mxu0
    %1976 = vdwg.mxu0
    %v1977 = vmax.f32 %v1974, 0.0
    %v1978 = vand.u32 2147483647, %v1974
    %v1979 = vsub.f32 0.0, %v1978
    %v1980 = vmul.f32 %v1979, 1.442695
    %v1981 = vpow.pop %v1980
    %v1982 = vadd.f32 %v1981, 1.0
    %v1983 = vlog2.pop %v1982
    %v1984 = vmul.f32 %v1983, 0.6931472
    %v1985 = vmul.f32 -0.5, %v1981
    %v1986 = vadd.f32 %v1985, 1.0
    %v1987 = vmul.f32 %v1986, %v1981
    %v1988 = vand.u32 2147483647, %v1981
    %vm1989 = vcmp.lt.f32.partialorder %v1988, 0.0004427343
    %v1990 = vsel %vm1989, %v1987, %v1984
    %v1991 = vadd.f32 %v1977, %v1990
    %v1992 = vadd.f32 %v1991, 0.1
    %v1993 = vsel %vm157, %v1992, %v1974
    %s1994 = scalar_lea.vmem [#allocation8], 32
    %v1995 = vld [vmem:[%s1994] sm:$0xff]
    %1997 = vrot.lane.b32.xlu0 %v1995, 16
    %v1998 = vpop.permute.xlu0 %1997
    %v2000 = vmul.f32 %v1993, %v1998
    %2002 = vrot.lane.b32.xlu0 %v2000, 112
    %v2003 = vpop.permute.xlu0 %2002
    %v2005 = vadd.f32 %v1993, %v2003
    %s2007 = scalar_lea.vmem [#allocation13], 32
    %2008 = vst.msk [vmem:[%s2007] sm:$0xff] %vm242, %v1830
    %2010 = vrot.lane.b32.xlu0 %v1993, 32
    %v2011 = vpop.permute.xlu0 %2010
    %2013 = vst.msk [vmem:[%s2007] sm:$0xff] %vm527, %v2011
    %2015 = vrot.lane.b32.xlu0 %v2005, 64
    %v2016 = vpop.permute.xlu0 %2015
    %2018 = vst.msk [vmem:[%s2007] sm:$0xff] %vm533, %v2016
    %s2019 = scalar_lea.vmem %s2, 40
    %v2020 = vld [vmem:[%s2019] sm:$0xff]
    %v2021 = vmul.f32 %v2005, %v2020
    %s2022 = scalar_lea.vmem [#allocation5], 40
    %v2023 = vld [vmem:[%s2022] sm:$0xff]
    %v2025 = vsel %vm163, %v2021, 0
    %2027 = vmatprep.subr.mxu0 0.0
    %2028 = vmatpush1.msra.mxu0 %v120
    %2029 = vmatprep.subr.mxu0 0.0
    %2030 = vmatpush1.msra.mxu0 0.0
    %2031 = vmatprep.subr.mxu0 0.0
    %2032 = vmatpush1.msra.mxu0 0.0
    %2033 = vmatprep.subr.mxu0 0.0
    %2034 = vmatpush1.msra.mxu0 0.0
    %2035 = vmatprep.subr.mxu0 0.0
    %2036 = vmatpush1.msra.mxu0 0.0
    %2037 = vmatprep.subr.mxu0 0.0
    %2038 = vmatpush1.msra.mxu0 0.0
    %2039 = vmatprep.subr.mxu0 0.0
    %2040 = vmatpush1.msra.mxu0 0.0
    %2041 = vmatprep.subr.mxu0 0.0
    %2042 = vmatpush1.msra.mxu0 0.0
    %2043 = vmatprep.subr.mxu0 0.0
    %2044 = vmatpush1.msra.mxu0 0.0
    %2045 = vmatprep.subr.mxu0 0.0
    %2046 = vmatpush1.msra.mxu0 0.0
    %2047 = vmatprep.subr.mxu0 0.0
    %2048 = vmatpush1.msra.mxu0 0.0
    %2049 = vmatprep.subr.mxu0 0.0
    %2050 = vmatpush1.msra.mxu0 0.0
    %2051 = vmatprep.subr.mxu0 0.0
    %2052 = vmatpush1.msra.mxu0 0.0
    %2053 = vmatprep.subr.mxu0 0.0
    %2054 = vmatpush1.msra.mxu0 0.0
    %2055 = vmatprep.subr.mxu0 0.0
    %2056 = vmatpush1.msra.mxu0 0.0
    %2057 = vmatprep.subr.mxu0 0.0
    %2058 = vmatpush1.msra.mxu0 0.0
    %2059 = vmatprep.subr.mxu0 0.0
    %2060 = vmatpush1.msra.mxu0 0.0
    %2061 = vmatprep.subr.mxu0 0.0
    %2062 = vmatpush1.msra.mxu0 0.0
    %2063 = vmatprep.subr.mxu0 0.0
    %2064 = vmatpush1.msra.mxu0 0.0
    %2065 = vmatprep.subr.mxu0 0.0
    %2066 = vmatpush1.msra.mxu0 0.0
    %2067 = vmatprep.subr.mxu0 0.0
    %2068 = vmatpush1.msra.mxu0 0.0
    %2069 = vmatprep.subr.mxu0 0.0
    %2070 = vmatpush1.msra.mxu0 0.0
    %2071 = vmatprep.subr.mxu0 0.0
    %2072 = vmatpush1.msra.mxu0 0.0
    %2073 = vmatprep.subr.mxu0 0.0
    %2074 = vmatpush1.msra.mxu0 0.0
    %2075 = vmatprep.subr.mxu0 0.0
    %2076 = vmatpush1.msra.mxu0 0.0
    %2077 = vmatprep.subr.mxu0 0.0
    %2078 = vmatpush1.msra.mxu0 0.0
    %2079 = vmatprep.subr.mxu0 0.0
    %2080 = vmatpush1.msra.mxu0 0.0
    %2081 = vmatprep.subr.mxu0 0.0
    %2082 = vmatpush1.msra.mxu0 0.0
    %2083 = vmatprep.subr.mxu0 0.0
    %2084 = vmatpush1.msra.mxu0 0.0
    %2085 = vmatprep.subr.mxu0 0.0
    %2086 = vmatpush1.msra.mxu0 0.0
    %2087 = vmatprep.subr.mxu0 0.0
    %2088 = vmatpush1.msra.mxu0 0.0
    %2089 = vmatprep.subr.mxu0 0.0
    %2090 = vmatpush1.msra.mxu0 0.0
    %2091 = vmatprep.mubr.f32.mxu0 0.0
    %2092 = vmatmul.mubr.f32.gmra.mrb[0].mxu0 %v2025
    %v2093 = vpop.f32.mrb[0].mxu0
    %v2094 = vadd.f32 %v2023, %v2093
    %v2095 = vpop.f32.mrb[0].mxu0
    %2096 = vdwg.mxu0
    %v2097 = vmax.f32 %v2094, 0.0
    %v2098 = vsel %vm242, %v2097, %v1825
    %v2100 = vsel %vm244, %v2098, 0
    %2102 = vmatprep.subr.mxu0 0.0
    %2103 = vmatpush1.msra.mxu0 %v121
    %2104 = vmatprep.subr.mxu0 0.0
    %2105 = vmatpush1.msra.mxu0 %v122
    %2106 = vmatprep.subr.mxu0 0.0
    %2107 = vmatpush1.msra.mxu0 %v123
    %2108 = vmatprep.subr.mxu0 0.0
    %2109 = vmatpush1.msra.mxu0 %v124
    %2110 = vmatprep.subr.mxu0 0.0
    %2111 = vmatpush1.msra.mxu0 %v125
    %2112 = vmatprep.subr.mxu0 0.0
    %2113 = vmatpush1.msra.mxu0 %v126
    %2114 = vmatprep.subr.mxu0 0.0
    %2115 = vmatpush1.msra.mxu0 %v127
    %2116 = vmatprep.subr.mxu0 0.0
    %2117 = vmatpush1.msra.mxu0 %v128
    %2118 = vmatprep.subr.mxu0 0.0
    %2119 = vmatpush1.msra.mxu0 0.0
    %2120 = vmatprep.subr.mxu0 0.0
    %2121 = vmatpush1.msra.mxu0 0.0
    %2122 = vmatprep.subr.mxu0 0.0
    %2123 = vmatpush1.msra.mxu0 0.0
    %2124 = vmatprep.subr.mxu0 0.0
    %2125 = vmatpush1.msra.mxu0 0.0
    %2126 = vmatprep.subr.mxu0 0.0
    %2127 = vmatpush1.msra.mxu0 0.0
    %2128 = vmatprep.subr.mxu0 0.0
    %2129 = vmatpush1.msra.mxu0 0.0
    %2130 = vmatprep.subr.mxu0 0.0
    %2131 = vmatpush1.msra.mxu0 0.0
    %2132 = vmatprep.subr.mxu0 0.0
    %2133 = vmatpush1.msra.mxu0 0.0
    %2134 = vmatprep.subr.mxu0 0.0
    %2135 = vmatpush1.msra.mxu0 0.0
    %2136 = vmatprep.subr.mxu0 0.0
    %2137 = vmatpush1.msra.mxu0 0.0
    %2138 = vmatprep.subr.mxu0 0.0
    %2139 = vmatpush1.msra.mxu0 0.0
    %2140 = vmatprep.subr.mxu0 0.0
    %2141 = vmatpush1.msra.mxu0 0.0
    %2142 = vmatprep.subr.mxu0 0.0
    %2143 = vmatpush1.msra.mxu0 0.0
    %2144 = vmatprep.subr.mxu0 0.0
    %2145 = vmatpush1.msra.mxu0 0.0
    %2146 = vmatprep.subr.mxu0 0.0
    %2147 = vmatpush1.msra.mxu0 0.0
    %2148 = vmatprep.subr.mxu0 0.0
    %2149 = vmatpush1.msra.mxu0 0.0
    %2150 = vmatprep.subr.mxu0 0.0
    %2151 = vmatpush1.msra.mxu0 0.0
    %2152 = vmatprep.subr.mxu0 0.0
    %2153 = vmatpush1.msra.mxu0 0.0
    %2154 = vmatprep.subr.mxu0 0.0
    %2155 = vmatpush1.msra.mxu0 0.0
    %2156 = vmatprep.subr.mxu0 0.0
    %2157 = vmatpush1.msra.mxu0 0.0
    %2158 = vmatprep.subr.mxu0 0.0
    %2159 = vmatpush1.msra.mxu0 0.0
    %2160 = vmatprep.subr.mxu0 0.0
    %2161 = vmatpush1.msra.mxu0 0.0
    %2162 = vmatprep.subr.mxu0 0.0
    %2163 = vmatpush1.msra.mxu0 0.0
    %2164 = vmatprep.subr.mxu0 0.0
    %2165 = vmatpush1.msra.mxu0 0.0
    %2166 = vmatprep.mubr.f32.mxu0 0.0
    %2167 = vmatmul.mubr.f32.gmra.mrb[0].mxu0 %v2100
    %v2168 = vpop.f32.mrb[0].mxu0
    %v2169 = vadd.f32 %v146, %v2168
    %v2170 = vpop.f32.mrb[0].mxu0
    %2171 = vdwg.mxu0
    %v2172 = vxor.u32 %v2169, 2147483648
    %v2173 = vmul.f32 %v2172, 1.442695
    %v2174 = vpow.pop %v2173
    %v2175 = vadd.f32 %v2174, 1.0
    %v2176 = vrcp.pop %v2175
    %v2177 = vmul.f32 1.0, %v2176
    %2179 = vrot.lane.b32.xlu0 %v2169, 32
    %v2180 = vpop.permute.xlu0 %2179
    %v2182 = vmul.f32 %v2177, %v2180
    %2184 = vrot.lane.b32.xlu0 %v2182, 64
    %v2185 = vpop.permute.xlu0 %2184
    %v2187 = vadd.f32 %v2169, %v2185
    %v2188 = vtanh.pop %v2187
    %v2189 = vsub.f32 1.0, %v2177
    %2191 = vrot.lane.b32.xlu0 %v2188, 96
    %v2192 = vpop.permute.xlu0 %2191
    %v2194 = vmul.f32 %v2189, %v2192
    %v2195 = vmul.f32 %v2177, %v1825
    %v2196 = vadd.f32 %v2194, %v2195
    %s2197 = scalar_lea.vmem [#allocation7], 40
    %v2198 = vld [vmem:[%s2197] sm:$0xff]
    %2200 = vrot.lane.b32.xlu0 %v2196, 96
    %v2201 = vpop.permute.xlu0 %2200
    %v2202 = vsel %vm242, %v2201, 0
    %2204 = vmatprep.subr.mxu0 0.0
    %2205 = vmatpush1.msra.mxu0 %v129
    %2206 = vmatprep.subr.mxu0 0.0
    %2207 = vmatpush1.msra.mxu0 %v130
    %2208 = vmatprep.subr.mxu0 0.0
    %2209 = vmatpush1.msra.mxu0 %v131
    %2210 = vmatprep.subr.mxu0 0.0
    %2211 = vmatpush1.msra.mxu0 %v132
    %2212 = vmatprep.subr.mxu0 0.0
    %2213 = vmatpush1.msra.mxu0 0.0
    %2214 = vmatprep.subr.mxu0 0.0
    %2215 = vmatpush1.msra.mxu0 0.0
    %2216 = vmatprep.subr.mxu0 0.0
    %2217 = vmatpush1.msra.mxu0 0.0
    %2218 = vmatprep.subr.mxu0 0.0
    %2219 = vmatpush1.msra.mxu0 0.0
    %2220 = vmatprep.subr.mxu0 0.0
    %2221 = vmatpush1.msra.mxu0 0.0
    %2222 = vmatprep.subr.mxu0 0.0
    %2223 = vmatpush1.msra.mxu0 0.0
    %2224 = vmatprep.subr.mxu0 0.0
    %2225 = vmatpush1.msra.mxu0 0.0
    %2226 = vmatprep.subr.mxu0 0.0
    %2227 = vmatpush1.msra.mxu0 0.0
    %2228 = vmatprep.subr.mxu0 0.0
    %2229 = vmatpush1.msra.mxu0 0.0
    %2230 = vmatprep.subr.mxu0 0.0
    %2231 = vmatpush1.msra.mxu0 0.0
    %2232 = vmatprep.subr.mxu0 0.0
    %2233 = vmatpush1.msra.mxu0 0.0
    %2234 = vmatprep.subr.mxu0 0.0
    %2235 = vmatpush1.msra.mxu0 0.0
    %2236 = vmatprep.subr.mxu0 0.0
    %2237 = vmatpush1.msra.mxu0 0.0
    %2238 = vmatprep.subr.mxu0 0.0
    %2239 = vmatpush1.msra.mxu0 0.0
    %2240 = vmatprep.subr.mxu0 0.0
    %2241 = vmatpush1.msra.mxu0 0.0
    %2242 = vmatprep.subr.mxu0 0.0
    %2243 = vmatpush1.msra.mxu0 0.0
    %2244 = vmatprep.subr.mxu0 0.0
    %2245 = vmatpush1.msra.mxu0 0.0
    %2246 = vmatprep.subr.mxu0 0.0
    %2247 = vmatpush1.msra.mxu0 0.0
    %2248 = vmatprep.subr.mxu0 0.0
    %2249 = vmatpush1.msra.mxu0 0.0
    %2250 = vmatprep.subr.mxu0 0.0
    %2251 = vmatpush1.msra.mxu0 0.0
    %2252 = vmatprep.subr.mxu0 0.0
    %2253 = vmatpush1.msra.mxu0 0.0
    %2254 = vmatprep.subr.mxu0 0.0
    %2255 = vmatpush1.msra.mxu0 0.0
    %2256 = vmatprep.subr.mxu0 0.0
    %2257 = vmatpush1.msra.mxu0 0.0
    %2258 = vmatprep.subr.mxu0 0.0
    %2259 = vmatpush1.msra.mxu0 0.0
    %2260 = vmatprep.subr.mxu0 0.0
    %2261 = vmatpush1.msra.mxu0 0.0
    %2262 = vmatprep.subr.mxu0 0.0
    %2263 = vmatpush1.msra.mxu0 0.0
    %2264 = vmatprep.subr.mxu0 0.0
    %2265 = vmatpush1.msra.mxu0 0.0
    %2266 = vmatprep.subr.mxu0 0.0
    %2267 = vmatpush1.msra.mxu0 0.0
    %2268 = vmatprep.mubr.f32.mxu0 0.0
    %2269 = vmatmul.mubr.f32.gmra.mrb[0].mxu0 %v2202
    %v2270 = vpop.f32.mrb[0].mxu0
    %v2271 = vadd.f32 %v2198, %v2270
    %v2272 = vpop.f32.mrb[0].mxu0
    %2273 = vdwg.mxu0
    %v2274 = vmax.f32 %v2271, 0.0
    %v2276 = vsel %vm244, %v2274, 0
    %2278 = vmatprep.subr.mxu0 0.0
    %2279 = vmatpush1.msra.mxu0 %v133
    %2280 = vmatprep.subr.mxu0 0.0
    %2281 = vmatpush1.msra.mxu0 %v134
    %2282 = vmatprep.subr.mxu0 0.0
    %2283 = vmatpush1.msra.mxu0 %v135
    %2284 = vmatprep.subr.mxu0 0.0
    %2285 = vmatpush1.msra.mxu0 %v136
    %2286 = vmatprep.subr.mxu0 0.0
    %2287 = vmatpush1.msra.mxu0 %v137
    %2288 = vmatprep.subr.mxu0 0.0
    %2289 = vmatpush1.msra.mxu0 %v138
    %2290 = vmatprep.subr.mxu0 0.0
    %2291 = vmatpush1.msra.mxu0 %v139
    %2292 = vmatprep.subr.mxu0 0.0
    %2293 = vmatpush1.msra.mxu0 %v140
    %2294 = vmatprep.subr.mxu0 0.0
    %2295 = vmatpush1.msra.mxu0 0.0
    %2296 = vmatprep.subr.mxu0 0.0
    %2297 = vmatpush1.msra.mxu0 0.0
    %2298 = vmatprep.subr.mxu0 0.0
    %2299 = vmatpush1.msra.mxu0 0.0
    %2300 = vmatprep.subr.mxu0 0.0
    %2301 = vmatpush1.msra.mxu0 0.0
    %2302 = vmatprep.subr.mxu0 0.0
    %2303 = vmatpush1.msra.mxu0 0.0
    %2304 = vmatprep.subr.mxu0 0.0
    %2305 = vmatpush1.msra.mxu0 0.0
    %2306 = vmatprep.subr.mxu0 0.0
    %2307 = vmatpush1.msra.mxu0 0.0
    %2308 = vmatprep.subr.mxu0 0.0
    %2309 = vmatpush1.msra.mxu0 0.0
    %2310 = vmatprep.subr.mxu0 0.0
    %2311 = vmatpush1.msra.mxu0 0.0
    %2312 = vmatprep.subr.mxu0 0.0
    %2313 = vmatpush1.msra.mxu0 0.0
    %2314 = vmatprep.subr.mxu0 0.0
    %2315 = vmatpush1.msra.mxu0 0.0
    %2316 = vmatprep.subr.mxu0 0.0
    %2317 = vmatpush1.msra.mxu0 0.0
    %2318 = vmatprep.subr.mxu0 0.0
    %2319 = vmatpush1.msra.mxu0 0.0
    %2320 = vmatprep.subr.mxu0 0.0
    %2321 = vmatpush1.msra.mxu0 0.0
    %2322 = vmatprep.subr.mxu0 0.0
    %2323 = vmatpush1.msra.mxu0 0.0
    %2324 = vmatprep.subr.mxu0 0.0
    %2325 = vmatpush1.msra.mxu0 0.0
    %2326 = vmatprep.subr.mxu0 0.0
    %2327 = vmatpush1.msra.mxu0 0.0
    %2328 = vmatprep.subr.mxu0 0.0
    %2329 = vmatpush1.msra.mxu0 0.0
    %2330 = vmatprep.subr.mxu0 0.0
    %2331 = vmatpush1.msra.mxu0 0.0
    %2332 = vmatprep.subr.mxu0 0.0
    %2333 = vmatpush1.msra.mxu0 0.0
    %2334 = vmatprep.subr.mxu0 0.0
    %2335 = vmatpush1.msra.mxu0 0.0
    %2336 = vmatprep.subr.mxu0 0.0
    %2337 = vmatpush1.msra.mxu0 0.0
    %2338 = vmatprep.subr.mxu0 0.0
    %2339 = vmatpush1.msra.mxu0 0.0
    %2340 = vmatprep.subr.mxu0 0.0
    %2341 = vmatpush1.msra.mxu0 0.0
    %2342 = vmatprep.mubr.f32.mxu0 0.0
    %2343 = vmatmul.mubr.f32.gmra.mrb[0].mxu0 %v2276
    %v2344 = vpop.f32.mrb[0].mxu0
    %v2345 = vadd.f32 %v153, %v2344
    %v2346 = vpop.f32.mrb[0].mxu0
    %2347 = vdwg.mxu0
    %v2348 = vmax.f32 %v2345, 0.0
    %v2349 = vand.u32 2147483647, %v2345
    %v2350 = vsub.f32 0.0, %v2349
    %v2351 = vmul.f32 %v2350, 1.442695
    %v2352 = vpow.pop %v2351
    %v2353 = vadd.f32 %v2352, 1.0
    %v2354 = vlog2.pop %v2353
    %v2355 = vmul.f32 %v2354, 0.6931472
    %v2356 = vmul.f32 -0.5, %v2352
    %v2357 = vadd.f32 %v2356, 1.0
    %v2358 = vmul.f32 %v2357, %v2352
    %v2359 = vand.u32 2147483647, %v2352
    %vm2360 = vcmp.lt.f32.partialorder %v2359, 0.0004427343
    %v2361 = vsel %vm2360, %v2358, %v2355
    %v2362 = vadd.f32 %v2348, %v2361
    %v2363 = vadd.f32 %v2362, 0.1
    %v2364 = vsel %vm157, %v2363, %v2345
    %s2365 = scalar_lea.vmem [#allocation8], 40
    %v2366 = vld [vmem:[%s2365] sm:$0xff]
    %2368 = vrot.lane.b32.xlu0 %v2366, 16
    %v2369 = vpop.permute.xlu0 %2368
    %v2371 = vmul.f32 %v2364, %v2369
    %2373 = vrot.lane.b32.xlu0 %v2371, 112
    %v2374 = vpop.permute.xlu0 %2373
    %v2376 = vadd.f32 %v2364, %v2374
    %s2378 = scalar_lea.vmem [#allocation13], 40
    %2379 = vst.msk [vmem:[%s2378] sm:$0xff] %vm242, %v2201
    %2381 = vrot.lane.b32.xlu0 %v2364, 32
    %v2382 = vpop.permute.xlu0 %2381
    %2384 = vst.msk [vmem:[%s2378] sm:$0xff] %vm527, %v2382
    %2386 = vrot.lane.b32.xlu0 %v2376, 64
    %v2387 = vpop.permute.xlu0 %2386
    %2389 = vst.msk [vmem:[%s2378] sm:$0xff] %vm533, %v2387
    // Predicated region
    $region74: #{tpu_custom_call.1} parent=1 // pred_check
      _
    $region75: #{tpu_custom_call.1} parent=1 // pred_check_branch
      %2391 = sbr.rel (0) target = $region77
    $region76: #{tpu_custom_call.1} parent=1 // pred_region
      %s2393 = ssub.s32 768, 768
      %2394 = vsyncadd [#allocation4], %s2393
      %s2395 = sshll.u32 [#allocation13], 4
      %s2396 = int_to_ptr.vmem [resolvable:$true] %s2395
      %2401 = dma.vmem_to_hbm [thread:$0]  %s2396, 768, %s12, [#allocation4], 128, 128, 8
    $region77: #{tpu_custom_call.1} parent=1 // pred_fallthru
      _
    // Predicated region
    $region78: #{tpu_custom_call.1} parent=1 // pred_check
      _
    $region79: #{tpu_custom_call.1} parent=1 // pred_check_branch
      %2403 = sbr.rel (0) target = $region81
    $region80: #{tpu_custom_call.1} parent=1 // pred_region
      %2404 = dma.done [#allocation4], 768
    $region81: #{tpu_custom_call.1} parent=1 // pred_fallthru
      _
    %2405 = vsyncpa [#allocation3], 1
    %2406 = vsyncpa [#allocation6], 1
    %2407 = vsyncpa [#allocation9], 1
    %2408 = vsyncpa [#allocation12], 1
    %2409 = vsyncpa [#allocation4], 1

</llo_original>
